<compile_context>
chip_gen: v7x
topology: tpu7x:2x2x1
jax: 0.10.0
libtpu: 0.0.40
codegen_flags: <defaults>
</compile_context>

<pallas_src>
import jax
import jax.numpy as jnp
import numpy as np
from jax.experimental import pallas as pl
from jax.experimental.pallas import tpu as pltpu


# --------------------------------- kernel ------------------------------------

def basic_block_kernel(xp_ref, w1_ref, b1_ref, w2_ref, b2_ref, ws_ref, bs_ref,
                       o_ref, h1p_ref):
    Hp, Wp, Cin = xp_ref.shape          # reflection-padded input (H+2, W+2, Cin)
    H, W = Hp - 2, Wp - 2
    Ho, Wo = H // 2, W // 2
    Cout = o_ref.shape[-1]

    # ---- conv1: ReLU -> 3x3 conv (Cin->Cin) as 9 per-tap matmuls -------------
    xp = xp_ref[...]                                     # f32 (Hp, Wp, Cin)
    a = jnp.maximum(xp, 0.0)                             # ReLU once, f32 (VPU)
    # Hoist the three W-shifted (sublane) views; H shifts are cheap vreg slices.
    a_w = [a[:, kw:kw + W, :] for kw in range(3)]        # each (Hp, W, Cin)

    acc1 = jnp.zeros((H * W, Cin), jnp.float32)
    for kh in range(3):
        for kw in range(3):
            tap = a_w[kw][kh:kh + H].reshape(H * W, Cin).astype(jnp.bfloat16)
            acc1 = acc1 + jnp.dot(tap, w1_ref[kh * 3 + kw],
                                  preferred_element_type=jnp.float32)
    h1 = jnp.maximum(acc1 + b1_ref[...], 0.0)            # bias + ReLU, f32

    # ---- reflection-pad h1 into a row-parity-separated VMEM scratch ----------
    # Scratch rows 0..Ho      hold padded rows 0,2,...,2*Ho      (even parity)
    # Scratch rows Ho+1..2Ho+1 hold padded rows 1,3,...,2*Ho+1   (odd parity)
    # so the stride-2 row selection of the fused 4x4 conv is a plain row slice.
    h1_4 = h1.reshape(Ho, 2, W, Cin)
    h1_even = h1_4[:, 0]                                 # orig rows 0,2,...
    h1_odd = h1_4[:, 1]                                  # orig rows 1,3,...
    # padded rows [0,2,...,2Ho]   = [orig 1] + [orig 1,3,...,2Ho-1]
    p0 = jnp.concatenate([h1_odd[0:1], h1_odd], axis=0)            # (Ho+1, W, Cin)
    # padded rows [1,3,...,2Ho+1] = [orig 0,2,...,2Ho-2] + [orig 2Ho-2]
    p1 = jnp.concatenate([h1_even, h1_even[Ho - 1:Ho]], axis=0)    # (Ho+1, W, Cin)
    B0, B1 = 0, Ho + 1
    # interior columns
    h1p_ref[B0:B0 + Ho + 1, 1:W + 1, :] = p0
    h1p_ref[B1:B1 + Ho + 1, 1:W + 1, :] = p1
    # left/right reflect columns from live values (corners included, no readback)
    h1p_ref[B0:B0 + Ho + 1, 0:1, :] = p0[:, 1:2, :]                # pad col 0 = orig col 1
    h1p_ref[B1:B1 + Ho + 1, 0:1, :] = p1[:, 1:2, :]
    h1p_ref[B0:B0 + Ho + 1, W + 1:W + 2, :] = p0[:, W - 2:W - 1, :]  # pad col W+1 = orig col W-2
    h1p_ref[B1:B1 + Ho + 1, W + 1:W + 2, :] = p1[:, W - 2:W - 1, :]

    # ---- conv2 fused with AvgPool2d(2,2): 4x4 stride-2 conv, 16 per-tap matmuls
    acc2 = jnp.zeros((Ho * Wo, Cout), jnp.float32)
    for p in range(2):                                   # row parity = kh % 2
        base = p * (Ho + 1)
        for kw in range(4):
            # stride-2 column selection done once per (parity, kw)
            colblk = h1p_ref[base:base + Ho + 1, pl.ds(kw, Wo, 2), :]  # (Ho+1, Wo, Cin)
            for ka in range(2):                          # ka = kh // 2
                kh = 2 * ka + p
                tap = colblk[ka:ka + Ho].reshape(Ho * Wo, Cin).astype(jnp.bfloat16)
                acc2 = acc2 + jnp.dot(tap, w2_ref[kh * 4 + kw],
                                      preferred_element_type=jnp.float32)
    conv_out = acc2 + b2_ref[...]                        # pooled bias == bias

    # ---- shortcut: AvgPool2d(2,2) -> 1x1 conv ---------------------------------
    # strided sublane reads of the (un-ReLU'd) interior of the padded input ref
    xe = xp_ref[1:H + 1, pl.ds(1, Wo, 2), :]             # orig cols 0,2,...
    xo = xp_ref[1:H + 1, pl.ds(2, Wo, 2), :]             # orig cols 1,3,...
    sw = (xe + xo).reshape(Ho, 2, Wo, Cin)
    s_pool = 0.25 * (sw[:, 0] + sw[:, 1])                # (Ho, Wo, Cin) f32
    s2d = jnp.dot(s_pool.reshape(Ho * Wo, Cin).astype(jnp.bfloat16),
                  ws_ref[...], preferred_element_type=jnp.float32)
    s2d = s2d + bs_ref[...]

    o_ref[...] = (conv_out + s2d).astype(o_ref.dtype)    # (Ho*Wo, Cout)


# --------------------------------- wrapper ------------------------------------

def basic_block_forward(x_nchw, w1, b1, w2, b2, ws, bs):
    N, Cin, H, W = x_nchw.shape
    Cout = ws.shape[-1]
    assert H % 2 == 0 and W % 2 == 0, "AvgPool2d(2,2) needs even H, W"
    assert H >= 2 and W >= 2, "ReflectionPad2d(1) needs H, W >= 2"
    Ho, Wo = H // 2, W // 2
    Hp, Wp = H + 2, W + 2

    x = jnp.transpose(x_nchw, (0, 2, 3, 1)).astype(jnp.float32)  # NCHW -> NHWC
    # ReflectionPad2d(1) for conv1 done wrapper-side (ReLU commutes with pad).
    xp = jnp.pad(x, ((0, 0), (1, 1), (1, 1), (0, 0)), mode="reflect")

    # Hoisted weight prep: per-tap (no lane concat), bf16 MXU operands.
    w1_t = w1.reshape(9, Cin, Cin).astype(jnp.bfloat16)          # (9, Cin, Cin)

    # Fold AvgPool2d(2,2) into conv2: effective 4x4 stride-2 kernel.
    w2_eff = jnp.zeros((4, 4, Cin, Cout), jnp.float32)
    for dy in range(2):
        for dx in range(2):
            w2_eff = w2_eff.at[dy:dy + 3, dx:dx + 3].add(w2.astype(jnp.float32))
    w2_eff = (0.25 * w2_eff).reshape(16, Cin, Cout).astype(jnp.bfloat16)

    ws_bf = ws.astype(jnp.bfloat16)
    b1_f = b1.reshape(1, Cin).astype(jnp.float32)
    b2_f = b2.reshape(1, Cout).astype(jnp.float32)
    bs_f = bs.reshape(1, Cout).astype(jnp.float32)

    out_flat = pl.pallas_call(
        basic_block_kernel,
        out_shape=jax.ShapeDtypeStruct((N, Ho * Wo, Cout), jnp.float32),
        grid=(N,),
        in_specs=[
            pl.BlockSpec((None, Hp, Wp, Cin), lambda n: (n, 0, 0, 0)),
            pl.BlockSpec((9, Cin, Cin), lambda n: (0, 0, 0)),
            pl.BlockSpec((1, Cin), lambda n: (0, 0)),
            pl.BlockSpec((16, Cin, Cout), lambda n: (0, 0, 0)),
            pl.BlockSpec((1, Cout), lambda n: (0, 0)),
            pl.BlockSpec((Cin, Cout), lambda n: (0, 0)),
            pl.BlockSpec((1, Cout), lambda n: (0, 0)),
        ],
        out_specs=pl.BlockSpec((None, Ho * Wo, Cout), lambda n: (n, 0, 0)),
        scratch_shapes=[
            # row-parity-separated reflection-padded conv1 output
            pltpu.VMEM((Hp, Wp, Cin), jnp.float32),
        ],
        compiler_params=pltpu.CompilerParams(
            dimension_semantics=("parallel",),        # both TCs used on v7x
            vmem_limit_bytes=48 * 1024 * 1024),       # safe on v5e/v6e/v7x
    )(xp, w1_t, b1_f, w2_eff, b2_f, ws_bf, bs_f)

    out = out_flat.reshape(N, Ho, Wo, Cout)
    return jnp.transpose(out, (0, 3, 1, 2))           # NHWC -> NCHW


# ----------------------------- pure-JAX reference -----------------------------

def reference_forward(x_nchw, w1, b1, w2, b2, ws, bs):
    def conv3x3_ref(x, w, b):  # NHWC, HWIO
        xp = jnp.pad(x, ((0, 0), (1, 1), (1, 1), (0, 0)), mode="reflect")
        y = jax.lax.conv_general_dilated(
            xp, w, (1, 1), "VALID",
            dimension_numbers=("NHWC", "HWIO", "NHWC"))
        return y + b.reshape(1, 1, 1, -1)

    def pool_ref(x):
        N, H, W, C = x.shape
        return x.reshape(N, H // 2, 2, W // 2, 2, C).mean(axis=(2, 4))

    x = jnp.transpose(x_nchw, (0, 2, 3, 1))
    h = jax.nn.relu(x)
    h = conv3x3_ref(h, w1, b1)
    h = jax.nn.relu(h)
    h = conv3x3_ref(h, w2, b2)
    h = pool_ref(h)
    s = pool_ref(x)
    s = jnp.einsum("nhwc,cd->nhwd", s, ws) + bs.reshape(1, 1, 1, -1)
    return jnp.transpose(h + s, (0, 3, 1, 2))


# ----------------------------------- main -------------------------------------

if __name__ == "__main__":
    N, Cin, Cout, H, W = 2, 4, 8, 16, 16

    key = jax.random.PRNGKey(0)
    kx, k1, k2, k3, k4, k5, k6 = jax.random.split(key, 7)

    x = jax.random.normal(kx, (N, Cin, H, W), jnp.float32)

    # Deterministic parameter init (HWIO for convs).
    w1 = 0.2 * jax.random.normal(k1, (3, 3, Cin, Cin), jnp.float32)
    b1 = 0.1 * jax.random.normal(k2, (1, Cin), jnp.float32)
    w2 = 0.2 * jax.random.normal(k3, (3, 3, Cin, Cout), jnp.float32)
    b2 = 0.1 * jax.random.normal(k4, (1, Cout), jnp.float32)
    ws = 0.2 * jax.random.normal(k5, (Cin, Cout), jnp.float32)
    bs = 0.1 * jax.random.normal(k6, (1, Cout), jnp.float32)

    out = basic_block_forward(x, w1, b1, w2, b2, ws, bs)
    out = jax.block_until_ready(out)

    ref = reference_forward(x, w1, b1, w2, b2, ws, bs)
    assert out.shape == (N, Cout, H // 2, W // 2)
    # bf16 MXU operands with f32 accumulation -> compare with bf16-level tol.
    np.testing.assert_allclose(np.asarray(out), np.asarray(ref),
                               rtol=5e-2, atol=5e-2)

    print("KERNEL_OK")
</pallas_src>

<mosaic_0001>
module attributes {stable_mosaic.version = 11 : i64} {
  func.func @basic_block_kernel(%arg0: i32, %arg1: memref<1x18x18x4xf32, #tpu.memory_space<vmem>>, %arg2: memref<9x4x4xbf16, #tpu.memory_space<vmem>>, %arg3: memref<1x4xf32, #tpu.memory_space<vmem>>, %arg4: memref<16x4x8xbf16, #tpu.memory_space<vmem>>, %arg5: memref<1x8xf32, #tpu.memory_space<vmem>>, %arg6: memref<4x8xbf16, #tpu.memory_space<vmem>>, %arg7: memref<1x8xf32, #tpu.memory_space<vmem>>, %arg8: memref<1x64x8xf32, #tpu.memory_space<vmem>>, %arg9: memref<18x18x4xf32, #tpu.memory_space<vmem>>) attributes {dimension_semantics = [#tpu.dimension_semantics<parallel>], iteration_bounds = array<i64: 2>, scalar_prefetch = 0 : i64, scratch_operands = 1 : i64, tpu.core_type = #tpu.core_type<tc>, window_params = [{transform_indices = @transform_0, window_bounds = array<i64: 1, 18, 18, 4>}, {pipeline_mode = #tpu.pipeline_mode<synchronous>, transform_indices = @transform_1, window_bounds = array<i64: 9, 4, 4>}, {pipeline_mode = #tpu.pipeline_mode<synchronous>, transform_indices = @transform_2, window_bounds = array<i64: 1, 4>}, {pipeline_mode = #tpu.pipeline_mode<synchronous>, transform_indices = @transform_3, window_bounds = array<i64: 16, 4, 8>}, {pipeline_mode = #tpu.pipeline_mode<synchronous>, transform_indices = @transform_4, window_bounds = array<i64: 1, 8>}, {pipeline_mode = #tpu.pipeline_mode<synchronous>, transform_indices = @transform_5, window_bounds = array<i64: 4, 8>}, {pipeline_mode = #tpu.pipeline_mode<synchronous>, transform_indices = @transform_6, window_bounds = array<i64: 1, 8>}, {transform_indices = @transform_7, window_bounds = array<i64: 1, 64, 8>}]} {
    %c0 = arith.constant 0 : index
    %c0_0 = arith.constant 0 : index
    %c0_1 = arith.constant 0 : index
    %c0_2 = arith.constant 0 : index
    %0 = vector.load %arg1[%c0, %c0_0, %c0_1, %c0_2] : memref<1x18x18x4xf32, #tpu.memory_space<vmem>>, vector<1x18x18x4xf32>
    %1 = vector.shape_cast %0 : vector<1x18x18x4xf32> to vector<18x18x4xf32>
    %cst = arith.constant 0.000000e+00 : f32
    %2 = vector.broadcast %cst : f32 to vector<18x18x4xf32>
    %3 = arith.maximumf %1, %2 : vector<18x18x4xf32>
    %4 = vector.extract_strided_slice %3 {offsets = [0, 0, 0], sizes = [18, 16, 4], strides = [1, 1, 1]} : vector<18x18x4xf32> to vector<18x16x4xf32>
    %5 = vector.extract_strided_slice %3 {offsets = [0, 1, 0], sizes = [18, 16, 4], strides = [1, 1, 1]} : vector<18x18x4xf32> to vector<18x16x4xf32>
    %6 = vector.extract_strided_slice %3 {offsets = [0, 2, 0], sizes = [18, 16, 4], strides = [1, 1, 1]} : vector<18x18x4xf32> to vector<18x16x4xf32>
    %cst_3 = arith.constant 0.000000e+00 : f32
    %7 = vector.broadcast %cst_3 : f32 to vector<256x4xf32>
    %8 = vector.extract_strided_slice %4 {offsets = [0, 0, 0], sizes = [16, 16, 4], strides = [1, 1, 1]} : vector<18x16x4xf32> to vector<16x16x4xf32>
    %9 = vector.shape_cast %8 : vector<16x16x4xf32> to vector<256x4xf32>
    %10 = arith.truncf %9 : vector<256x4xf32> to vector<256x4xbf16>
    %c0_4 = arith.constant 0 : index
    %c0_5 = arith.constant 0 : index
    %c0_6 = arith.constant 0 : index
    %11 = vector.load %arg2[%c0_4, %c0_5, %c0_6] : memref<9x4x4xbf16, #tpu.memory_space<vmem>>, vector<1x4x4xbf16>
    %12 = vector.shape_cast %11 : vector<1x4x4xbf16> to vector<4x4xbf16>
    %cst_7 = arith.constant dense<0.000000e+00> : vector<256x4xf32>
    %13 = tpu.matmul %10, %12, %cst_7 {dimension_numbers = #tpu.dot_dimension_numbers<[1], [0], [0], [1], [0, 0, 1, 1], [], []>} : vector<256x4xbf16>, vector<4x4xbf16>, vector<256x4xf32> -> vector<256x4xf32>
    %14 = arith.addf %7, %13 : vector<256x4xf32>
    %15 = vector.extract_strided_slice %5 {offsets = [0, 0, 0], sizes = [16, 16, 4], strides = [1, 1, 1]} : vector<18x16x4xf32> to vector<16x16x4xf32>
    %16 = vector.shape_cast %15 : vector<16x16x4xf32> to vector<256x4xf32>
    %17 = arith.truncf %16 : vector<256x4xf32> to vector<256x4xbf16>
    %c1 = arith.constant 1 : index
    %c0_8 = arith.constant 0 : index
    %c0_9 = arith.constant 0 : index
    %18 = vector.load %arg2[%c1, %c0_8, %c0_9] : memref<9x4x4xbf16, #tpu.memory_space<vmem>>, vector<1x4x4xbf16>
    %19 = vector.shape_cast %18 : vector<1x4x4xbf16> to vector<4x4xbf16>
    %cst_10 = arith.constant dense<0.000000e+00> : vector<256x4xf32>
    %20 = tpu.matmul %17, %19, %cst_10 {dimension_numbers = #tpu.dot_dimension_numbers<[1], [0], [0], [1], [0, 0, 1, 1], [], []>} : vector<256x4xbf16>, vector<4x4xbf16>, vector<256x4xf32> -> vector<256x4xf32>
    %21 = arith.addf %14, %20 : vector<256x4xf32>
    %22 = vector.extract_strided_slice %6 {offsets = [0, 0, 0], sizes = [16, 16, 4], strides = [1, 1, 1]} : vector<18x16x4xf32> to vector<16x16x4xf32>
    %23 = vector.shape_cast %22 : vector<16x16x4xf32> to vector<256x4xf32>
    %24 = arith.truncf %23 : vector<256x4xf32> to vector<256x4xbf16>
    %c2 = arith.constant 2 : index
    %c0_11 = arith.constant 0 : index
    %c0_12 = arith.constant 0 : index
    %25 = vector.load %arg2[%c2, %c0_11, %c0_12] : memref<9x4x4xbf16, #tpu.memory_space<vmem>>, vector<1x4x4xbf16>
    %26 = vector.shape_cast %25 : vector<1x4x4xbf16> to vector<4x4xbf16>
    %cst_13 = arith.constant dense<0.000000e+00> : vector<256x4xf32>
    %27 = tpu.matmul %24, %26, %cst_13 {dimension_numbers = #tpu.dot_dimension_numbers<[1], [0], [0], [1], [0, 0, 1, 1], [], []>} : vector<256x4xbf16>, vector<4x4xbf16>, vector<256x4xf32> -> vector<256x4xf32>
    %28 = arith.addf %21, %27 : vector<256x4xf32>
    %29 = vector.extract_strided_slice %4 {offsets = [1, 0, 0], sizes = [16, 16, 4], strides = [1, 1, 1]} : vector<18x16x4xf32> to vector<16x16x4xf32>
    %30 = vector.shape_cast %29 : vector<16x16x4xf32> to vector<256x4xf32>
    %31 = arith.truncf %30 : vector<256x4xf32> to vector<256x4xbf16>
    %c3 = arith.constant 3 : index
    %c0_14 = arith.constant 0 : index
    %c0_15 = arith.constant 0 : index
    %32 = vector.load %arg2[%c3, %c0_14, %c0_15] : memref<9x4x4xbf16, #tpu.memory_space<vmem>>, vector<1x4x4xbf16>
    %33 = vector.shape_cast %32 : vector<1x4x4xbf16> to vector<4x4xbf16>
    %cst_16 = arith.constant dense<0.000000e+00> : vector<256x4xf32>
    %34 = tpu.matmul %31, %33, %cst_16 {dimension_numbers = #tpu.dot_dimension_numbers<[1], [0], [0], [1], [0, 0, 1, 1], [], []>} : vector<256x4xbf16>, vector<4x4xbf16>, vector<256x4xf32> -> vector<256x4xf32>
    %35 = arith.addf %28, %34 : vector<256x4xf32>
    %36 = vector.extract_strided_slice %5 {offsets = [1, 0, 0], sizes = [16, 16, 4], strides = [1, 1, 1]} : vector<18x16x4xf32> to vector<16x16x4xf32>
    %37 = vector.shape_cast %36 : vector<16x16x4xf32> to vector<256x4xf32>
    %38 = arith.truncf %37 : vector<256x4xf32> to vector<256x4xbf16>
    %c4 = arith.constant 4 : index
    %c0_17 = arith.constant 0 : index
    %c0_18 = arith.constant 0 : index
    %39 = vector.load %arg2[%c4, %c0_17, %c0_18] : memref<9x4x4xbf16, #tpu.memory_space<vmem>>, vector<1x4x4xbf16>
    %40 = vector.shape_cast %39 : vector<1x4x4xbf16> to vector<4x4xbf16>
    %cst_19 = arith.constant dense<0.000000e+00> : vector<256x4xf32>
    %41 = tpu.matmul %38, %40, %cst_19 {dimension_numbers = #tpu.dot_dimension_numbers<[1], [0], [0], [1], [0, 0, 1, 1], [], []>} : vector<256x4xbf16>, vector<4x4xbf16>, vector<256x4xf32> -> vector<256x4xf32>
    %42 = arith.addf %35, %41 : vector<256x4xf32>
    %43 = vector.extract_strided_slice %6 {offsets = [1, 0, 0], sizes = [16, 16, 4], strides = [1, 1, 1]} : vector<18x16x4xf32> to vector<16x16x4xf32>
    %44 = vector.shape_cast %43 : vector<16x16x4xf32> to vector<256x4xf32>
    %45 = arith.truncf %44 : vector<256x4xf32> to vector<256x4xbf16>
    %c5 = arith.constant 5 : index
    %c0_20 = arith.constant 0 : index
    %c0_21 = arith.constant 0 : index
    %46 = vector.load %arg2[%c5, %c0_20, %c0_21] : memref<9x4x4xbf16, #tpu.memory_space<vmem>>, vector<1x4x4xbf16>
    %47 = vector.shape_cast %46 : vector<1x4x4xbf16> to vector<4x4xbf16>
    %cst_22 = arith.constant dense<0.000000e+00> : vector<256x4xf32>
    %48 = tpu.matmul %45, %47, %cst_22 {dimension_numbers = #tpu.dot_dimension_numbers<[1], [0], [0], [1], [0, 0, 1, 1], [], []>} : vector<256x4xbf16>, vector<4x4xbf16>, vector<256x4xf32> -> vector<256x4xf32>
    %49 = arith.addf %42, %48 : vector<256x4xf32>
    %50 = vector.extract_strided_slice %4 {offsets = [2, 0, 0], sizes = [16, 16, 4], strides = [1, 1, 1]} : vector<18x16x4xf32> to vector<16x16x4xf32>
    %51 = vector.shape_cast %50 : vector<16x16x4xf32> to vector<256x4xf32>
    %52 = arith.truncf %51 : vector<256x4xf32> to vector<256x4xbf16>
    %c6 = arith.constant 6 : index
    %c0_23 = arith.constant 0 : index
    %c0_24 = arith.constant 0 : index
    %53 = vector.load %arg2[%c6, %c0_23, %c0_24] : memref<9x4x4xbf16, #tpu.memory_space<vmem>>, vector<1x4x4xbf16>
    %54 = vector.shape_cast %53 : vector<1x4x4xbf16> to vector<4x4xbf16>
    %cst_25 = arith.constant dense<0.000000e+00> : vector<256x4xf32>
    %55 = tpu.matmul %52, %54, %cst_25 {dimension_numbers = #tpu.dot_dimension_numbers<[1], [0], [0], [1], [0, 0, 1, 1], [], []>} : vector<256x4xbf16>, vector<4x4xbf16>, vector<256x4xf32> -> vector<256x4xf32>
    %56 = arith.addf %49, %55 : vector<256x4xf32>
    %57 = vector.extract_strided_slice %5 {offsets = [2, 0, 0], sizes = [16, 16, 4], strides = [1, 1, 1]} : vector<18x16x4xf32> to vector<16x16x4xf32>
    %58 = vector.shape_cast %57 : vector<16x16x4xf32> to vector<256x4xf32>
    %59 = arith.truncf %58 : vector<256x4xf32> to vector<256x4xbf16>
    %c7 = arith.constant 7 : index
    %c0_26 = arith.constant 0 : index
    %c0_27 = arith.constant 0 : index
    %60 = vector.load %arg2[%c7, %c0_26, %c0_27] : memref<9x4x4xbf16, #tpu.memory_space<vmem>>, vector<1x4x4xbf16>
    %61 = vector.shape_cast %60 : vector<1x4x4xbf16> to vector<4x4xbf16>
    %cst_28 = arith.constant dense<0.000000e+00> : vector<256x4xf32>
    %62 = tpu.matmul %59, %61, %cst_28 {dimension_numbers = #tpu.dot_dimension_numbers<[1], [0], [0], [1], [0, 0, 1, 1], [], []>} : vector<256x4xbf16>, vector<4x4xbf16>, vector<256x4xf32> -> vector<256x4xf32>
    %63 = arith.addf %56, %62 : vector<256x4xf32>
    %64 = vector.extract_strided_slice %6 {offsets = [2, 0, 0], sizes = [16, 16, 4], strides = [1, 1, 1]} : vector<18x16x4xf32> to vector<16x16x4xf32>
    %65 = vector.shape_cast %64 : vector<16x16x4xf32> to vector<256x4xf32>
    %66 = arith.truncf %65 : vector<256x4xf32> to vector<256x4xbf16>
    %c8 = arith.constant 8 : index
    %c0_29 = arith.constant 0 : index
    %c0_30 = arith.constant 0 : index
    %67 = vector.load %arg2[%c8, %c0_29, %c0_30] : memref<9x4x4xbf16, #tpu.memory_space<vmem>>, vector<1x4x4xbf16>
    %68 = vector.shape_cast %67 : vector<1x4x4xbf16> to vector<4x4xbf16>
    %cst_31 = arith.constant dense<0.000000e+00> : vector<256x4xf32>
    %69 = tpu.matmul %66, %68, %cst_31 {dimension_numbers = #tpu.dot_dimension_numbers<[1], [0], [0], [1], [0, 0, 1, 1], [], []>} : vector<256x4xbf16>, vector<4x4xbf16>, vector<256x4xf32> -> vector<256x4xf32>
    %70 = arith.addf %63, %69 : vector<256x4xf32>
    %c0_32 = arith.constant 0 : index
    %c0_33 = arith.constant 0 : index
    %71 = vector.load %arg3[%c0_32, %c0_33] : memref<1x4xf32, #tpu.memory_space<vmem>>, vector<1x4xf32>
    %72 = vector.broadcast %71 : vector<1x4xf32> to vector<256x4xf32>
    %73 = arith.addf %70, %72 : vector<256x4xf32>
    %cst_34 = arith.constant 0.000000e+00 : f32
    %74 = vector.broadcast %cst_34 : f32 to vector<256x4xf32>
    %75 = arith.maximumf %73, %74 : vector<256x4xf32>
    %76 = vector.shape_cast %75 : vector<256x4xf32> to vector<8x2x16x4xf32>
    %77 = vector.extract_strided_slice %76 {offsets = [0, 0, 0, 0], sizes = [8, 1, 16, 4], strides = [1, 1, 1, 1]} : vector<8x2x16x4xf32> to vector<8x1x16x4xf32>
    %78 = vector.shape_cast %77 : vector<8x1x16x4xf32> to vector<8x16x4xf32>
    %79 = vector.extract_strided_slice %76 {offsets = [0, 1, 0, 0], sizes = [8, 1, 16, 4], strides = [1, 1, 1, 1]} : vector<8x2x16x4xf32> to vector<8x1x16x4xf32>
    %80 = vector.shape_cast %79 : vector<8x1x16x4xf32> to vector<8x16x4xf32>
    %81 = vector.extract_strided_slice %80 {offsets = [0, 0, 0], sizes = [1, 16, 4], strides = [1, 1, 1]} : vector<8x16x4xf32> to vector<1x16x4xf32>
    %82 = tpu.concatenate %81, %80 in 0 : vector<1x16x4xf32>, vector<8x16x4xf32> -> vector<9x16x4xf32>
    %83 = vector.extract_strided_slice %78 {offsets = [7, 0, 0], sizes = [1, 16, 4], strides = [1, 1, 1]} : vector<8x16x4xf32> to vector<1x16x4xf32>
    %84 = tpu.concatenate %78, %83 in 0 : vector<8x16x4xf32>, vector<1x16x4xf32> -> vector<9x16x4xf32>
    %c0_35 = arith.constant 0 : index
    %c1_36 = arith.constant 1 : index
    %c0_37 = arith.constant 0 : index
    %85 = vector.load %arg9[%c0_35, %c1_36, %c0_37] : memref<18x18x4xf32, #tpu.memory_space<vmem>>, vector<9x16x4xf32>
    tpu.vector_store %arg9[%c0_35, %c1_36, %c0_37], %82 {strides = array<i32>} : memref<18x18x4xf32, #tpu.memory_space<vmem>>, vector<9x16x4xf32>,
    %c9 = arith.constant 9 : index
    %c1_38 = arith.constant 1 : index
    %c0_39 = arith.constant 0 : index
    %86 = vector.load %arg9[%c9, %c1_38, %c0_39] : memref<18x18x4xf32, #tpu.memory_space<vmem>>, vector<9x16x4xf32>
    tpu.vector_store %arg9[%c9, %c1_38, %c0_39], %84 {strides = array<i32>} : memref<18x18x4xf32, #tpu.memory_space<vmem>>, vector<9x16x4xf32>,
    %87 = vector.extract_strided_slice %82 {offsets = [0, 1, 0], sizes = [9, 1, 4], strides = [1, 1, 1]} : vector<9x16x4xf32> to vector<9x1x4xf32>
    %c0_40 = arith.constant 0 : index
    %c0_41 = arith.constant 0 : index
    %c0_42 = arith.constant 0 : index
    %88 = vector.load %arg9[%c0_40, %c0_41, %c0_42] : memref<18x18x4xf32, #tpu.memory_space<vmem>>, vector<9x1x4xf32>
    tpu.vector_store %arg9[%c0_40, %c0_41, %c0_42], %87 {strides = array<i32>} : memref<18x18x4xf32, #tpu.memory_space<vmem>>, vector<9x1x4xf32>,
    %89 = vector.extract_strided_slice %84 {offsets = [0, 1, 0], sizes = [9, 1, 4], strides = [1, 1, 1]} : vector<9x16x4xf32> to vector<9x1x4xf32>
    %c9_43 = arith.constant 9 : index
    %c0_44 = arith.constant 0 : index
    %c0_45 = arith.constant 0 : index
    %90 = vector.load %arg9[%c9_43, %c0_44, %c0_45] : memref<18x18x4xf32, #tpu.memory_space<vmem>>, vector<9x1x4xf32>
    tpu.vector_store %arg9[%c9_43, %c0_44, %c0_45], %89 {strides = array<i32>} : memref<18x18x4xf32, #tpu.memory_space<vmem>>, vector<9x1x4xf32>,
    %91 = vector.extract_strided_slice %82 {offsets = [0, 14, 0], sizes = [9, 1, 4], strides = [1, 1, 1]} : vector<9x16x4xf32> to vector<9x1x4xf32>
    %c0_46 = arith.constant 0 : index
    %c17 = arith.constant 17 : index
    %c0_47 = arith.constant 0 : index
    %92 = vector.load %arg9[%c0_46, %c17, %c0_47] : memref<18x18x4xf32, #tpu.memory_space<vmem>>, vector<9x1x4xf32>
    tpu.vector_store %arg9[%c0_46, %c17, %c0_47], %91 {strides = array<i32>} : memref<18x18x4xf32, #tpu.memory_space<vmem>>, vector<9x1x4xf32>,
    %93 = vector.extract_strided_slice %84 {offsets = [0, 14, 0], sizes = [9, 1, 4], strides = [1, 1, 1]} : vector<9x16x4xf32> to vector<9x1x4xf32>
    %c9_48 = arith.constant 9 : index
    %c17_49 = arith.constant 17 : index
    %c0_50 = arith.constant 0 : index
    %94 = vector.load %arg9[%c9_48, %c17_49, %c0_50] : memref<18x18x4xf32, #tpu.memory_space<vmem>>, vector<9x1x4xf32>
    tpu.vector_store %arg9[%c9_48, %c17_49, %c0_50], %93 {strides = array<i32>} : memref<18x18x4xf32, #tpu.memory_space<vmem>>, vector<9x1x4xf32>,
    %cst_51 = arith.constant 0.000000e+00 : f32
    %95 = vector.broadcast %cst_51 : f32 to vector<64x8xf32>
    %c0_52 = arith.constant 0 : index
    %c0_53 = arith.constant 0 : index
    %c0_54 = arith.constant 0 : index
    %96 = tpu.strided_load %arg9[%c0_52, %c0_53, %c0_54] {strides = array<i32: 1, 2, 1>} : memref<18x18x4xf32, #tpu.memory_space<vmem>>, vector<9x8x4xf32>
    %97 = vector.extract_strided_slice %96 {offsets = [0, 0, 0], sizes = [8, 8, 4], strides = [1, 1, 1]} : vector<9x8x4xf32> to vector<8x8x4xf32>
    %98 = vector.shape_cast %97 : vector<8x8x4xf32> to vector<64x4xf32>
    %99 = arith.truncf %98 : vector<64x4xf32> to vector<64x4xbf16>
    %c0_55 = arith.constant 0 : index
    %c0_56 = arith.constant 0 : index
    %c0_57 = arith.constant 0 : index
    %100 = vector.load %arg4[%c0_55, %c0_56, %c0_57] : memref<16x4x8xbf16, #tpu.memory_space<vmem>>, vector<1x4x8xbf16>
    %101 = vector.shape_cast %100 : vector<1x4x8xbf16> to vector<4x8xbf16>
    %cst_58 = arith.constant dense<0.000000e+00> : vector<64x8xf32>
    %102 = tpu.matmul %99, %101, %cst_58 {dimension_numbers = #tpu.dot_dimension_numbers<[1], [0], [0], [1], [0, 0, 1, 1], [], []>} : vector<64x4xbf16>, vector<4x8xbf16>, vector<64x8xf32> -> vector<64x8xf32>
    %103 = arith.addf %95, %102 : vector<64x8xf32>
    %104 = vector.extract_strided_slice %96 {offsets = [1, 0, 0], sizes = [8, 8, 4], strides = [1, 1, 1]} : vector<9x8x4xf32> to vector<8x8x4xf32>
    %105 = vector.shape_cast %104 : vector<8x8x4xf32> to vector<64x4xf32>
    %106 = arith.truncf %105 : vector<64x4xf32> to vector<64x4xbf16>
    %c8_59 = arith.constant 8 : index
    %c0_60 = arith.constant 0 : index
    %c0_61 = arith.constant 0 : index
    %107 = vector.load %arg4[%c8_59, %c0_60, %c0_61] : memref<16x4x8xbf16, #tpu.memory_space<vmem>>, vector<1x4x8xbf16>
    %108 = vector.shape_cast %107 : vector<1x4x8xbf16> to vector<4x8xbf16>
    %cst_62 = arith.constant dense<0.000000e+00> : vector<64x8xf32>
    %109 = tpu.matmul %106, %108, %cst_62 {dimension_numbers = #tpu.dot_dimension_numbers<[1], [0], [0], [1], [0, 0, 1, 1], [], []>} : vector<64x4xbf16>, vector<4x8xbf16>, vector<64x8xf32> -> vector<64x8xf32>
    %110 = arith.addf %103, %109 : vector<64x8xf32>
    %c0_63 = arith.constant 0 : index
    %c1_64 = arith.constant 1 : index
    %c0_65 = arith.constant 0 : index
    %111 = tpu.strided_load %arg9[%c0_63, %c1_64, %c0_65] {strides = array<i32: 1, 2, 1>} : memref<18x18x4xf32, #tpu.memory_space<vmem>>, vector<9x8x4xf32>
    %112 = vector.extract_strided_slice %111 {offsets = [0, 0, 0], sizes = [8, 8, 4], strides = [1, 1, 1]} : vector<9x8x4xf32> to vector<8x8x4xf32>
    %113 = vector.shape_cast %112 : vector<8x8x4xf32> to vector<64x4xf32>
    %114 = arith.truncf %113 : vector<64x4xf32> to vector<64x4xbf16>
    %c1_66 = arith.constant 1 : index
    %c0_67 = arith.constant 0 : index
    %c0_68 = arith.constant 0 : index
    %115 = vector.load %arg4[%c1_66, %c0_67, %c0_68] : memref<16x4x8xbf16, #tpu.memory_space<vmem>>, vector<1x4x8xbf16>
    %116 = vector.shape_cast %115 : vector<1x4x8xbf16> to vector<4x8xbf16>
    %cst_69 = arith.constant dense<0.000000e+00> : vector<64x8xf32>
    %117 = tpu.matmul %114, %116, %cst_69 {dimension_numbers = #tpu.dot_dimension_numbers<[1], [0], [0], [1], [0, 0, 1, 1], [], []>} : vector<64x4xbf16>, vector<4x8xbf16>, vector<64x8xf32> -> vector<64x8xf32>
    %118 = arith.addf %110, %117 : vector<64x8xf32>
    %119 = vector.extract_strided_slice %111 {offsets = [1, 0, 0], sizes = [8, 8, 4], strides = [1, 1, 1]} : vector<9x8x4xf32> to vector<8x8x4xf32>
    %120 = vector.shape_cast %119 : vector<8x8x4xf32> to vector<64x4xf32>
    %121 = arith.truncf %120 : vector<64x4xf32> to vector<64x4xbf16>
    %c9_70 = arith.constant 9 : index
    %c0_71 = arith.constant 0 : index
    %c0_72 = arith.constant 0 : index
    %122 = vector.load %arg4[%c9_70, %c0_71, %c0_72] : memref<16x4x8xbf16, #tpu.memory_space<vmem>>, vector<1x4x8xbf16>
    %123 = vector.shape_cast %122 : vector<1x4x8xbf16> to vector<4x8xbf16>
    %cst_73 = arith.constant dense<0.000000e+00> : vector<64x8xf32>
    %124 = tpu.matmul %121, %123, %cst_73 {dimension_numbers = #tpu.dot_dimension_numbers<[1], [0], [0], [1], [0, 0, 1, 1], [], []>} : vector<64x4xbf16>, vector<4x8xbf16>, vector<64x8xf32> -> vector<64x8xf32>
    %125 = arith.addf %118, %124 : vector<64x8xf32>
    %c0_74 = arith.constant 0 : index
    %c2_75 = arith.constant 2 : index
    %c0_76 = arith.constant 0 : index
    %126 = tpu.strided_load %arg9[%c0_74, %c2_75, %c0_76] {strides = array<i32: 1, 2, 1>} : memref<18x18x4xf32, #tpu.memory_space<vmem>>, vector<9x8x4xf32>
    %127 = vector.extract_strided_slice %126 {offsets = [0, 0, 0], sizes = [8, 8, 4], strides = [1, 1, 1]} : vector<9x8x4xf32> to vector<8x8x4xf32>
    %128 = vector.shape_cast %127 : vector<8x8x4xf32> to vector<64x4xf32>
    %129 = arith.truncf %128 : vector<64x4xf32> to vector<64x4xbf16>
    %c2_77 = arith.constant 2 : index
    %c0_78 = arith.constant 0 : index
    %c0_79 = arith.constant 0 : index
    %130 = vector.load %arg4[%c2_77, %c0_78, %c0_79] : memref<16x4x8xbf16, #tpu.memory_space<vmem>>, vector<1x4x8xbf16>
    %131 = vector.shape_cast %130 : vector<1x4x8xbf16> to vector<4x8xbf16>
    %cst_80 = arith.constant dense<0.000000e+00> : vector<64x8xf32>
    %132 = tpu.matmul %129, %131, %cst_80 {dimension_numbers = #tpu.dot_dimension_numbers<[1], [0], [0], [1], [0, 0, 1, 1], [], []>} : vector<64x4xbf16>, vector<4x8xbf16>, vector<64x8xf32> -> vector<64x8xf32>
    %133 = arith.addf %125, %132 : vector<64x8xf32>
    %134 = vector.extract_strided_slice %126 {offsets = [1, 0, 0], sizes = [8, 8, 4], strides = [1, 1, 1]} : vector<9x8x4xf32> to vector<8x8x4xf32>
    %135 = vector.shape_cast %134 : vector<8x8x4xf32> to vector<64x4xf32>
    %136 = arith.truncf %135 : vector<64x4xf32> to vector<64x4xbf16>
    %c10 = arith.constant 10 : index
    %c0_81 = arith.constant 0 : index
    %c0_82 = arith.constant 0 : index
    %137 = vector.load %arg4[%c10, %c0_81, %c0_82] : memref<16x4x8xbf16, #tpu.memory_space<vmem>>, vector<1x4x8xbf16>
    %138 = vector.shape_cast %137 : vector<1x4x8xbf16> to vector<4x8xbf16>
    %cst_83 = arith.constant dense<0.000000e+00> : vector<64x8xf32>
    %139 = tpu.matmul %136, %138, %cst_83 {dimension_numbers = #tpu.dot_dimension_numbers<[1], [0], [0], [1], [0, 0, 1, 1], [], []>} : vector<64x4xbf16>, vector<4x8xbf16>, vector<64x8xf32> -> vector<64x8xf32>
    %140 = arith.addf %133, %139 : vector<64x8xf32>
    %c0_84 = arith.constant 0 : index
    %c3_85 = arith.constant 3 : index
    %c0_86 = arith.constant 0 : index
    %141 = tpu.strided_load %arg9[%c0_84, %c3_85, %c0_86] {strides = array<i32: 1, 2, 1>} : memref<18x18x4xf32, #tpu.memory_space<vmem>>, vector<9x8x4xf32>
    %142 = vector.extract_strided_slice %141 {offsets = [0, 0, 0], sizes = [8, 8, 4], strides = [1, 1, 1]} : vector<9x8x4xf32> to vector<8x8x4xf32>
    %143 = vector.shape_cast %142 : vector<8x8x4xf32> to vector<64x4xf32>
    %144 = arith.truncf %143 : vector<64x4xf32> to vector<64x4xbf16>
    %c3_87 = arith.constant 3 : index
    %c0_88 = arith.constant 0 : index
    %c0_89 = arith.constant 0 : index
    %145 = vector.load %arg4[%c3_87, %c0_88, %c0_89] : memref<16x4x8xbf16, #tpu.memory_space<vmem>>, vector<1x4x8xbf16>
    %146 = vector.shape_cast %145 : vector<1x4x8xbf16> to vector<4x8xbf16>
    %cst_90 = arith.constant dense<0.000000e+00> : vector<64x8xf32>
    %147 = tpu.matmul %144, %146, %cst_90 {dimension_numbers = #tpu.dot_dimension_numbers<[1], [0], [0], [1], [0, 0, 1, 1], [], []>} : vector<64x4xbf16>, vector<4x8xbf16>, vector<64x8xf32> -> vector<64x8xf32>
    %148 = arith.addf %140, %147 : vector<64x8xf32>
    %149 = vector.extract_strided_slice %141 {offsets = [1, 0, 0], sizes = [8, 8, 4], strides = [1, 1, 1]} : vector<9x8x4xf32> to vector<8x8x4xf32>
    %150 = vector.shape_cast %149 : vector<8x8x4xf32> to vector<64x4xf32>
    %151 = arith.truncf %150 : vector<64x4xf32> to vector<64x4xbf16>
    %c11 = arith.constant 11 : index
    %c0_91 = arith.constant 0 : index
    %c0_92 = arith.constant 0 : index
    %152 = vector.load %arg4[%c11, %c0_91, %c0_92] : memref<16x4x8xbf16, #tpu.memory_space<vmem>>, vector<1x4x8xbf16>
    %153 = vector.shape_cast %152 : vector<1x4x8xbf16> to vector<4x8xbf16>
    %cst_93 = arith.constant dense<0.000000e+00> : vector<64x8xf32>
    %154 = tpu.matmul %151, %153, %cst_93 {dimension_numbers = #tpu.dot_dimension_numbers<[1], [0], [0], [1], [0, 0, 1, 1], [], []>} : vector<64x4xbf16>, vector<4x8xbf16>, vector<64x8xf32> -> vector<64x8xf32>
    %155 = arith.addf %148, %154 : vector<64x8xf32>
    %c9_94 = arith.constant 9 : index
    %c0_95 = arith.constant 0 : index
    %c0_96 = arith.constant 0 : index
    %156 = tpu.strided_load %arg9[%c9_94, %c0_95, %c0_96] {strides = array<i32: 1, 2, 1>} : memref<18x18x4xf32, #tpu.memory_space<vmem>>, vector<9x8x4xf32>
    %157 = vector.extract_strided_slice %156 {offsets = [0, 0, 0], sizes = [8, 8, 4], strides = [1, 1, 1]} : vector<9x8x4xf32> to vector<8x8x4xf32>
    %158 = vector.shape_cast %157 : vector<8x8x4xf32> to vector<64x4xf32>
    %159 = arith.truncf %158 : vector<64x4xf32> to vector<64x4xbf16>
    %c4_97 = arith.constant 4 : index
    %c0_98 = arith.constant 0 : index
    %c0_99 = arith.constant 0 : index
    %160 = vector.load %arg4[%c4_97, %c0_98, %c0_99] : memref<16x4x8xbf16, #tpu.memory_space<vmem>>, vector<1x4x8xbf16>
    %161 = vector.shape_cast %160 : vector<1x4x8xbf16> to vector<4x8xbf16>
    %cst_100 = arith.constant dense<0.000000e+00> : vector<64x8xf32>
    %162 = tpu.matmul %159, %161, %cst_100 {dimension_numbers = #tpu.dot_dimension_numbers<[1], [0], [0], [1], [0, 0, 1, 1], [], []>} : vector<64x4xbf16>, vector<4x8xbf16>, vector<64x8xf32> -> vector<64x8xf32>
    %163 = arith.addf %155, %162 : vector<64x8xf32>
    %164 = vector.extract_strided_slice %156 {offsets = [1, 0, 0], sizes = [8, 8, 4], strides = [1, 1, 1]} : vector<9x8x4xf32> to vector<8x8x4xf32>
    %165 = vector.shape_cast %164 : vector<8x8x4xf32> to vector<64x4xf32>
    %166 = arith.truncf %165 : vector<64x4xf32> to vector<64x4xbf16>
    %c12 = arith.constant 12 : index
    %c0_101 = arith.constant 0 : index
    %c0_102 = arith.constant 0 : index
    %167 = vector.load %arg4[%c12, %c0_101, %c0_102] : memref<16x4x8xbf16, #tpu.memory_space<vmem>>, vector<1x4x8xbf16>
    %168 = vector.shape_cast %167 : vector<1x4x8xbf16> to vector<4x8xbf16>
    %cst_103 = arith.constant dense<0.000000e+00> : vector<64x8xf32>
    %169 = tpu.matmul %166, %168, %cst_103 {dimension_numbers = #tpu.dot_dimension_numbers<[1], [0], [0], [1], [0, 0, 1, 1], [], []>} : vector<64x4xbf16>, vector<4x8xbf16>, vector<64x8xf32> -> vector<64x8xf32>
    %170 = arith.addf %163, %169 : vector<64x8xf32>
    %c9_104 = arith.constant 9 : index
    %c1_105 = arith.constant 1 : index
    %c0_106 = arith.constant 0 : index
    %171 = tpu.strided_load %arg9[%c9_104, %c1_105, %c0_106] {strides = array<i32: 1, 2, 1>} : memref<18x18x4xf32, #tpu.memory_space<vmem>>, vector<9x8x4xf32>
    %172 = vector.extract_strided_slice %171 {offsets = [0, 0, 0], sizes = [8, 8, 4], strides = [1, 1, 1]} : vector<9x8x4xf32> to vector<8x8x4xf32>
    %173 = vector.shape_cast %172 : vector<8x8x4xf32> to vector<64x4xf32>
    %174 = arith.truncf %173 : vector<64x4xf32> to vector<64x4xbf16>
    %c5_107 = arith.constant 5 : index
    %c0_108 = arith.constant 0 : index
    %c0_109 = arith.constant 0 : index
    %175 = vector.load %arg4[%c5_107, %c0_108, %c0_109] : memref<16x4x8xbf16, #tpu.memory_space<vmem>>, vector<1x4x8xbf16>
    %176 = vector.shape_cast %175 : vector<1x4x8xbf16> to vector<4x8xbf16>
    %cst_110 = arith.constant dense<0.000000e+00> : vector<64x8xf32>
    %177 = tpu.matmul %174, %176, %cst_110 {dimension_numbers = #tpu.dot_dimension_numbers<[1], [0], [0], [1], [0, 0, 1, 1], [], []>} : vector<64x4xbf16>, vector<4x8xbf16>, vector<64x8xf32> -> vector<64x8xf32>
    %178 = arith.addf %170, %177 : vector<64x8xf32>
    %179 = vector.extract_strided_slice %171 {offsets = [1, 0, 0], sizes = [8, 8, 4], strides = [1, 1, 1]} : vector<9x8x4xf32> to vector<8x8x4xf32>
    %180 = vector.shape_cast %179 : vector<8x8x4xf32> to vector<64x4xf32>
    %181 = arith.truncf %180 : vector<64x4xf32> to vector<64x4xbf16>
    %c13 = arith.constant 13 : index
    %c0_111 = arith.constant 0 : index
    %c0_112 = arith.constant 0 : index
    %182 = vector.load %arg4[%c13, %c0_111, %c0_112] : memref<16x4x8xbf16, #tpu.memory_space<vmem>>, vector<1x4x8xbf16>
    %183 = vector.shape_cast %182 : vector<1x4x8xbf16> to vector<4x8xbf16>
    %cst_113 = arith.constant dense<0.000000e+00> : vector<64x8xf32>
    %184 = tpu.matmul %181, %183, %cst_113 {dimension_numbers = #tpu.dot_dimension_numbers<[1], [0], [0], [1], [0, 0, 1, 1], [], []>} : vector<64x4xbf16>, vector<4x8xbf16>, vector<64x8xf32> -> vector<64x8xf32>
    %185 = arith.addf %178, %184 : vector<64x8xf32>
    %c9_114 = arith.constant 9 : index
    %c2_115 = arith.constant 2 : index
    %c0_116 = arith.constant 0 : index
    %186 = tpu.strided_load %arg9[%c9_114, %c2_115, %c0_116] {strides = array<i32: 1, 2, 1>} : memref<18x18x4xf32, #tpu.memory_space<vmem>>, vector<9x8x4xf32>
    %187 = vector.extract_strided_slice %186 {offsets = [0, 0, 0], sizes = [8, 8, 4], strides = [1, 1, 1]} : vector<9x8x4xf32> to vector<8x8x4xf32>
    %188 = vector.shape_cast %187 : vector<8x8x4xf32> to vector<64x4xf32>
    %189 = arith.truncf %188 : vector<64x4xf32> to vector<64x4xbf16>
    %c6_117 = arith.constant 6 : index
    %c0_118 = arith.constant 0 : index
    %c0_119 = arith.constant 0 : index
    %190 = vector.load %arg4[%c6_117, %c0_118, %c0_119] : memref<16x4x8xbf16, #tpu.memory_space<vmem>>, vector<1x4x8xbf16>
    %191 = vector.shape_cast %190 : vector<1x4x8xbf16> to vector<4x8xbf16>
    %cst_120 = arith.constant dense<0.000000e+00> : vector<64x8xf32>
    %192 = tpu.matmul %189, %191, %cst_120 {dimension_numbers = #tpu.dot_dimension_numbers<[1], [0], [0], [1], [0, 0, 1, 1], [], []>} : vector<64x4xbf16>, vector<4x8xbf16>, vector<64x8xf32> -> vector<64x8xf32>
    %193 = arith.addf %185, %192 : vector<64x8xf32>
    %194 = vector.extract_strided_slice %186 {offsets = [1, 0, 0], sizes = [8, 8, 4], strides = [1, 1, 1]} : vector<9x8x4xf32> to vector<8x8x4xf32>
    %195 = vector.shape_cast %194 : vector<8x8x4xf32> to vector<64x4xf32>
    %196 = arith.truncf %195 : vector<64x4xf32> to vector<64x4xbf16>
    %c14 = arith.constant 14 : index
    %c0_121 = arith.constant 0 : index
    %c0_122 = arith.constant 0 : index
    %197 = vector.load %arg4[%c14, %c0_121, %c0_122] : memref<16x4x8xbf16, #tpu.memory_space<vmem>>, vector<1x4x8xbf16>
    %198 = vector.shape_cast %197 : vector<1x4x8xbf16> to vector<4x8xbf16>
    %cst_123 = arith.constant dense<0.000000e+00> : vector<64x8xf32>
    %199 = tpu.matmul %196, %198, %cst_123 {dimension_numbers = #tpu.dot_dimension_numbers<[1], [0], [0], [1], [0, 0, 1, 1], [], []>} : vector<64x4xbf16>, vector<4x8xbf16>, vector<64x8xf32> -> vector<64x8xf32>
    %200 = arith.addf %193, %199 : vector<64x8xf32>
    %c9_124 = arith.constant 9 : index
    %c3_125 = arith.constant 3 : index
    %c0_126 = arith.constant 0 : index
    %201 = tpu.strided_load %arg9[%c9_124, %c3_125, %c0_126] {strides = array<i32: 1, 2, 1>} : memref<18x18x4xf32, #tpu.memory_space<vmem>>, vector<9x8x4xf32>
    %202 = vector.extract_strided_slice %201 {offsets = [0, 0, 0], sizes = [8, 8, 4], strides = [1, 1, 1]} : vector<9x8x4xf32> to vector<8x8x4xf32>
    %203 = vector.shape_cast %202 : vector<8x8x4xf32> to vector<64x4xf32>
    %204 = arith.truncf %203 : vector<64x4xf32> to vector<64x4xbf16>
    %c7_127 = arith.constant 7 : index
    %c0_128 = arith.constant 0 : index
    %c0_129 = arith.constant 0 : index
    %205 = vector.load %arg4[%c7_127, %c0_128, %c0_129] : memref<16x4x8xbf16, #tpu.memory_space<vmem>>, vector<1x4x8xbf16>
    %206 = vector.shape_cast %205 : vector<1x4x8xbf16> to vector<4x8xbf16>
    %cst_130 = arith.constant dense<0.000000e+00> : vector<64x8xf32>
    %207 = tpu.matmul %204, %206, %cst_130 {dimension_numbers = #tpu.dot_dimension_numbers<[1], [0], [0], [1], [0, 0, 1, 1], [], []>} : vector<64x4xbf16>, vector<4x8xbf16>, vector<64x8xf32> -> vector<64x8xf32>
    %208 = arith.addf %200, %207 : vector<64x8xf32>
    %209 = vector.extract_strided_slice %201 {offsets = [1, 0, 0], sizes = [8, 8, 4], strides = [1, 1, 1]} : vector<9x8x4xf32> to vector<8x8x4xf32>
    %210 = vector.shape_cast %209 : vector<8x8x4xf32> to vector<64x4xf32>
    %211 = arith.truncf %210 : vector<64x4xf32> to vector<64x4xbf16>
    %c15 = arith.constant 15 : index
    %c0_131 = arith.constant 0 : index
    %c0_132 = arith.constant 0 : index
    %212 = vector.load %arg4[%c15, %c0_131, %c0_132] : memref<16x4x8xbf16, #tpu.memory_space<vmem>>, vector<1x4x8xbf16>
    %213 = vector.shape_cast %212 : vector<1x4x8xbf16> to vector<4x8xbf16>
    %cst_133 = arith.constant dense<0.000000e+00> : vector<64x8xf32>
    %214 = tpu.matmul %211, %213, %cst_133 {dimension_numbers = #tpu.dot_dimension_numbers<[1], [0], [0], [1], [0, 0, 1, 1], [], []>} : vector<64x4xbf16>, vector<4x8xbf16>, vector<64x8xf32> -> vector<64x8xf32>
    %215 = arith.addf %208, %214 : vector<64x8xf32>
    %c0_134 = arith.constant 0 : index
    %c0_135 = arith.constant 0 : index
    %216 = vector.load %arg5[%c0_134, %c0_135] : memref<1x8xf32, #tpu.memory_space<vmem>>, vector<1x8xf32>
    %217 = vector.broadcast %216 : vector<1x8xf32> to vector<64x8xf32>
    %218 = arith.addf %215, %217 : vector<64x8xf32>
    %c0_136 = arith.constant 0 : index
    %c1_137 = arith.constant 1 : index
    %c1_138 = arith.constant 1 : index
    %c0_139 = arith.constant 0 : index
    %219 = tpu.strided_load %arg1[%c0_136, %c1_137, %c1_138, %c0_139] {strides = array<i32: 1, 1, 2, 1>} : memref<1x18x18x4xf32, #tpu.memory_space<vmem>>, vector<1x16x8x4xf32>
    %220 = vector.shape_cast %219 : vector<1x16x8x4xf32> to vector<16x8x4xf32>
    %c0_140 = arith.constant 0 : index
    %c1_141 = arith.constant 1 : index
    %c2_142 = arith.constant 2 : index
    %c0_143 = arith.constant 0 : index
    %221 = tpu.strided_load %arg1[%c0_140, %c1_141, %c2_142, %c0_143] {strides = array<i32: 1, 1, 2, 1>} : memref<1x18x18x4xf32, #tpu.memory_space<vmem>>, vector<1x16x8x4xf32>
    %222 = vector.shape_cast %221 : vector<1x16x8x4xf32> to vector<16x8x4xf32>
    %223 = arith.addf %220, %222 : vector<16x8x4xf32>
    %224 = vector.shape_cast %223 : vector<16x8x4xf32> to vector<8x2x8x4xf32>
    %225 = vector.extract_strided_slice %224 {offsets = [0, 0, 0, 0], sizes = [8, 1, 8, 4], strides = [1, 1, 1, 1]} : vector<8x2x8x4xf32> to vector<8x1x8x4xf32>
    %226 = vector.shape_cast %225 : vector<8x1x8x4xf32> to vector<8x8x4xf32>
    %227 = vector.extract_strided_slice %224 {offsets = [0, 1, 0, 0], sizes = [8, 1, 8, 4], strides = [1, 1, 1, 1]} : vector<8x2x8x4xf32> to vector<8x1x8x4xf32>
    %228 = vector.shape_cast %227 : vector<8x1x8x4xf32> to vector<8x8x4xf32>
    %229 = arith.addf %226, %228 : vector<8x8x4xf32>
    %cst_144 = arith.constant 2.500000e-01 : f32
    %230 = vector.broadcast %cst_144 : f32 to vector<8x8x4xf32>
    %231 = arith.mulf %230, %229 : vector<8x8x4xf32>
    %232 = vector.shape_cast %231 : vector<8x8x4xf32> to vector<64x4xf32>
    %233 = arith.truncf %232 : vector<64x4xf32> to vector<64x4xbf16>
    %c0_145 = arith.constant 0 : index
    %c0_146 = arith.constant 0 : index
    %234 = vector.load %arg6[%c0_145, %c0_146] : memref<4x8xbf16, #tpu.memory_space<vmem>>, vector<4x8xbf16>
    %cst_147 = arith.constant dense<0.000000e+00> : vector<64x8xf32>
    %235 = tpu.matmul %233, %234, %cst_147 {dimension_numbers = #tpu.dot_dimension_numbers<[1], [0], [0], [1], [0, 0, 1, 1], [], []>} : vector<64x4xbf16>, vector<4x8xbf16>, vector<64x8xf32> -> vector<64x8xf32>
    %c0_148 = arith.constant 0 : index
    %c0_149 = arith.constant 0 : index
    %236 = vector.load %arg7[%c0_148, %c0_149] : memref<1x8xf32, #tpu.memory_space<vmem>>, vector<1x8xf32>
    %237 = vector.broadcast %236 : vector<1x8xf32> to vector<64x8xf32>
    %238 = arith.addf %235, %237 : vector<64x8xf32>
    %239 = arith.addf %218, %238 : vector<64x8xf32>
    %c0_150 = arith.constant 0 : index
    %c0_151 = arith.constant 0 : index
    %c0_152 = arith.constant 0 : index
    %240 = vector.load %arg8[%c0_150, %c0_151, %c0_152] : memref<1x64x8xf32, #tpu.memory_space<vmem>>, vector<1x64x8xf32>
    %241 = vector.shape_cast %240 : vector<1x64x8xf32> to vector<64x8xf32>
    %242 = vector.shape_cast %239 : vector<64x8xf32> to vector<1x64x8xf32>
    tpu.vector_store %arg8[%c0_150, %c0_151, %c0_152], %242 {strides = array<i32>} : memref<1x64x8xf32, #tpu.memory_space<vmem>>, vector<1x64x8xf32>,
    return
  }
  func.func @transform_0(%arg0: i32) -> (i32, i32, i32, i32) {
    %c0_i32 = arith.constant 0 : i32
    %c0_i32_0 = arith.constant 0 : i32
    %c0_i32_1 = arith.constant 0 : i32
    %c0_i32_2 = arith.constant 0 : i32
    return %arg0, %c0_i32, %c0_i32_0, %c0_i32_1 : i32, i32, i32, i32
  }
  func.func @transform_1(%arg0: i32) -> (i32, i32, i32) {
    %c0_i32 = arith.constant 0 : i32
    %c0_i32_0 = arith.constant 0 : i32
    %c0_i32_1 = arith.constant 0 : i32
    %c0_i32_2 = arith.constant 0 : i32
    return %c0_i32, %c0_i32_0, %c0_i32_1 : i32, i32, i32
  }
  func.func @transform_2(%arg0: i32) -> (i32, i32) {
    %c0_i32 = arith.constant 0 : i32
    %c0_i32_0 = arith.constant 0 : i32
    %c0_i32_1 = arith.constant 0 : i32
    return %c0_i32, %c0_i32_0 : i32, i32
  }
  func.func @transform_3(%arg0: i32) -> (i32, i32, i32) {
    %c0_i32 = arith.constant 0 : i32
    %c0_i32_0 = arith.constant 0 : i32
    %c0_i32_1 = arith.constant 0 : i32
    %c0_i32_2 = arith.constant 0 : i32
    return %c0_i32, %c0_i32_0, %c0_i32_1 : i32, i32, i32
  }
  func.func @transform_4(%arg0: i32) -> (i32, i32) {
    %c0_i32 = arith.constant 0 : i32
    %c0_i32_0 = arith.constant 0 : i32
    %c0_i32_1 = arith.constant 0 : i32
    return %c0_i32, %c0_i32_0 : i32, i32
  }
  func.func @transform_5(%arg0: i32) -> (i32, i32) {
    %c0_i32 = arith.constant 0 : i32
    %c0_i32_0 = arith.constant 0 : i32
    %c0_i32_1 = arith.constant 0 : i32
    return %c0_i32, %c0_i32_0 : i32, i32
  }
  func.func @transform_6(%arg0: i32) -> (i32, i32) {
    %c0_i32 = arith.constant 0 : i32
    %c0_i32_0 = arith.constant 0 : i32
    %c0_i32_1 = arith.constant 0 : i32
    return %c0_i32, %c0_i32_0 : i32, i32
  }
  func.func @transform_7(%arg0: i32) -> (i32, i32, i32) {
    %c0_i32 = arith.constant 0 : i32
    %c0_i32_0 = arith.constant 0 : i32
    %c0_i32_1 = arith.constant 0 : i32
    return %arg0, %c0_i32, %c0_i32_0 : i32, i32, i32
  }
}

</mosaic_0001>

<llo_original>
// kernel: tpu_custom_call.1
$region0: #{tpu_custom_call.1}
  #allocation0 [shape = 'u32[]', space=smem, size = 0x4, offset = 0x4, fixed_abs, tag = 'smem constant byte address 0x4 - core index']
  #allocation1 [shape = 'u32[144,128]{1,0:T(1,128)}', space=vmem, size = 0x12000, scoped, tag = 'internal scratch']
  #allocation2 [shape = 'f32[18,18,4]{2,1,0:T(8,128)}', space=vmem, size = 0x36000, scoped, tag = 'scratch operand']
  %s0 = inlined_call_operand.vmem [shape: f32[2,18,18,4], index: 0, kind: input, shape index: {}]
  %s1 = inlined_call_operand.vmem [shape: bf16[9,4,4], index: 1, kind: input, shape index: {}]
  %s2 = inlined_call_operand.vmem [shape: f32[1,4], index: 2, kind: input, shape index: {}]
  %s3 = inlined_call_operand.vmem [shape: bf16[16,4,8], index: 3, kind: input, shape index: {}]
  %s4 = inlined_call_operand.vmem [shape: f32[1,8], index: 4, kind: input, shape index: {}]
  %s5 = inlined_call_operand.vmem [shape: bf16[4,8], index: 5, kind: input, shape index: {}]
  %s6 = inlined_call_operand.vmem [shape: f32[1,8], index: 6, kind: input, shape index: {}]
  %s7 = inlined_call_operand.vmem [shape: f32[2,64,8], index: 7, kind: output, shape index: {}]
  %s8 = sld [smem:[#allocation0]]
  $region61: #{tpu_custom_call.1} parent=0
    _
  %s10 = ssub.s32 1, %s8
  %s11 = scalar_select 0, %s10, %s8
  loop: start=0, step=1, limit=4
  $region2: #{tpu_custom_call.1} parent=0 // loop_pre_header
    _
  $region3: #{tpu_custom_call.1} parent=0 // loop_header
    %s13 = sphi 0, %s17
    %p14 = scmp.ge.s32.totalorder %s13, 4
    %s23 = sphi 0, %s25
    %s26 = sphi 0, %s23
    %s27 = sphi 0, %s26
    %s43 = sphi 0, %s27
    %s47 = sphi 0, %s47
    %s49 = sphi 0, %s47
    %s50 = sphi 0, %s49
    %s64 = sphi 0, %s50
    %s68 = sphi 0, %s68
    %s70 = sphi 0, %s68
    %s71 = sphi 0, %s70
    %s85 = sphi 0, %s71
    %s89 = sphi 0, %s89
    %s91 = sphi 0, %s89
    %s92 = sphi 0, %s91
    %s106 = sphi 0, %s92
    %s110 = sphi 0, %s110
    %s112 = sphi 0, %s110
    %s113 = sphi 0, %s112
    %s127 = sphi 0, %s113
    %s131 = sphi 0, %s131
    %s133 = sphi 0, %s131
    %s134 = sphi 0, %s133
    %s148 = sphi 0, %s134
    %s152 = sphi 0, %s152
    %s154 = sphi 0, %s152
    %s155 = sphi 0, %s154
    %s169 = sphi 0, %s155
    %s175 = sphi 0, %s177
    %s178 = sphi 0, %s175
    %s179 = sphi 0, %s178
    %s195 = sphi 0, %s179
  $region4: #{tpu_custom_call.1} parent=0 // loop_header_branch
    %16 = sbr.rel (%p14) target = $region8
  $region5: #{tpu_custom_call.1} parent=0 // loop_body
    %s18 = ssub.s32 %s13, 1
    %s19 = ssub.s32 %s13, 2
    %s20 = sadd.s32 %s13, 1
    %s21 = ssub.s32 %s13, %s20
    %p22 = scmp.eq.s32.totalorder %s21, 0
    %s24 = sadd.s32 %s23, 1
    %s25 = scalar_select %p22, %s23, %s24
    %p28 = pneg %p22
    %p29 = scmp.eq.s32.totalorder %s13, 1
    %p30 = por %p28, %p29
    %p31 = scmp.ne.s32.totalorder %s23, %s26
    %p32 = scmp.eq.s32.totalorder %s13, 0
    %p33 = por %p31, %p32
    %p34 = scmp.ne.s32.totalorder %s23, %s26
    %p35 = scmp.eq.s32.totalorder %s18, 1
    %p36 = por %p34, %p35
    %p37 = scmp.ne.s32.totalorder %s26, %s27
    %p38 = scmp.eq.s32.totalorder %s18, 0
    %p39 = por %p37, %p38
    %p40 = scmp.ne.s32.totalorder %s26, %s27
    %p41 = scmp.eq.s32.totalorder %s19, 1
    %p42 = por %p40, %p41
    %p44 = scmp.ne.s32.totalorder %s27, %s43
    %p45 = scmp.eq.s32.totalorder %s19, 0
    %p46 = por %p44, %p45
    %s48 = sadd.s32 %s47, 1
    %p51 = scmp.eq.s32.totalorder %s13, 1
    %p52 = scmp.ne.s32.totalorder %s47, %s49
    %p53 = scmp.eq.s32.totalorder %s13, 0
    %p54 = por %p52, %p53
    %p55 = scmp.ne.s32.totalorder %s47, %s49
    %p56 = scmp.eq.s32.totalorder %s18, 1
    %p57 = por %p55, %p56
    %p58 = scmp.ne.s32.totalorder %s49, %s50
    %p59 = scmp.eq.s32.totalorder %s18, 0
    %p60 = por %p58, %p59
    %p61 = scmp.ne.s32.totalorder %s49, %s50
    %p62 = scmp.eq.s32.totalorder %s19, 1
    %p63 = por %p61, %p62
    %p65 = scmp.ne.s32.totalorder %s50, %s64
    %p66 = scmp.eq.s32.totalorder %s19, 0
    %p67 = por %p65, %p66
    %s69 = sadd.s32 %s68, 1
    %p72 = scmp.eq.s32.totalorder %s13, 1
    %p73 = scmp.ne.s32.totalorder %s68, %s70
    %p74 = scmp.eq.s32.totalorder %s13, 0
    %p75 = por %p73, %p74
    %p76 = scmp.ne.s32.totalorder %s68, %s70
    %p77 = scmp.eq.s32.totalorder %s18, 1
    %p78 = por %p76, %p77
    %p79 = scmp.ne.s32.totalorder %s70, %s71
    %p80 = scmp.eq.s32.totalorder %s18, 0
    %p81 = por %p79, %p80
    %p82 = scmp.ne.s32.totalorder %s70, %s71
    %p83 = scmp.eq.s32.totalorder %s19, 1
    %p84 = por %p82, %p83
    %p86 = scmp.ne.s32.totalorder %s71, %s85
    %p87 = scmp.eq.s32.totalorder %s19, 0
    %p88 = por %p86, %p87
    %s90 = sadd.s32 %s89, 1
    %p93 = scmp.eq.s32.totalorder %s13, 1
    %p94 = scmp.ne.s32.totalorder %s89, %s91
    %p95 = scmp.eq.s32.totalorder %s13, 0
    %p96 = por %p94, %p95
    %p97 = scmp.ne.s32.totalorder %s89, %s91
    %p98 = scmp.eq.s32.totalorder %s18, 1
    %p99 = por %p97, %p98
    %p100 = scmp.ne.s32.totalorder %s91, %s92
    %p101 = scmp.eq.s32.totalorder %s18, 0
    %p102 = por %p100, %p101
    %p103 = scmp.ne.s32.totalorder %s91, %s92
    %p104 = scmp.eq.s32.totalorder %s19, 1
    %p105 = por %p103, %p104
    %p107 = scmp.ne.s32.totalorder %s92, %s106
    %p108 = scmp.eq.s32.totalorder %s19, 0
    %p109 = por %p107, %p108
    %s111 = sadd.s32 %s110, 1
    %p114 = scmp.eq.s32.totalorder %s13, 1
    %p115 = scmp.ne.s32.totalorder %s110, %s112
    %p116 = scmp.eq.s32.totalorder %s13, 0
    %p117 = por %p115, %p116
    %p118 = scmp.ne.s32.totalorder %s110, %s112
    %p119 = scmp.eq.s32.totalorder %s18, 1
    %p120 = por %p118, %p119
    %p121 = scmp.ne.s32.totalorder %s112, %s113
    %p122 = scmp.eq.s32.totalorder %s18, 0
    %p123 = por %p121, %p122
    %p124 = scmp.ne.s32.totalorder %s112, %s113
    %p125 = scmp.eq.s32.totalorder %s19, 1
    %p126 = por %p124, %p125
    %p128 = scmp.ne.s32.totalorder %s113, %s127
    %p129 = scmp.eq.s32.totalorder %s19, 0
    %p130 = por %p128, %p129
    %s132 = sadd.s32 %s131, 1
    %p135 = scmp.eq.s32.totalorder %s13, 1
    %p136 = scmp.ne.s32.totalorder %s131, %s133
    %p137 = scmp.eq.s32.totalorder %s13, 0
    %p138 = por %p136, %p137
    %p139 = scmp.ne.s32.totalorder %s131, %s133
    %p140 = scmp.eq.s32.totalorder %s18, 1
    %p141 = por %p139, %p140
    %p142 = scmp.ne.s32.totalorder %s133, %s134
    %p143 = scmp.eq.s32.totalorder %s18, 0
    %p144 = por %p142, %p143
    %p145 = scmp.ne.s32.totalorder %s133, %s134
    %p146 = scmp.eq.s32.totalorder %s19, 1
    %p147 = por %p145, %p146
    %p149 = scmp.ne.s32.totalorder %s134, %s148
    %p150 = scmp.eq.s32.totalorder %s19, 0
    %p151 = por %p149, %p150
    %s153 = sadd.s32 %s152, 1
    %p156 = scmp.eq.s32.totalorder %s13, 1
    %p157 = scmp.ne.s32.totalorder %s152, %s154
    %p158 = scmp.eq.s32.totalorder %s13, 0
    %p159 = por %p157, %p158
    %p160 = scmp.ne.s32.totalorder %s152, %s154
    %p161 = scmp.eq.s32.totalorder %s18, 1
    %p162 = por %p160, %p161
    %p163 = scmp.ne.s32.totalorder %s154, %s155
    %p164 = scmp.eq.s32.totalorder %s18, 0
    %p165 = por %p163, %p164
    %p166 = scmp.ne.s32.totalorder %s154, %s155
    %p167 = scmp.eq.s32.totalorder %s19, 1
    %p168 = por %p166, %p167
    %p170 = scmp.ne.s32.totalorder %s155, %s169
    %p171 = scmp.eq.s32.totalorder %s19, 0
    %p172 = por %p170, %p171
    %s173 = ssub.s32 %s13, %s20
    %p174 = scmp.eq.s32.totalorder %s173, 0
    %s176 = sadd.s32 %s175, 1
    %s177 = scalar_select %p174, %s175, %s176
    %p180 = pneg %p174
    %p181 = scmp.eq.s32.totalorder %s13, 1
    %p182 = por %p180, %p181
    %p183 = scmp.ne.s32.totalorder %s175, %s178
    %p184 = scmp.eq.s32.totalorder %s13, 0
    %p185 = por %p183, %p184
    %p186 = scmp.ne.s32.totalorder %s175, %s178
    %p187 = scmp.eq.s32.totalorder %s18, 1
    %p188 = por %p186, %p187
    %p189 = scmp.ne.s32.totalorder %s178, %s179
    %p190 = scmp.eq.s32.totalorder %s18, 0
    %p191 = por %p189, %p190
    %p192 = scmp.ne.s32.totalorder %s178, %s179
    %p193 = scmp.eq.s32.totalorder %s19, 1
    %p194 = por %p192, %p193
    %p196 = scmp.ne.s32.totalorder %s179, %s195
    %p197 = scmp.eq.s32.totalorder %s19, 0
    %p198 = por %p196, %p197
    %p199 = scmp.le.s32.totalorder 1, %s13
    %p200 = scmp.lt.s32.totalorder %s13, 3
    %p201 = pnand %p199, %p200
    %p202 = pneg %p201
    // Predicated region
    $region9: #{tpu_custom_call.1} parent=5 // pred_check
      _
    $region10: #{tpu_custom_call.1} parent=5 // pred_check_branch
      %204 = sbr.rel (%p201) target = $region12
    $region11: #{tpu_custom_call.1} parent=5 // pred_region
      %s205 = ssub.s32 %s13, 1
      // Predicated region
      $region13: #{tpu_custom_call.1} parent=11 // pred_check
        %p206 = pneg %p60
      $region14: #{tpu_custom_call.1} parent=11 // pred_check_branch
        %208 = sbr.rel (%p206) target = $region16
      $region15: #{tpu_custom_call.1} parent=11 // pred_region
        _
      $region16: #{tpu_custom_call.1} parent=11 // pred_fallthru
        _
      // Predicated region
      $region17: #{tpu_custom_call.1} parent=11 // pred_check
        %p209 = pneg %p81
      $region18: #{tpu_custom_call.1} parent=11 // pred_check_branch
        %211 = sbr.rel (%p209) target = $region20
      $region19: #{tpu_custom_call.1} parent=11 // pred_region
        _
      $region20: #{tpu_custom_call.1} parent=11 // pred_fallthru
        _
      // Predicated region
      $region21: #{tpu_custom_call.1} parent=11 // pred_check
        %p212 = pneg %p102
      $region22: #{tpu_custom_call.1} parent=11 // pred_check_branch
        %214 = sbr.rel (%p212) target = $region24
      $region23: #{tpu_custom_call.1} parent=11 // pred_region
        _
      $region24: #{tpu_custom_call.1} parent=11 // pred_fallthru
        _
      // Predicated region
      $region25: #{tpu_custom_call.1} parent=11 // pred_check
        %p215 = pneg %p123
      $region26: #{tpu_custom_call.1} parent=11 // pred_check_branch
        %217 = sbr.rel (%p215) target = $region28
      $region27: #{tpu_custom_call.1} parent=11 // pred_region
        _
      $region28: #{tpu_custom_call.1} parent=11 // pred_fallthru
        _
      // Predicated region
      $region29: #{tpu_custom_call.1} parent=11 // pred_check
        %p218 = pneg %p144
      $region30: #{tpu_custom_call.1} parent=11 // pred_check_branch
        %220 = sbr.rel (%p218) target = $region32
      $region31: #{tpu_custom_call.1} parent=11 // pred_region
        _
      $region32: #{tpu_custom_call.1} parent=11 // pred_fallthru
        _
      // Predicated region
      $region33: #{tpu_custom_call.1} parent=11 // pred_check
        %p221 = pneg %p165
      $region34: #{tpu_custom_call.1} parent=11 // pred_check_branch
        %223 = sbr.rel (%p221) target = $region36
      $region35: #{tpu_custom_call.1} parent=11 // pred_region
        _
      $region36: #{tpu_custom_call.1} parent=11 // pred_fallthru
        _
    $region12: #{tpu_custom_call.1} parent=5 // pred_fallthru
      _
    %p224 = scmp.lt.s32.totalorder %s13, 2
    // Predicated region
    $region37: #{tpu_custom_call.1} parent=5 // pred_check
      %p225 = pneg %p224
    $region38: #{tpu_custom_call.1} parent=5 // pred_check_branch
      %227 = sbr.rel (%p225) target = $region40
    $region39: #{tpu_custom_call.1} parent=5 // pred_region
      // Predicated region
      $region41: #{tpu_custom_call.1} parent=39 // pred_check
        %p228 = pneg %p33
      $region42: #{tpu_custom_call.1} parent=39 // pred_check_branch
        %230 = sbr.rel (%p228) target = $region44
      $region43: #{tpu_custom_call.1} parent=39 // pred_region
        %p231 = scmp.lt.s32.totalorder %s13, 1
        %s232 = scalar_select %p231, %s13, 1
        %s233 = smul.addr %s232, 54
        %s234 = smul.addr %s233, 8
        %s235 = scalar_lea.vmem %s0, %s234
      $region44: #{tpu_custom_call.1} parent=39 // pred_fallthru
        _
    $region40: #{tpu_custom_call.1} parent=5 // pred_fallthru
      _
    %p236 = scmp.le.s32.totalorder 1, %s13
    %p237 = scmp.lt.s32.totalorder %s13, 3
    %p238 = pnand %p236, %p237
    %p239 = pneg %p238
    // Predicated region
    $region45: #{tpu_custom_call.1} parent=5 // pred_check
      _
    $region46: #{tpu_custom_call.1} parent=5 // pred_check_branch
      %241 = sbr.rel (%p238) target = $region48
    $region47: #{tpu_custom_call.1} parent=5 // pred_region
      %s242 = ssub.s32 %s13, 1
      %p243 = scmp.lt.s32.totalorder %s18, 1
      %s244 = scalar_select %p243, %s18, 1
      %s245 = smul.addr %s244, 54
      %s246 = smul.addr %s245, 8
      %s247 = scalar_lea.vmem %s0, %s246
      %p248 = pneg %p39
      %p249 = pneg %p36
      %p250 = pneg %p60
      %p251 = pneg %p57
      %p252 = pneg %p81
      %p253 = pneg %p78
      %p254 = pneg %p102
      %p255 = pneg %p99
      %p256 = pneg %p123
      %p257 = pneg %p120
      %p258 = pneg %p144
      %p259 = pneg %p141
      %p260 = pneg %p165
      %p261 = pneg %p162
      %p262 = pneg %p191
      %p263 = pneg %p188
      %p264 = scmp.lt.s32.totalorder %s18, 1
      %s265 = scalar_select %p264, %s18, 1
      %s266 = smul.addr %s265, 8
      %s267 = smul.addr %s266, 8
      %s268 = scalar_lea.vmem %s7, %s267
      %p269 = scmp.lt.s32.totalorder %s18, 1
      %s270 = scalar_select %p269, %s18, 1
      %s271 = smul.addr %s270, 54
      %s272 = smul.addr %s271, 8
      %s273 = scalar_lea.vmem %s0, %s272
      %p274 = scmp.lt.s32.totalorder %s18, 1
      %s275 = scalar_select %p274, %s18, 1
      %s276 = smul.addr %s275, 8
      %s277 = smul.addr %s276, 8
      %s278 = scalar_lea.vmem %s7, %s277
      %v280 = vld [vmem:[%s273] sm:$0xff]
      %v281 = vld [vmem:[%s273 + $0x8] sm:$0xff]
      %v282 = vld [vmem:[%s273 + $0x10] sm:$0x3]
      %v283 = vld [vmem:[%s273 + $0x18] sm:$0xff]
      %v284 = vld [vmem:[%s273 + $0x20] sm:$0xff]
      %v285 = vld [vmem:[%s273 + $0x28] sm:$0x3]
      %v286 = vld [vmem:[%s273 + $0x30] sm:$0xff]
      %v287 = vld [vmem:[%s273 + $0x38] sm:$0xff]
      %v288 = vld [vmem:[%s273 + $0x40] sm:$0x3]
      %v289 = vld [vmem:[%s273 + $0x48] sm:$0xff]
      %v290 = vld [vmem:[%s273 + $0x50] sm:$0xff]
      %v291 = vld [vmem:[%s273 + $0x58] sm:$0x3]
      %v292 = vld [vmem:[%s273 + $0x60] sm:$0xff]
      %v293 = vld [vmem:[%s273 + $0x68] sm:$0xff]
      %v294 = vld [vmem:[%s273 + $0x70] sm:$0x3]
      %v295 = vld [vmem:[%s273 + $0x78] sm:$0xff]
      %v296 = vld [vmem:[%s273 + $0x80] sm:$0xff]
      %v297 = vld [vmem:[%s273 + $0x88] sm:$0x3]
      %v298 = vld [vmem:[%s273 + $0x90] sm:$0xff]
      %v299 = vld [vmem:[%s273 + $0x98] sm:$0xff]
      %v300 = vld [vmem:[%s273 + $0xa0] sm:$0x3]
      %v301 = vld [vmem:[%s273 + $0xa8] sm:$0xff]
      %v302 = vld [vmem:[%s273 + $0xb0] sm:$0xff]
      %v303 = vld [vmem:[%s273 + $0xb8] sm:$0x3]
      %v304 = vld [vmem:[%s273 + $0xc0] sm:$0xff]
      %v305 = vld [vmem:[%s273 + $0xc8] sm:$0xff]
      %v306 = vld [vmem:[%s273 + $0xd0] sm:$0x3]
      %v307 = vld [vmem:[%s273 + $0xd8] sm:$0xff]
      %v308 = vld [vmem:[%s273 + $0xe0] sm:$0xff]
      %v309 = vld [vmem:[%s273 + $0xe8] sm:$0x3]
      %v310 = vld [vmem:[%s273 + $0xf0] sm:$0xff]
      %v311 = vld [vmem:[%s273 + $0xf8] sm:$0xff]
      %v312 = vld [vmem:[%s273 + $0x100] sm:$0x3]
      %v313 = vld [vmem:[%s273 + $0x108] sm:$0xff]
      %v314 = vld [vmem:[%s273 + $0x110] sm:$0xff]
      %v315 = vld [vmem:[%s273 + $0x118] sm:$0x3]
      %v316 = vld [vmem:[%s273 + $0x120] sm:$0xff]
      %v317 = vld [vmem:[%s273 + $0x128] sm:$0xff]
      %v318 = vld [vmem:[%s273 + $0x130] sm:$0x3]
      %v319 = vld [vmem:[%s273 + $0x138] sm:$0xff]
      %v320 = vld [vmem:[%s273 + $0x140] sm:$0xff]
      %v321 = vld [vmem:[%s273 + $0x148] sm:$0x3]
      %v322 = vld [vmem:[%s273 + $0x150] sm:$0xff]
      %v323 = vld [vmem:[%s273 + $0x158] sm:$0xff]
      %v324 = vld [vmem:[%s273 + $0x160] sm:$0x3]
      %v325 = vld [vmem:[%s273 + $0x168] sm:$0xff]
      %v326 = vld [vmem:[%s273 + $0x170] sm:$0xff]
      %v327 = vld [vmem:[%s273 + $0x178] sm:$0x3]
      %v328 = vld [vmem:[%s273 + $0x180] sm:$0xff]
      %v329 = vld [vmem:[%s273 + $0x188] sm:$0xff]
      %v330 = vld [vmem:[%s273 + $0x190] sm:$0x3]
      %v331 = vld [vmem:[%s273 + $0x198] sm:$0xff]
      %v332 = vld [vmem:[%s273 + $0x1a0] sm:$0xff]
      %v333 = vld [vmem:[%s273 + $0x1a8] sm:$0x3]
      %v334 = vmax.f32 %v280, 0.0
      %v335 = vmax.f32 %v281, 0.0
      %v336 = vmax.f32 %v282, 0.0
      %v337 = vmax.f32 %v283, 0.0
      %v338 = vmax.f32 %v284, 0.0
      %v339 = vmax.f32 %v285, 0.0
      %v340 = vmax.f32 %v286, 0.0
      %v341 = vmax.f32 %v287, 0.0
      %v342 = vmax.f32 %v288, 0.0
      %v343 = vmax.f32 %v289, 0.0
      %v344 = vmax.f32 %v290, 0.0
      %v345 = vmax.f32 %v291, 0.0
      %v346 = vmax.f32 %v292, 0.0
      %v347 = vmax.f32 %v293, 0.0
      %v348 = vmax.f32 %v294, 0.0
      %v349 = vmax.f32 %v295, 0.0
      %v350 = vmax.f32 %v296, 0.0
      %v351 = vmax.f32 %v297, 0.0
      %v352 = vmax.f32 %v298, 0.0
      %v353 = vmax.f32 %v299, 0.0
      %v354 = vmax.f32 %v300, 0.0
      %v355 = vmax.f32 %v301, 0.0
      %v356 = vmax.f32 %v302, 0.0
      %v357 = vmax.f32 %v303, 0.0
      %v358 = vmax.f32 %v304, 0.0
      %v359 = vmax.f32 %v305, 0.0
      %v360 = vmax.f32 %v306, 0.0
      %v361 = vmax.f32 %v307, 0.0
      %v362 = vmax.f32 %v308, 0.0
      %v363 = vmax.f32 %v309, 0.0
      %v364 = vmax.f32 %v310, 0.0
      %v365 = vmax.f32 %v311, 0.0
      %v366 = vmax.f32 %v312, 0.0
      %v367 = vmax.f32 %v313, 0.0
      %v368 = vmax.f32 %v314, 0.0
      %v369 = vmax.f32 %v315, 0.0
      %v370 = vmax.f32 %v316, 0.0
      %v371 = vmax.f32 %v317, 0.0
      %v372 = vmax.f32 %v318, 0.0
      %v373 = vmax.f32 %v319, 0.0
      %v374 = vmax.f32 %v320, 0.0
      %v375 = vmax.f32 %v321, 0.0
      %v376 = vmax.f32 %v322, 0.0
      %v377 = vmax.f32 %v323, 0.0
      %v378 = vmax.f32 %v324, 0.0
      %v379 = vmax.f32 %v325, 0.0
      %v380 = vmax.f32 %v326, 0.0
      %v381 = vmax.f32 %v327, 0.0
      %v382 = vmax.f32 %v328, 0.0
      %v383 = vmax.f32 %v329, 0.0
      %v384 = vmax.f32 %v330, 0.0
      %v385 = vmax.f32 %v331, 0.0
      %v386 = vmax.f32 %v332, 0.0
      %v387 = vmax.f32 %v333, 0.0
      %v388 = vpack.c.bf16 %v335, %v334
      %v389 = vpack.c.bf16 %v338, %v337
      %v390 = vpack.c.bf16 %v341, %v340
      %v391 = vpack.c.bf16 %v344, %v343
      %v392 = vpack.c.bf16 %v347, %v346
      %v393 = vpack.c.bf16 %v350, %v349
      %v394 = vpack.c.bf16 %v353, %v352
      %v395 = vpack.c.bf16 %v356, %v355
      %v396 = vpack.c.bf16 %v359, %v358
      %v397 = vpack.c.bf16 %v362, %v361
      %v398 = vpack.c.bf16 %v365, %v364
      %v399 = vpack.c.bf16 %v368, %v367
      %v400 = vpack.c.bf16 %v371, %v370
      %v401 = vpack.c.bf16 %v374, %v373
      %v402 = vpack.c.bf16 %v377, %v376
      %v403 = vpack.c.bf16 %v380, %v379
      %v404 = vld [vmem:[%s1] sm:$0x3]
      %vm453 = vcmask 1046528
      %v454 = vrot.slane %v334, 1
      %v455 = vrot.slane %v335, 1
      %v456 = vsel %vm453, %v454, %v455
      %v457 = vrot.slane %v336, 1
      %v458 = vsel %vm453, %v455, %v457
      %v459 = vrot.slane %v337, 1
      %v460 = vrot.slane %v338, 1
      %v461 = vsel %vm453, %v459, %v460
      %v462 = vrot.slane %v339, 1
      %v463 = vsel %vm453, %v460, %v462
      %v464 = vrot.slane %v340, 1
      %v465 = vrot.slane %v341, 1
      %v466 = vsel %vm453, %v464, %v465
      %v467 = vrot.slane %v342, 1
      %v468 = vsel %vm453, %v465, %v467
      %v469 = vrot.slane %v343, 1
      %v470 = vrot.slane %v344, 1
      %v471 = vsel %vm453, %v469, %v470
      %v472 = vrot.slane %v345, 1
      %v473 = vsel %vm453, %v470, %v472
      %v474 = vrot.slane %v346, 1
      %v475 = vrot.slane %v347, 1
      %v476 = vsel %vm453, %v474, %v475
      %v477 = vrot.slane %v348, 1
      %v478 = vsel %vm453, %v475, %v477
      %v479 = vrot.slane %v349, 1
      %v480 = vrot.slane %v350, 1
      %v481 = vsel %vm453, %v479, %v480
      %v482 = vrot.slane %v351, 1
      %v483 = vsel %vm453, %v480, %v482
      %v484 = vrot.slane %v352, 1
      %v485 = vrot.slane %v353, 1
      %v486 = vsel %vm453, %v484, %v485
      %v487 = vrot.slane %v354, 1
      %v488 = vsel %vm453, %v485, %v487
      %v489 = vrot.slane %v355, 1
      %v490 = vrot.slane %v356, 1
      %v491 = vsel %vm453, %v489, %v490
      %v492 = vrot.slane %v357, 1
      %v493 = vsel %vm453, %v490, %v492
      %v494 = vrot.slane %v358, 1
      %v495 = vrot.slane %v359, 1
      %v496 = vsel %vm453, %v494, %v495
      %v497 = vrot.slane %v360, 1
      %v498 = vsel %vm453, %v495, %v497
      %v499 = vrot.slane %v361, 1
      %v500 = vrot.slane %v362, 1
      %v501 = vsel %vm453, %v499, %v500
      %v502 = vrot.slane %v363, 1
      %v503 = vsel %vm453, %v500, %v502
      %v504 = vrot.slane %v364, 1
      %v505 = vrot.slane %v365, 1
      %v506 = vsel %vm453, %v504, %v505
      %v507 = vrot.slane %v366, 1
      %v508 = vsel %vm453, %v505, %v507
      %v509 = vrot.slane %v367, 1
      %v510 = vrot.slane %v368, 1
      %v511 = vsel %vm453, %v509, %v510
      %v512 = vrot.slane %v369, 1
      %v513 = vsel %vm453, %v510, %v512
      %v514 = vrot.slane %v370, 1
      %v515 = vrot.slane %v371, 1
      %v516 = vsel %vm453, %v514, %v515
      %v517 = vrot.slane %v372, 1
      %v518 = vsel %vm453, %v515, %v517
      %v519 = vrot.slane %v373, 1
      %v520 = vrot.slane %v374, 1
      %v521 = vsel %vm453, %v519, %v520
      %v522 = vrot.slane %v375, 1
      %v523 = vsel %vm453, %v520, %v522
      %v524 = vrot.slane %v376, 1
      %v525 = vrot.slane %v377, 1
      %v526 = vsel %vm453, %v524, %v525
      %v527 = vrot.slane %v378, 1
      %v528 = vsel %vm453, %v525, %v527
      %v529 = vrot.slane %v379, 1
      %v530 = vrot.slane %v380, 1
      %v531 = vsel %vm453, %v529, %v530
      %v532 = vrot.slane %v381, 1
      %v533 = vsel %vm453, %v530, %v532
      %v566 = vpack.c.bf16 %v458, %v456
      %v567 = vpack.c.bf16 %v463, %v461
      %v568 = vpack.c.bf16 %v468, %v466
      %v569 = vpack.c.bf16 %v473, %v471
      %v570 = vpack.c.bf16 %v478, %v476
      %v571 = vpack.c.bf16 %v483, %v481
      %v572 = vpack.c.bf16 %v488, %v486
      %v573 = vpack.c.bf16 %v493, %v491
      %v574 = vpack.c.bf16 %v498, %v496
      %v575 = vpack.c.bf16 %v503, %v501
      %v576 = vpack.c.bf16 %v508, %v506
      %v577 = vpack.c.bf16 %v513, %v511
      %v578 = vpack.c.bf16 %v518, %v516
      %v579 = vpack.c.bf16 %v523, %v521
      %v580 = vpack.c.bf16 %v528, %v526
      %v581 = vpack.c.bf16 %v533, %v531
      %s582 = scalar_lea.vmem %s1, 2
      %v583 = vld [vmem:[%s582] sm:$0x3]
      %vm584 = vcmask 31744
      %v586 = vsel %vm584, %v566, 0
      %v589 = vsel %vm584, %v567, 0
      %v592 = vsel %vm584, %v568, 0
      %v595 = vsel %vm584, %v569, 0
      %v598 = vsel %vm584, %v570, 0
      %v601 = vsel %vm584, %v571, 0
      %v604 = vsel %vm584, %v572, 0
      %v607 = vsel %vm584, %v573, 0
      %v610 = vsel %vm584, %v574, 0
      %v613 = vsel %vm584, %v575, 0
      %v616 = vsel %vm584, %v576, 0
      %v619 = vsel %vm584, %v577, 0
      %v622 = vsel %vm584, %v578, 0
      %v625 = vsel %vm584, %v579, 0
      %v628 = vsel %vm584, %v580, 0
      %v631 = vsel %vm584, %v581, 0
      %vm633 = vcmask 1041408
      %v635 = vsel %vm633, %v583, 0
      %637 = vmatprep.subr.bf16.mxu0 0
      %638 = vmatpush1.bf16.msra.mxu0 %v635
      %639 = vmatprep.subr.bf16.mxu0 0
      %640 = vmatpush1.bf16.msra.mxu0 0
      %641 = vmatprep.subr.bf16.mxu0 0
      %642 = vmatpush1.bf16.msra.mxu0 0
      %643 = vmatprep.subr.bf16.mxu0 0
      %644 = vmatpush1.bf16.msra.mxu0 0
      %645 = vmatprep.subr.bf16.mxu0 0
      %646 = vmatpush1.bf16.msra.mxu0 0
      %647 = vmatprep.subr.bf16.mxu0 0
      %648 = vmatpush1.bf16.msra.mxu0 0
      %649 = vmatprep.subr.bf16.mxu0 0
      %650 = vmatpush1.bf16.msra.mxu0 0
      %651 = vmatprep.subr.bf16.mxu0 0
      %652 = vmatpush1.bf16.msra.mxu0 0
      %653 = vmatprep.subr.bf16.mxu0 0
      %654 = vmatpush1.bf16.msra.mxu0 0
      %655 = vmatprep.subr.bf16.mxu0 0
      %656 = vmatpush1.bf16.msra.mxu0 0
      %657 = vmatprep.subr.bf16.mxu0 0
      %658 = vmatpush1.bf16.msra.mxu0 0
      %659 = vmatprep.subr.bf16.mxu0 0
      %660 = vmatpush1.bf16.msra.mxu0 0
      %661 = vmatprep.subr.bf16.mxu0 0
      %662 = vmatpush1.bf16.msra.mxu0 0
      %663 = vmatprep.subr.bf16.mxu0 0
      %664 = vmatpush1.bf16.msra.mxu0 0
      %665 = vmatprep.subr.bf16.mxu0 0
      %666 = vmatpush1.bf16.msra.mxu0 0
      %667 = vmatprep.subr.bf16.mxu0 0
      %668 = vmatpush1.bf16.msra.mxu0 0
      %669 = vmatprep.mubr.bf16.mxu0 0
      %670 = vmatmul.mubr.bf16.gmra.mrb[0].mxu0 %v586
      %v671 = vpop.f32.mrb[0].mxu0
      %v672 = vadd.f32 0.0, %v671
      %v673 = vpop.f32.mrb[0].mxu0
      %v674 = vpop.f32.mrb[0].mxu0
      %v675 = vadd.f32 0.0, %v674
      %v676 = vpop.f32.mrb[0].mxu0
      %677 = vmatprep.mubr.bf16.mxu0 0
      %678 = vmatmul.mubr.bf16.gmra.mrb[0].mxu0 %v589
      %v679 = vpop.f32.mrb[0].mxu0
      %v680 = vadd.f32 0.0, %v679
      %v681 = vpop.f32.mrb[0].mxu0
      %v682 = vpop.f32.mrb[0].mxu0
      %v683 = vadd.f32 0.0, %v682
      %v684 = vpop.f32.mrb[0].mxu0
      %685 = vmatprep.mubr.bf16.mxu0 0
      %686 = vmatmul.mubr.bf16.gmra.mrb[0].mxu0 %v592
      %v687 = vpop.f32.mrb[0].mxu0
      %v688 = vadd.f32 0.0, %v687
      %v689 = vpop.f32.mrb[0].mxu0
      %v690 = vpop.f32.mrb[0].mxu0
      %v691 = vadd.f32 0.0, %v690
      %v692 = vpop.f32.mrb[0].mxu0
      %693 = vmatprep.mubr.bf16.mxu0 0
      %694 = vmatmul.mubr.bf16.gmra.mrb[0].mxu0 %v595
      %v695 = vpop.f32.mrb[0].mxu0
      %v696 = vadd.f32 0.0, %v695
      %v697 = vpop.f32.mrb[0].mxu0
      %v698 = vpop.f32.mrb[0].mxu0
      %v699 = vadd.f32 0.0, %v698
      %v700 = vpop.f32.mrb[0].mxu0
      %701 = vmatprep.mubr.bf16.mxu0 0
      %702 = vmatmul.mubr.bf16.gmra.mrb[0].mxu0 %v598
      %v703 = vpop.f32.mrb[0].mxu0
      %v704 = vadd.f32 0.0, %v703
      %v705 = vpop.f32.mrb[0].mxu0
      %v706 = vpop.f32.mrb[0].mxu0
      %v707 = vadd.f32 0.0, %v706
      %v708 = vpop.f32.mrb[0].mxu0
      %709 = vmatprep.mubr.bf16.mxu0 0
      %710 = vmatmul.mubr.bf16.gmra.mrb[0].mxu0 %v601
      %v711 = vpop.f32.mrb[0].mxu0
      %v712 = vadd.f32 0.0, %v711
      %v713 = vpop.f32.mrb[0].mxu0
      %v714 = vpop.f32.mrb[0].mxu0
      %v715 = vadd.f32 0.0, %v714
      %v716 = vpop.f32.mrb[0].mxu0
      %717 = vmatprep.mubr.bf16.mxu0 0
      %718 = vmatmul.mubr.bf16.gmra.mrb[0].mxu0 %v604
      %v719 = vpop.f32.mrb[0].mxu0
      %v720 = vadd.f32 0.0, %v719
      %v721 = vpop.f32.mrb[0].mxu0
      %v722 = vpop.f32.mrb[0].mxu0
      %v723 = vadd.f32 0.0, %v722
      %v724 = vpop.f32.mrb[0].mxu0
      %725 = vmatprep.mubr.bf16.mxu0 0
      %726 = vmatmul.mubr.bf16.gmra.mrb[0].mxu0 %v607
      %v727 = vpop.f32.mrb[0].mxu0
      %v728 = vadd.f32 0.0, %v727
      %v729 = vpop.f32.mrb[0].mxu0
      %v730 = vpop.f32.mrb[0].mxu0
      %v731 = vadd.f32 0.0, %v730
      %v732 = vpop.f32.mrb[0].mxu0
      %733 = vmatprep.mubr.bf16.mxu0 0
      %734 = vmatmul.mubr.bf16.gmra.mrb[0].mxu0 %v610
      %v735 = vpop.f32.mrb[0].mxu0
      %v736 = vadd.f32 0.0, %v735
      %v737 = vpop.f32.mrb[0].mxu0
      %v738 = vpop.f32.mrb[0].mxu0
      %v739 = vadd.f32 0.0, %v738
      %v740 = vpop.f32.mrb[0].mxu0
      %741 = vmatprep.mubr.bf16.mxu0 0
      %742 = vmatmul.mubr.bf16.gmra.mrb[0].mxu0 %v613
      %v743 = vpop.f32.mrb[0].mxu0
      %v744 = vadd.f32 0.0, %v743
      %v745 = vpop.f32.mrb[0].mxu0
      %v746 = vpop.f32.mrb[0].mxu0
      %v747 = vadd.f32 0.0, %v746
      %v748 = vpop.f32.mrb[0].mxu0
      %749 = vmatprep.mubr.bf16.mxu0 0
      %750 = vmatmul.mubr.bf16.gmra.mrb[0].mxu0 %v616
      %v751 = vpop.f32.mrb[0].mxu0
      %v752 = vadd.f32 0.0, %v751
      %v753 = vpop.f32.mrb[0].mxu0
      %v754 = vpop.f32.mrb[0].mxu0
      %v755 = vadd.f32 0.0, %v754
      %v756 = vpop.f32.mrb[0].mxu0
      %757 = vmatprep.mubr.bf16.mxu0 0
      %758 = vmatmul.mubr.bf16.gmra.mrb[0].mxu0 %v619
      %v759 = vpop.f32.mrb[0].mxu0
      %v760 = vadd.f32 0.0, %v759
      %v761 = vpop.f32.mrb[0].mxu0
      %v762 = vpop.f32.mrb[0].mxu0
      %v763 = vadd.f32 0.0, %v762
      %v764 = vpop.f32.mrb[0].mxu0
      %765 = vmatprep.mubr.bf16.mxu0 0
      %766 = vmatmul.mubr.bf16.gmra.mrb[0].mxu0 %v622
      %v767 = vpop.f32.mrb[0].mxu0
      %v768 = vadd.f32 0.0, %v767
      %v769 = vpop.f32.mrb[0].mxu0
      %v770 = vpop.f32.mrb[0].mxu0
      %v771 = vadd.f32 0.0, %v770
      %v772 = vpop.f32.mrb[0].mxu0
      %773 = vmatprep.mubr.bf16.mxu0 0
      %774 = vmatmul.mubr.bf16.gmra.mrb[0].mxu0 %v625
      %v775 = vpop.f32.mrb[0].mxu0
      %v776 = vadd.f32 0.0, %v775
      %v777 = vpop.f32.mrb[0].mxu0
      %v778 = vpop.f32.mrb[0].mxu0
      %v779 = vadd.f32 0.0, %v778
      %v780 = vpop.f32.mrb[0].mxu0
      %781 = vmatprep.mubr.bf16.mxu0 0
      %782 = vmatmul.mubr.bf16.gmra.mrb[0].mxu0 %v628
      %v783 = vpop.f32.mrb[0].mxu0
      %v784 = vadd.f32 0.0, %v783
      %v785 = vpop.f32.mrb[0].mxu0
      %v786 = vpop.f32.mrb[0].mxu0
      %v787 = vadd.f32 0.0, %v786
      %v788 = vpop.f32.mrb[0].mxu0
      %789 = vmatprep.mubr.bf16.mxu0 0
      %790 = vmatmul.mubr.bf16.gmra.mrb[0].mxu0 %v631
      %v791 = vpop.f32.mrb[0].mxu0
      %v792 = vadd.f32 0.0, %v791
      %v793 = vpop.f32.mrb[0].mxu0
      %v794 = vpop.f32.mrb[0].mxu0
      %v795 = vadd.f32 0.0, %v794
      %v796 = vpop.f32.mrb[0].mxu0
      %797 = vdwg.mxu0
      %v799 = vsel %vm584, %v388, 0
      %v802 = vsel %vm584, %v389, 0
      %v805 = vsel %vm584, %v390, 0
      %v808 = vsel %vm584, %v391, 0
      %v811 = vsel %vm584, %v392, 0
      %v814 = vsel %vm584, %v393, 0
      %v817 = vsel %vm584, %v394, 0
      %v820 = vsel %vm584, %v395, 0
      %v823 = vsel %vm584, %v396, 0
      %v826 = vsel %vm584, %v397, 0
      %v829 = vsel %vm584, %v398, 0
      %v832 = vsel %vm584, %v399, 0
      %v835 = vsel %vm584, %v400, 0
      %v838 = vsel %vm584, %v401, 0
      %v841 = vsel %vm584, %v402, 0
      %v844 = vsel %vm584, %v403, 0
      %v847 = vsel %vm633, %v404, 0
      %849 = vmatprep.subr.bf16.mxu0 0
      %850 = vmatpush1.bf16.msra.mxu0 %v847
      %851 = vmatprep.subr.bf16.mxu0 0
      %852 = vmatpush1.bf16.msra.mxu0 0
      %853 = vmatprep.subr.bf16.mxu0 0
      %854 = vmatpush1.bf16.msra.mxu0 0
      %855 = vmatprep.subr.bf16.mxu0 0
      %856 = vmatpush1.bf16.msra.mxu0 0
      %857 = vmatprep.subr.bf16.mxu0 0
      %858 = vmatpush1.bf16.msra.mxu0 0
      %859 = vmatprep.subr.bf16.mxu0 0
      %860 = vmatpush1.bf16.msra.mxu0 0
      %861 = vmatprep.subr.bf16.mxu0 0
      %862 = vmatpush1.bf16.msra.mxu0 0
      %863 = vmatprep.subr.bf16.mxu0 0
      %864 = vmatpush1.bf16.msra.mxu0 0
      %865 = vmatprep.subr.bf16.mxu0 0
      %866 = vmatpush1.bf16.msra.mxu0 0
      %867 = vmatprep.subr.bf16.mxu0 0
      %868 = vmatpush1.bf16.msra.mxu0 0
      %869 = vmatprep.subr.bf16.mxu0 0
      %870 = vmatpush1.bf16.msra.mxu0 0
      %871 = vmatprep.subr.bf16.mxu0 0
      %872 = vmatpush1.bf16.msra.mxu0 0
      %873 = vmatprep.subr.bf16.mxu0 0
      %874 = vmatpush1.bf16.msra.mxu0 0
      %875 = vmatprep.subr.bf16.mxu0 0
      %876 = vmatpush1.bf16.msra.mxu0 0
      %877 = vmatprep.subr.bf16.mxu0 0
      %878 = vmatpush1.bf16.msra.mxu0 0
      %879 = vmatprep.subr.bf16.mxu0 0
      %880 = vmatpush1.bf16.msra.mxu0 0
      %881 = vmatprep.mubr.bf16.mxu0 0
      %882 = vmatmul.mubr.bf16.gmra.mrb[0].mxu0 %v799
      %v883 = vpop.f32.mrb[0].mxu0
      %v884 = vadd.f32 %v672, %v883
      %v885 = vpop.f32.mrb[0].mxu0
      %v886 = vpop.f32.mrb[0].mxu0
      %v887 = vadd.f32 %v675, %v886
      %v888 = vpop.f32.mrb[0].mxu0
      %889 = vmatprep.mubr.bf16.mxu0 0
      %890 = vmatmul.mubr.bf16.gmra.mrb[0].mxu0 %v802
      %v891 = vpop.f32.mrb[0].mxu0
      %v892 = vadd.f32 %v680, %v891
      %v893 = vpop.f32.mrb[0].mxu0
      %v894 = vpop.f32.mrb[0].mxu0
      %v895 = vadd.f32 %v683, %v894
      %v896 = vpop.f32.mrb[0].mxu0
      %897 = vmatprep.mubr.bf16.mxu0 0
      %898 = vmatmul.mubr.bf16.gmra.mrb[0].mxu0 %v805
      %v899 = vpop.f32.mrb[0].mxu0
      %v900 = vadd.f32 %v688, %v899
      %v901 = vpop.f32.mrb[0].mxu0
      %v902 = vpop.f32.mrb[0].mxu0
      %v903 = vadd.f32 %v691, %v902
      %v904 = vpop.f32.mrb[0].mxu0
      %905 = vmatprep.mubr.bf16.mxu0 0
      %906 = vmatmul.mubr.bf16.gmra.mrb[0].mxu0 %v808
      %v907 = vpop.f32.mrb[0].mxu0
      %v908 = vadd.f32 %v696, %v907
      %v909 = vpop.f32.mrb[0].mxu0
      %v910 = vpop.f32.mrb[0].mxu0
      %v911 = vadd.f32 %v699, %v910
      %v912 = vpop.f32.mrb[0].mxu0
      %913 = vmatprep.mubr.bf16.mxu0 0
      %914 = vmatmul.mubr.bf16.gmra.mrb[0].mxu0 %v811
      %v915 = vpop.f32.mrb[0].mxu0
      %v916 = vadd.f32 %v704, %v915
      %v917 = vpop.f32.mrb[0].mxu0
      %v918 = vpop.f32.mrb[0].mxu0
      %v919 = vadd.f32 %v707, %v918
      %v920 = vpop.f32.mrb[0].mxu0
      %921 = vmatprep.mubr.bf16.mxu0 0
      %922 = vmatmul.mubr.bf16.gmra.mrb[0].mxu0 %v814
      %v923 = vpop.f32.mrb[0].mxu0
      %v924 = vadd.f32 %v712, %v923
      %v925 = vpop.f32.mrb[0].mxu0
      %v926 = vpop.f32.mrb[0].mxu0
      %v927 = vadd.f32 %v715, %v926
      %v928 = vpop.f32.mrb[0].mxu0
      %929 = vmatprep.mubr.bf16.mxu0 0
      %930 = vmatmul.mubr.bf16.gmra.mrb[0].mxu0 %v817
      %v931 = vpop.f32.mrb[0].mxu0
      %v932 = vadd.f32 %v720, %v931
      %v933 = vpop.f32.mrb[0].mxu0
      %v934 = vpop.f32.mrb[0].mxu0
      %v935 = vadd.f32 %v723, %v934
      %v936 = vpop.f32.mrb[0].mxu0
      %937 = vmatprep.mubr.bf16.mxu0 0
      %938 = vmatmul.mubr.bf16.gmra.mrb[0].mxu0 %v820
      %v939 = vpop.f32.mrb[0].mxu0
      %v940 = vadd.f32 %v728, %v939
      %v941 = vpop.f32.mrb[0].mxu0
      %v942 = vpop.f32.mrb[0].mxu0
      %v943 = vadd.f32 %v731, %v942
      %v944 = vpop.f32.mrb[0].mxu0
      %945 = vmatprep.mubr.bf16.mxu0 0
      %946 = vmatmul.mubr.bf16.gmra.mrb[0].mxu0 %v823
      %v947 = vpop.f32.mrb[0].mxu0
      %v948 = vadd.f32 %v736, %v947
      %v949 = vpop.f32.mrb[0].mxu0
      %v950 = vpop.f32.mrb[0].mxu0
      %v951 = vadd.f32 %v739, %v950
      %v952 = vpop.f32.mrb[0].mxu0
      %953 = vmatprep.mubr.bf16.mxu0 0
      %954 = vmatmul.mubr.bf16.gmra.mrb[0].mxu0 %v826
      %v955 = vpop.f32.mrb[0].mxu0
      %v956 = vadd.f32 %v744, %v955
      %v957 = vpop.f32.mrb[0].mxu0
      %v958 = vpop.f32.mrb[0].mxu0
      %v959 = vadd.f32 %v747, %v958
      %v960 = vpop.f32.mrb[0].mxu0
      %961 = vmatprep.mubr.bf16.mxu0 0
      %962 = vmatmul.mubr.bf16.gmra.mrb[0].mxu0 %v829
      %v963 = vpop.f32.mrb[0].mxu0
      %v964 = vadd.f32 %v752, %v963
      %v965 = vpop.f32.mrb[0].mxu0
      %v966 = vpop.f32.mrb[0].mxu0
      %v967 = vadd.f32 %v755, %v966
      %v968 = vpop.f32.mrb[0].mxu0
      %969 = vmatprep.mubr.bf16.mxu0 0
      %970 = vmatmul.mubr.bf16.gmra.mrb[0].mxu0 %v832
      %v971 = vpop.f32.mrb[0].mxu0
      %v972 = vadd.f32 %v760, %v971
      %v973 = vpop.f32.mrb[0].mxu0
      %v974 = vpop.f32.mrb[0].mxu0
      %v975 = vadd.f32 %v763, %v974
      %v976 = vpop.f32.mrb[0].mxu0
      %977 = vmatprep.mubr.bf16.mxu0 0
      %978 = vmatmul.mubr.bf16.gmra.mrb[0].mxu0 %v835
      %v979 = vpop.f32.mrb[0].mxu0
      %v980 = vadd.f32 %v768, %v979
      %v981 = vpop.f32.mrb[0].mxu0
      %v982 = vpop.f32.mrb[0].mxu0
      %v983 = vadd.f32 %v771, %v982
      %v984 = vpop.f32.mrb[0].mxu0
      %985 = vmatprep.mubr.bf16.mxu0 0
      %986 = vmatmul.mubr.bf16.gmra.mrb[0].mxu0 %v838
      %v987 = vpop.f32.mrb[0].mxu0
      %v988 = vadd.f32 %v776, %v987
      %v989 = vpop.f32.mrb[0].mxu0
      %v990 = vpop.f32.mrb[0].mxu0
      %v991 = vadd.f32 %v779, %v990
      %v992 = vpop.f32.mrb[0].mxu0
      %993 = vmatprep.mubr.bf16.mxu0 0
      %994 = vmatmul.mubr.bf16.gmra.mrb[0].mxu0 %v841
      %v995 = vpop.f32.mrb[0].mxu0
      %v996 = vadd.f32 %v784, %v995
      %v997 = vpop.f32.mrb[0].mxu0
      %v998 = vpop.f32.mrb[0].mxu0
      %v999 = vadd.f32 %v787, %v998
      %v1000 = vpop.f32.mrb[0].mxu0
      %1001 = vmatprep.mubr.bf16.mxu0 0
      %1002 = vmatmul.mubr.bf16.gmra.mrb[0].mxu0 %v844
      %v1003 = vpop.f32.mrb[0].mxu0
      %v1004 = vadd.f32 %v792, %v1003
      %v1005 = vpop.f32.mrb[0].mxu0
      %v1006 = vpop.f32.mrb[0].mxu0
      %v1007 = vadd.f32 %v795, %v1006
      %v1008 = vpop.f32.mrb[0].mxu0
      %1009 = vdwg.mxu0
      %vm1010 = vcmask 1045504
      %v1011 = vrot.slane %v334, 2
      %v1012 = vrot.slane %v335, 2
      %v1013 = vsel %vm1010, %v1011, %v1012
      %v1014 = vrot.slane %v336, 2
      %v1015 = vsel %vm1010, %v1012, %v1014
      %v1016 = vrot.slane %v337, 2
      %v1017 = vrot.slane %v338, 2
      %v1018 = vsel %vm1010, %v1016, %v1017
      %v1019 = vrot.slane %v339, 2
      %v1020 = vsel %vm1010, %v1017, %v1019
      %v1021 = vrot.slane %v340, 2
      %v1022 = vrot.slane %v341, 2
      %v1023 = vsel %vm1010, %v1021, %v1022
      %v1024 = vrot.slane %v342, 2
      %v1025 = vsel %vm1010, %v1022, %v1024
      %v1026 = vrot.slane %v343, 2
      %v1027 = vrot.slane %v344, 2
      %v1028 = vsel %vm1010, %v1026, %v1027
      %v1029 = vrot.slane %v345, 2
      %v1030 = vsel %vm1010, %v1027, %v1029
      %v1031 = vrot.slane %v346, 2
      %v1032 = vrot.slane %v347, 2
      %v1033 = vsel %vm1010, %v1031, %v1032
      %v1034 = vrot.slane %v348, 2
      %v1035 = vsel %vm1010, %v1032, %v1034
      %v1036 = vrot.slane %v349, 2
      %v1037 = vrot.slane %v350, 2
      %v1038 = vsel %vm1010, %v1036, %v1037
      %v1039 = vrot.slane %v351, 2
      %v1040 = vsel %vm1010, %v1037, %v1039
      %v1041 = vrot.slane %v352, 2
      %v1042 = vrot.slane %v353, 2
      %v1043 = vsel %vm1010, %v1041, %v1042
      %v1044 = vrot.slane %v354, 2
      %v1045 = vsel %vm1010, %v1042, %v1044
      %v1046 = vrot.slane %v355, 2
      %v1047 = vrot.slane %v356, 2
      %v1048 = vsel %vm1010, %v1046, %v1047
      %v1049 = vrot.slane %v357, 2
      %v1050 = vsel %vm1010, %v1047, %v1049
      %v1051 = vrot.slane %v358, 2
      %v1052 = vrot.slane %v359, 2
      %v1053 = vsel %vm1010, %v1051, %v1052
      %v1054 = vrot.slane %v360, 2
      %v1055 = vsel %vm1010, %v1052, %v1054
      %v1056 = vrot.slane %v361, 2
      %v1057 = vrot.slane %v362, 2
      %v1058 = vsel %vm1010, %v1056, %v1057
      %v1059 = vrot.slane %v363, 2
      %v1060 = vsel %vm1010, %v1057, %v1059
      %v1061 = vrot.slane %v364, 2
      %v1062 = vrot.slane %v365, 2
      %v1063 = vsel %vm1010, %v1061, %v1062
      %v1064 = vrot.slane %v366, 2
      %v1065 = vsel %vm1010, %v1062, %v1064
      %v1066 = vrot.slane %v367, 2
      %v1067 = vrot.slane %v368, 2
      %v1068 = vsel %vm1010, %v1066, %v1067
      %v1069 = vrot.slane %v369, 2
      %v1070 = vsel %vm1010, %v1067, %v1069
      %v1071 = vrot.slane %v370, 2
      %v1072 = vrot.slane %v371, 2
      %v1073 = vsel %vm1010, %v1071, %v1072
      %v1074 = vrot.slane %v372, 2
      %v1075 = vsel %vm1010, %v1072, %v1074
      %v1076 = vrot.slane %v373, 2
      %v1077 = vrot.slane %v374, 2
      %v1078 = vsel %vm1010, %v1076, %v1077
      %v1079 = vrot.slane %v375, 2
      %v1080 = vsel %vm1010, %v1077, %v1079
      %v1081 = vrot.slane %v376, 2
      %v1082 = vrot.slane %v377, 2
      %v1083 = vsel %vm1010, %v1081, %v1082
      %v1084 = vrot.slane %v378, 2
      %v1085 = vsel %vm1010, %v1082, %v1084
      %v1086 = vrot.slane %v379, 2
      %v1087 = vrot.slane %v380, 2
      %v1088 = vsel %vm1010, %v1086, %v1087
      %v1089 = vrot.slane %v381, 2
      %v1090 = vsel %vm1010, %v1087, %v1089
      %v1123 = vpack.c.bf16 %v1015, %v1013
      %v1124 = vpack.c.bf16 %v1020, %v1018
      %v1125 = vpack.c.bf16 %v1025, %v1023
      %v1126 = vpack.c.bf16 %v1030, %v1028
      %v1127 = vpack.c.bf16 %v1035, %v1033
      %v1128 = vpack.c.bf16 %v1040, %v1038
      %v1129 = vpack.c.bf16 %v1045, %v1043
      %v1130 = vpack.c.bf16 %v1050, %v1048
      %v1131 = vpack.c.bf16 %v1055, %v1053
      %v1132 = vpack.c.bf16 %v1060, %v1058
      %v1133 = vpack.c.bf16 %v1065, %v1063
      %v1134 = vpack.c.bf16 %v1070, %v1068
      %v1135 = vpack.c.bf16 %v1075, %v1073
      %v1136 = vpack.c.bf16 %v1080, %v1078
      %v1137 = vpack.c.bf16 %v1085, %v1083
      %v1138 = vpack.c.bf16 %v1090, %v1088
      %s1139 = scalar_lea.vmem %s1, 4
      %v1140 = vld [vmem:[%s1139] sm:$0x3]
      %v1142 = vsel %vm584, %v1123, 0
      %v1145 = vsel %vm584, %v1124, 0
      %v1148 = vsel %vm584, %v1125, 0
      %v1151 = vsel %vm584, %v1126, 0
      %v1154 = vsel %vm584, %v1127, 0
      %v1157 = vsel %vm584, %v1128, 0
      %v1160 = vsel %vm584, %v1129, 0
      %v1163 = vsel %vm584, %v1130, 0
      %v1166 = vsel %vm584, %v1131, 0
      %v1169 = vsel %vm584, %v1132, 0
      %v1172 = vsel %vm584, %v1133, 0
      %v1175 = vsel %vm584, %v1134, 0
      %v1178 = vsel %vm584, %v1135, 0
      %v1181 = vsel %vm584, %v1136, 0
      %v1184 = vsel %vm584, %v1137, 0
      %v1187 = vsel %vm584, %v1138, 0
      %v1190 = vsel %vm633, %v1140, 0
      %1192 = vmatprep.subr.bf16.mxu0 0
      %1193 = vmatpush1.bf16.msra.mxu0 %v1190
      %1194 = vmatprep.subr.bf16.mxu0 0
      %1195 = vmatpush1.bf16.msra.mxu0 0
      %1196 = vmatprep.subr.bf16.mxu0 0
      %1197 = vmatpush1.bf16.msra.mxu0 0
      %1198 = vmatprep.subr.bf16.mxu0 0
      %1199 = vmatpush1.bf16.msra.mxu0 0
      %1200 = vmatprep.subr.bf16.mxu0 0
      %1201 = vmatpush1.bf16.msra.mxu0 0
      %1202 = vmatprep.subr.bf16.mxu0 0
      %1203 = vmatpush1.bf16.msra.mxu0 0
      %1204 = vmatprep.subr.bf16.mxu0 0
      %1205 = vmatpush1.bf16.msra.mxu0 0
      %1206 = vmatprep.subr.bf16.mxu0 0
      %1207 = vmatpush1.bf16.msra.mxu0 0
      %1208 = vmatprep.subr.bf16.mxu0 0
      %1209 = vmatpush1.bf16.msra.mxu0 0
      %1210 = vmatprep.subr.bf16.mxu0 0
      %1211 = vmatpush1.bf16.msra.mxu0 0
      %1212 = vmatprep.subr.bf16.mxu0 0
      %1213 = vmatpush1.bf16.msra.mxu0 0
      %1214 = vmatprep.subr.bf16.mxu0 0
      %1215 = vmatpush1.bf16.msra.mxu0 0
      %1216 = vmatprep.subr.bf16.mxu0 0
      %1217 = vmatpush1.bf16.msra.mxu0 0
      %1218 = vmatprep.subr.bf16.mxu0 0
      %1219 = vmatpush1.bf16.msra.mxu0 0
      %1220 = vmatprep.subr.bf16.mxu0 0
      %1221 = vmatpush1.bf16.msra.mxu0 0
      %1222 = vmatprep.subr.bf16.mxu0 0
      %1223 = vmatpush1.bf16.msra.mxu0 0
      %1224 = vmatprep.mubr.bf16.mxu0 0
      %1225 = vmatmul.mubr.bf16.gmra.mrb[0].mxu0 %v1142
      %v1226 = vpop.f32.mrb[0].mxu0
      %v1227 = vadd.f32 0.0, %v1226
      %v1228 = vpop.f32.mrb[0].mxu0
      %v1229 = vpop.f32.mrb[0].mxu0
      %v1230 = vadd.f32 0.0, %v1229
      %v1231 = vpop.f32.mrb[0].mxu0
      %1232 = vmatprep.mubr.bf16.mxu0 0
      %1233 = vmatmul.mubr.bf16.gmra.mrb[0].mxu0 %v1145
      %v1234 = vpop.f32.mrb[0].mxu0
      %v1235 = vadd.f32 0.0, %v1234
      %v1236 = vpop.f32.mrb[0].mxu0
      %v1237 = vpop.f32.mrb[0].mxu0
      %v1238 = vadd.f32 0.0, %v1237
      %v1239 = vpop.f32.mrb[0].mxu0
      %1240 = vmatprep.mubr.bf16.mxu0 0
      %1241 = vmatmul.mubr.bf16.gmra.mrb[0].mxu0 %v1148
      %v1242 = vpop.f32.mrb[0].mxu0
      %v1243 = vadd.f32 0.0, %v1242
      %v1244 = vpop.f32.mrb[0].mxu0
      %v1245 = vpop.f32.mrb[0].mxu0
      %v1246 = vadd.f32 0.0, %v1245
      %v1247 = vpop.f32.mrb[0].mxu0
      %1248 = vmatprep.mubr.bf16.mxu0 0
      %1249 = vmatmul.mubr.bf16.gmra.mrb[0].mxu0 %v1151
      %v1250 = vpop.f32.mrb[0].mxu0
      %v1251 = vadd.f32 0.0, %v1250
      %v1252 = vpop.f32.mrb[0].mxu0
      %v1253 = vpop.f32.mrb[0].mxu0
      %v1254 = vadd.f32 0.0, %v1253
      %v1255 = vpop.f32.mrb[0].mxu0
      %1256 = vmatprep.mubr.bf16.mxu0 0
      %1257 = vmatmul.mubr.bf16.gmra.mrb[0].mxu0 %v1154
      %v1258 = vpop.f32.mrb[0].mxu0
      %v1259 = vadd.f32 0.0, %v1258
      %v1260 = vpop.f32.mrb[0].mxu0
      %v1261 = vpop.f32.mrb[0].mxu0
      %v1262 = vadd.f32 0.0, %v1261
      %v1263 = vpop.f32.mrb[0].mxu0
      %1264 = vmatprep.mubr.bf16.mxu0 0
      %1265 = vmatmul.mubr.bf16.gmra.mrb[0].mxu0 %v1157
      %v1266 = vpop.f32.mrb[0].mxu0
      %v1267 = vadd.f32 0.0, %v1266
      %v1268 = vpop.f32.mrb[0].mxu0
      %v1269 = vpop.f32.mrb[0].mxu0
      %v1270 = vadd.f32 0.0, %v1269
      %v1271 = vpop.f32.mrb[0].mxu0
      %1272 = vmatprep.mubr.bf16.mxu0 0
      %1273 = vmatmul.mubr.bf16.gmra.mrb[0].mxu0 %v1160
      %v1274 = vpop.f32.mrb[0].mxu0
      %v1275 = vadd.f32 0.0, %v1274
      %v1276 = vpop.f32.mrb[0].mxu0
      %v1277 = vpop.f32.mrb[0].mxu0
      %v1278 = vadd.f32 0.0, %v1277
      %v1279 = vpop.f32.mrb[0].mxu0
      %1280 = vmatprep.mubr.bf16.mxu0 0
      %1281 = vmatmul.mubr.bf16.gmra.mrb[0].mxu0 %v1163
      %v1282 = vpop.f32.mrb[0].mxu0
      %v1283 = vadd.f32 0.0, %v1282
      %v1284 = vpop.f32.mrb[0].mxu0
      %v1285 = vpop.f32.mrb[0].mxu0
      %v1286 = vadd.f32 0.0, %v1285
      %v1287 = vpop.f32.mrb[0].mxu0
      %1288 = vmatprep.mubr.bf16.mxu0 0
      %1289 = vmatmul.mubr.bf16.gmra.mrb[0].mxu0 %v1166
      %v1290 = vpop.f32.mrb[0].mxu0
      %v1291 = vadd.f32 0.0, %v1290
      %v1292 = vpop.f32.mrb[0].mxu0
      %v1293 = vpop.f32.mrb[0].mxu0
      %v1294 = vadd.f32 0.0, %v1293
      %v1295 = vpop.f32.mrb[0].mxu0
      %1296 = vmatprep.mubr.bf16.mxu0 0
      %1297 = vmatmul.mubr.bf16.gmra.mrb[0].mxu0 %v1169
      %v1298 = vpop.f32.mrb[0].mxu0
      %v1299 = vadd.f32 0.0, %v1298
      %v1300 = vpop.f32.mrb[0].mxu0
      %v1301 = vpop.f32.mrb[0].mxu0
      %v1302 = vadd.f32 0.0, %v1301
      %v1303 = vpop.f32.mrb[0].mxu0
      %1304 = vmatprep.mubr.bf16.mxu0 0
      %1305 = vmatmul.mubr.bf16.gmra.mrb[0].mxu0 %v1172
      %v1306 = vpop.f32.mrb[0].mxu0
      %v1307 = vadd.f32 0.0, %v1306
      %v1308 = vpop.f32.mrb[0].mxu0
      %v1309 = vpop.f32.mrb[0].mxu0
      %v1310 = vadd.f32 0.0, %v1309
      %v1311 = vpop.f32.mrb[0].mxu0
      %1312 = vmatprep.mubr.bf16.mxu0 0
      %1313 = vmatmul.mubr.bf16.gmra.mrb[0].mxu0 %v1175
      %v1314 = vpop.f32.mrb[0].mxu0
      %v1315 = vadd.f32 0.0, %v1314
      %v1316 = vpop.f32.mrb[0].mxu0
      %v1317 = vpop.f32.mrb[0].mxu0
      %v1318 = vadd.f32 0.0, %v1317
      %v1319 = vpop.f32.mrb[0].mxu0
      %1320 = vmatprep.mubr.bf16.mxu0 0
      %1321 = vmatmul.mubr.bf16.gmra.mrb[0].mxu0 %v1178
      %v1322 = vpop.f32.mrb[0].mxu0
      %v1323 = vadd.f32 0.0, %v1322
      %v1324 = vpop.f32.mrb[0].mxu0
      %v1325 = vpop.f32.mrb[0].mxu0
      %v1326 = vadd.f32 0.0, %v1325
      %v1327 = vpop.f32.mrb[0].mxu0
      %1328 = vmatprep.mubr.bf16.mxu0 0
      %1329 = vmatmul.mubr.bf16.gmra.mrb[0].mxu0 %v1181
      %v1330 = vpop.f32.mrb[0].mxu0
      %v1331 = vadd.f32 0.0, %v1330
      %v1332 = vpop.f32.mrb[0].mxu0
      %v1333 = vpop.f32.mrb[0].mxu0
      %v1334 = vadd.f32 0.0, %v1333
      %v1335 = vpop.f32.mrb[0].mxu0
      %1336 = vmatprep.mubr.bf16.mxu0 0
      %1337 = vmatmul.mubr.bf16.gmra.mrb[0].mxu0 %v1184
      %v1338 = vpop.f32.mrb[0].mxu0
      %v1339 = vadd.f32 0.0, %v1338
      %v1340 = vpop.f32.mrb[0].mxu0
      %v1341 = vpop.f32.mrb[0].mxu0
      %v1342 = vadd.f32 0.0, %v1341
      %v1343 = vpop.f32.mrb[0].mxu0
      %1344 = vmatprep.mubr.bf16.mxu0 0
      %1345 = vmatmul.mubr.bf16.gmra.mrb[0].mxu0 %v1187
      %v1346 = vpop.f32.mrb[0].mxu0
      %v1347 = vadd.f32 0.0, %v1346
      %v1348 = vpop.f32.mrb[0].mxu0
      %v1349 = vpop.f32.mrb[0].mxu0
      %v1350 = vadd.f32 0.0, %v1349
      %v1351 = vpop.f32.mrb[0].mxu0
      %1352 = vdwg.mxu0
      %v1353 = vadd.f32 %v884, %v1227
      %v1354 = vadd.f32 %v887, %v1230
      %v1355 = vadd.f32 %v892, %v1235
      %v1356 = vadd.f32 %v895, %v1238
      %v1357 = vadd.f32 %v900, %v1243
      %v1358 = vadd.f32 %v903, %v1246
      %v1359 = vadd.f32 %v908, %v1251
      %v1360 = vadd.f32 %v911, %v1254
      %v1361 = vadd.f32 %v916, %v1259
      %v1362 = vadd.f32 %v919, %v1262
      %v1363 = vadd.f32 %v924, %v1267
      %v1364 = vadd.f32 %v927, %v1270
      %v1365 = vadd.f32 %v932, %v1275
      %v1366 = vadd.f32 %v935, %v1278
      %v1367 = vadd.f32 %v940, %v1283
      %v1368 = vadd.f32 %v943, %v1286
      %v1369 = vadd.f32 %v948, %v1291
      %v1370 = vadd.f32 %v951, %v1294
      %v1371 = vadd.f32 %v956, %v1299
      %v1372 = vadd.f32 %v959, %v1302
      %v1373 = vadd.f32 %v964, %v1307
      %v1374 = vadd.f32 %v967, %v1310
      %v1375 = vadd.f32 %v972, %v1315
      %v1376 = vadd.f32 %v975, %v1318
      %v1377 = vadd.f32 %v980, %v1323
      %v1378 = vadd.f32 %v983, %v1326
      %v1379 = vadd.f32 %v988, %v1331
      %v1380 = vadd.f32 %v991, %v1334
      %v1381 = vadd.f32 %v996, %v1339
      %v1382 = vadd.f32 %v999, %v1342
      %v1383 = vadd.f32 %v1004, %v1347
      %v1384 = vadd.f32 %v1007, %v1350
      %v1385 = vpack.c.bf16 %v383, %v382
      %s1386 = scalar_lea.vmem %s1, 6
      %v1387 = vld [vmem:[%s1386] sm:$0x3]
      %v1389 = vsel %vm584, %v1385, 0
      %v1392 = vsel %vm633, %v1387, 0
      %1394 = vmatprep.subr.bf16.mxu0 0
      %1395 = vmatpush1.bf16.msra.mxu0 %v1392
      %1396 = vmatprep.subr.bf16.mxu0 0
      %1397 = vmatpush1.bf16.msra.mxu0 0
      %1398 = vmatprep.subr.bf16.mxu0 0
      %1399 = vmatpush1.bf16.msra.mxu0 0
      %1400 = vmatprep.subr.bf16.mxu0 0
      %1401 = vmatpush1.bf16.msra.mxu0 0
      %1402 = vmatprep.subr.bf16.mxu0 0
      %1403 = vmatpush1.bf16.msra.mxu0 0
      %1404 = vmatprep.subr.bf16.mxu0 0
      %1405 = vmatpush1.bf16.msra.mxu0 0
      %1406 = vmatprep.subr.bf16.mxu0 0
      %1407 = vmatpush1.bf16.msra.mxu0 0
      %1408 = vmatprep.subr.bf16.mxu0 0
      %1409 = vmatpush1.bf16.msra.mxu0 0
      %1410 = vmatprep.subr.bf16.mxu0 0
      %1411 = vmatpush1.bf16.msra.mxu0 0
      %1412 = vmatprep.subr.bf16.mxu0 0
      %1413 = vmatpush1.bf16.msra.mxu0 0
      %1414 = vmatprep.subr.bf16.mxu0 0
      %1415 = vmatpush1.bf16.msra.mxu0 0
      %1416 = vmatprep.subr.bf16.mxu0 0
      %1417 = vmatpush1.bf16.msra.mxu0 0
      %1418 = vmatprep.subr.bf16.mxu0 0
      %1419 = vmatpush1.bf16.msra.mxu0 0
      %1420 = vmatprep.subr.bf16.mxu0 0
      %1421 = vmatpush1.bf16.msra.mxu0 0
      %1422 = vmatprep.subr.bf16.mxu0 0
      %1423 = vmatpush1.bf16.msra.mxu0 0
      %1424 = vmatprep.subr.bf16.mxu0 0
      %1425 = vmatpush1.bf16.msra.mxu0 0
      %1426 = vmatprep.mubr.bf16.mxu0 0
      %1427 = vmatmul.mubr.bf16.gmra.mrb[0].mxu0 %v802
      %v1428 = vpop.f32.mrb[0].mxu0
      %v1429 = vadd.f32 0.0, %v1428
      %v1430 = vpop.f32.mrb[0].mxu0
      %v1431 = vpop.f32.mrb[0].mxu0
      %v1432 = vadd.f32 0.0, %v1431
      %v1433 = vpop.f32.mrb[0].mxu0
      %1434 = vmatprep.mubr.bf16.mxu0 0
      %1435 = vmatmul.mubr.bf16.gmra.mrb[0].mxu0 %v805
      %v1436 = vpop.f32.mrb[0].mxu0
      %v1437 = vadd.f32 0.0, %v1436
      %v1438 = vpop.f32.mrb[0].mxu0
      %v1439 = vpop.f32.mrb[0].mxu0
      %v1440 = vadd.f32 0.0, %v1439
      %v1441 = vpop.f32.mrb[0].mxu0
      %1442 = vmatprep.mubr.bf16.mxu0 0
      %1443 = vmatmul.mubr.bf16.gmra.mrb[0].mxu0 %v808
      %v1444 = vpop.f32.mrb[0].mxu0
      %v1445 = vadd.f32 0.0, %v1444
      %v1446 = vpop.f32.mrb[0].mxu0
      %v1447 = vpop.f32.mrb[0].mxu0
      %v1448 = vadd.f32 0.0, %v1447
      %v1449 = vpop.f32.mrb[0].mxu0
      %1450 = vmatprep.mubr.bf16.mxu0 0
      %1451 = vmatmul.mubr.bf16.gmra.mrb[0].mxu0 %v811
      %v1452 = vpop.f32.mrb[0].mxu0
      %v1453 = vadd.f32 0.0, %v1452
      %v1454 = vpop.f32.mrb[0].mxu0
      %v1455 = vpop.f32.mrb[0].mxu0
      %v1456 = vadd.f32 0.0, %v1455
      %v1457 = vpop.f32.mrb[0].mxu0
      %1458 = vmatprep.mubr.bf16.mxu0 0
      %1459 = vmatmul.mubr.bf16.gmra.mrb[0].mxu0 %v814
      %v1460 = vpop.f32.mrb[0].mxu0
      %v1461 = vadd.f32 0.0, %v1460
      %v1462 = vpop.f32.mrb[0].mxu0
      %v1463 = vpop.f32.mrb[0].mxu0
      %v1464 = vadd.f32 0.0, %v1463
      %v1465 = vpop.f32.mrb[0].mxu0
      %1466 = vmatprep.mubr.bf16.mxu0 0
      %1467 = vmatmul.mubr.bf16.gmra.mrb[0].mxu0 %v817
      %v1468 = vpop.f32.mrb[0].mxu0
      %v1469 = vadd.f32 0.0, %v1468
      %v1470 = vpop.f32.mrb[0].mxu0
      %v1471 = vpop.f32.mrb[0].mxu0
      %v1472 = vadd.f32 0.0, %v1471
      %v1473 = vpop.f32.mrb[0].mxu0
      %1474 = vmatprep.mubr.bf16.mxu0 0
      %1475 = vmatmul.mubr.bf16.gmra.mrb[0].mxu0 %v820
      %v1476 = vpop.f32.mrb[0].mxu0
      %v1477 = vadd.f32 0.0, %v1476
      %v1478 = vpop.f32.mrb[0].mxu0
      %v1479 = vpop.f32.mrb[0].mxu0
      %v1480 = vadd.f32 0.0, %v1479
      %v1481 = vpop.f32.mrb[0].mxu0
      %1482 = vmatprep.mubr.bf16.mxu0 0
      %1483 = vmatmul.mubr.bf16.gmra.mrb[0].mxu0 %v823
      %v1484 = vpop.f32.mrb[0].mxu0
      %v1485 = vadd.f32 0.0, %v1484
      %v1486 = vpop.f32.mrb[0].mxu0
      %v1487 = vpop.f32.mrb[0].mxu0
      %v1488 = vadd.f32 0.0, %v1487
      %v1489 = vpop.f32.mrb[0].mxu0
      %1490 = vmatprep.mubr.bf16.mxu0 0
      %1491 = vmatmul.mubr.bf16.gmra.mrb[0].mxu0 %v826
      %v1492 = vpop.f32.mrb[0].mxu0
      %v1493 = vadd.f32 0.0, %v1492
      %v1494 = vpop.f32.mrb[0].mxu0
      %v1495 = vpop.f32.mrb[0].mxu0
      %v1496 = vadd.f32 0.0, %v1495
      %v1497 = vpop.f32.mrb[0].mxu0
      %1498 = vmatprep.mubr.bf16.mxu0 0
      %1499 = vmatmul.mubr.bf16.gmra.mrb[0].mxu0 %v829
      %v1500 = vpop.f32.mrb[0].mxu0
      %v1501 = vadd.f32 0.0, %v1500
      %v1502 = vpop.f32.mrb[0].mxu0
      %v1503 = vpop.f32.mrb[0].mxu0
      %v1504 = vadd.f32 0.0, %v1503
      %v1505 = vpop.f32.mrb[0].mxu0
      %1506 = vmatprep.mubr.bf16.mxu0 0
      %1507 = vmatmul.mubr.bf16.gmra.mrb[0].mxu0 %v832
      %v1508 = vpop.f32.mrb[0].mxu0
      %v1509 = vadd.f32 0.0, %v1508
      %v1510 = vpop.f32.mrb[0].mxu0
      %v1511 = vpop.f32.mrb[0].mxu0
      %v1512 = vadd.f32 0.0, %v1511
      %v1513 = vpop.f32.mrb[0].mxu0
      %1514 = vmatprep.mubr.bf16.mxu0 0
      %1515 = vmatmul.mubr.bf16.gmra.mrb[0].mxu0 %v835
      %v1516 = vpop.f32.mrb[0].mxu0
      %v1517 = vadd.f32 0.0, %v1516
      %v1518 = vpop.f32.mrb[0].mxu0
      %v1519 = vpop.f32.mrb[0].mxu0
      %v1520 = vadd.f32 0.0, %v1519
      %v1521 = vpop.f32.mrb[0].mxu0
      %1522 = vmatprep.mubr.bf16.mxu0 0
      %1523 = vmatmul.mubr.bf16.gmra.mrb[0].mxu0 %v838
      %v1524 = vpop.f32.mrb[0].mxu0
      %v1525 = vadd.f32 0.0, %v1524
      %v1526 = vpop.f32.mrb[0].mxu0
      %v1527 = vpop.f32.mrb[0].mxu0
      %v1528 = vadd.f32 0.0, %v1527
      %v1529 = vpop.f32.mrb[0].mxu0
      %1530 = vmatprep.mubr.bf16.mxu0 0
      %1531 = vmatmul.mubr.bf16.gmra.mrb[0].mxu0 %v841
      %v1532 = vpop.f32.mrb[0].mxu0
      %v1533 = vadd.f32 0.0, %v1532
      %v1534 = vpop.f32.mrb[0].mxu0
      %v1535 = vpop.f32.mrb[0].mxu0
      %v1536 = vadd.f32 0.0, %v1535
      %v1537 = vpop.f32.mrb[0].mxu0
      %1538 = vmatprep.mubr.bf16.mxu0 0
      %1539 = vmatmul.mubr.bf16.gmra.mrb[0].mxu0 %v844
      %v1540 = vpop.f32.mrb[0].mxu0
      %v1541 = vadd.f32 0.0, %v1540
      %v1542 = vpop.f32.mrb[0].mxu0
      %v1543 = vpop.f32.mrb[0].mxu0
      %v1544 = vadd.f32 0.0, %v1543
      %v1545 = vpop.f32.mrb[0].mxu0
      %1546 = vmatprep.mubr.bf16.mxu0 0
      %1547 = vmatmul.mubr.bf16.gmra.mrb[0].mxu0 %v1389
      %v1548 = vpop.f32.mrb[0].mxu0
      %v1549 = vadd.f32 0.0, %v1548
      %v1550 = vpop.f32.mrb[0].mxu0
      %v1551 = vpop.f32.mrb[0].mxu0
      %v1552 = vadd.f32 0.0, %v1551
      %v1553 = vpop.f32.mrb[0].mxu0
      %1554 = vdwg.mxu0
      %v1555 = vadd.f32 %v1353, %v1429
      %v1556 = vadd.f32 %v1354, %v1432
      %v1557 = vadd.f32 %v1355, %v1437
      %v1558 = vadd.f32 %v1356, %v1440
      %v1559 = vadd.f32 %v1357, %v1445
      %v1560 = vadd.f32 %v1358, %v1448
      %v1561 = vadd.f32 %v1359, %v1453
      %v1562 = vadd.f32 %v1360, %v1456
      %v1563 = vadd.f32 %v1361, %v1461
      %v1564 = vadd.f32 %v1362, %v1464
      %v1565 = vadd.f32 %v1363, %v1469
      %v1566 = vadd.f32 %v1364, %v1472
      %v1567 = vadd.f32 %v1365, %v1477
      %v1568 = vadd.f32 %v1366, %v1480
      %v1569 = vadd.f32 %v1367, %v1485
      %v1570 = vadd.f32 %v1368, %v1488
      %v1571 = vadd.f32 %v1369, %v1493
      %v1572 = vadd.f32 %v1370, %v1496
      %v1573 = vadd.f32 %v1371, %v1501
      %v1574 = vadd.f32 %v1372, %v1504
      %v1575 = vadd.f32 %v1373, %v1509
      %v1576 = vadd.f32 %v1374, %v1512
      %v1577 = vadd.f32 %v1375, %v1517
      %v1578 = vadd.f32 %v1376, %v1520
      %v1579 = vadd.f32 %v1377, %v1525
      %v1580 = vadd.f32 %v1378, %v1528
      %v1581 = vadd.f32 %v1379, %v1533
      %v1582 = vadd.f32 %v1380, %v1536
      %v1583 = vadd.f32 %v1381, %v1541
      %v1584 = vadd.f32 %v1382, %v1544
      %v1585 = vadd.f32 %v1383, %v1549
      %v1586 = vadd.f32 %v1384, %v1552
      %v1590 = vrot.slane %v382, 1
      %v1591 = vrot.slane %v383, 1
      %v1592 = vsel %vm453, %v1590, %v1591
      %v1593 = vrot.slane %v384, 1
      %v1594 = vsel %vm453, %v1591, %v1593
      %v1597 = vpack.c.bf16 %v1594, %v1592
      %s1598 = scalar_lea.vmem %s1, 8
      %v1599 = vld [vmem:[%s1598] sm:$0x3]
      %v1601 = vsel %vm584, %v1597, 0
      %v1604 = vsel %vm633, %v1599, 0
      %1606 = vmatprep.subr.bf16.mxu0 0
      %1607 = vmatpush1.bf16.msra.mxu0 %v1604
      %1608 = vmatprep.subr.bf16.mxu0 0
      %1609 = vmatpush1.bf16.msra.mxu0 0
      %1610 = vmatprep.subr.bf16.mxu0 0
      %1611 = vmatpush1.bf16.msra.mxu0 0
      %1612 = vmatprep.subr.bf16.mxu0 0
      %1613 = vmatpush1.bf16.msra.mxu0 0
      %1614 = vmatprep.subr.bf16.mxu0 0
      %1615 = vmatpush1.bf16.msra.mxu0 0
      %1616 = vmatprep.subr.bf16.mxu0 0
      %1617 = vmatpush1.bf16.msra.mxu0 0
      %1618 = vmatprep.subr.bf16.mxu0 0
      %1619 = vmatpush1.bf16.msra.mxu0 0
      %1620 = vmatprep.subr.bf16.mxu0 0
      %1621 = vmatpush1.bf16.msra.mxu0 0
      %1622 = vmatprep.subr.bf16.mxu0 0
      %1623 = vmatpush1.bf16.msra.mxu0 0
      %1624 = vmatprep.subr.bf16.mxu0 0
      %1625 = vmatpush1.bf16.msra.mxu0 0
      %1626 = vmatprep.subr.bf16.mxu0 0
      %1627 = vmatpush1.bf16.msra.mxu0 0
      %1628 = vmatprep.subr.bf16.mxu0 0
      %1629 = vmatpush1.bf16.msra.mxu0 0
      %1630 = vmatprep.subr.bf16.mxu0 0
      %1631 = vmatpush1.bf16.msra.mxu0 0
      %1632 = vmatprep.subr.bf16.mxu0 0
      %1633 = vmatpush1.bf16.msra.mxu0 0
      %1634 = vmatprep.subr.bf16.mxu0 0
      %1635 = vmatpush1.bf16.msra.mxu0 0
      %1636 = vmatprep.subr.bf16.mxu0 0
      %1637 = vmatpush1.bf16.msra.mxu0 0
      %1638 = vmatprep.mubr.bf16.mxu0 0
      %1639 = vmatmul.mubr.bf16.gmra.mrb[0].mxu0 %v589
      %v1640 = vpop.f32.mrb[0].mxu0
      %v1641 = vadd.f32 0.0, %v1640
      %v1642 = vpop.f32.mrb[0].mxu0
      %v1643 = vpop.f32.mrb[0].mxu0
      %v1644 = vadd.f32 0.0, %v1643
      %v1645 = vpop.f32.mrb[0].mxu0
      %1646 = vmatprep.mubr.bf16.mxu0 0
      %1647 = vmatmul.mubr.bf16.gmra.mrb[0].mxu0 %v592
      %v1648 = vpop.f32.mrb[0].mxu0
      %v1649 = vadd.f32 0.0, %v1648
      %v1650 = vpop.f32.mrb[0].mxu0
      %v1651 = vpop.f32.mrb[0].mxu0
      %v1652 = vadd.f32 0.0, %v1651
      %v1653 = vpop.f32.mrb[0].mxu0
      %1654 = vmatprep.mubr.bf16.mxu0 0
      %1655 = vmatmul.mubr.bf16.gmra.mrb[0].mxu0 %v595
      %v1656 = vpop.f32.mrb[0].mxu0
      %v1657 = vadd.f32 0.0, %v1656
      %v1658 = vpop.f32.mrb[0].mxu0
      %v1659 = vpop.f32.mrb[0].mxu0
      %v1660 = vadd.f32 0.0, %v1659
      %v1661 = vpop.f32.mrb[0].mxu0
      %1662 = vmatprep.mubr.bf16.mxu0 0
      %1663 = vmatmul.mubr.bf16.gmra.mrb[0].mxu0 %v598
      %v1664 = vpop.f32.mrb[0].mxu0
      %v1665 = vadd.f32 0.0, %v1664
      %v1666 = vpop.f32.mrb[0].mxu0
      %v1667 = vpop.f32.mrb[0].mxu0
      %v1668 = vadd.f32 0.0, %v1667
      %v1669 = vpop.f32.mrb[0].mxu0
      %1670 = vmatprep.mubr.bf16.mxu0 0
      %1671 = vmatmul.mubr.bf16.gmra.mrb[0].mxu0 %v601
      %v1672 = vpop.f32.mrb[0].mxu0
      %v1673 = vadd.f32 0.0, %v1672
      %v1674 = vpop.f32.mrb[0].mxu0
      %v1675 = vpop.f32.mrb[0].mxu0
      %v1676 = vadd.f32 0.0, %v1675
      %v1677 = vpop.f32.mrb[0].mxu0
      %1678 = vmatprep.mubr.bf16.mxu0 0
      %1679 = vmatmul.mubr.bf16.gmra.mrb[0].mxu0 %v604
      %v1680 = vpop.f32.mrb[0].mxu0
      %v1681 = vadd.f32 0.0, %v1680
      %v1682 = vpop.f32.mrb[0].mxu0
      %v1683 = vpop.f32.mrb[0].mxu0
      %v1684 = vadd.f32 0.0, %v1683
      %v1685 = vpop.f32.mrb[0].mxu0
      %1686 = vmatprep.mubr.bf16.mxu0 0
      %1687 = vmatmul.mubr.bf16.gmra.mrb[0].mxu0 %v607
      %v1688 = vpop.f32.mrb[0].mxu0
      %v1689 = vadd.f32 0.0, %v1688
      %v1690 = vpop.f32.mrb[0].mxu0
      %v1691 = vpop.f32.mrb[0].mxu0
      %v1692 = vadd.f32 0.0, %v1691
      %v1693 = vpop.f32.mrb[0].mxu0
      %1694 = vmatprep.mubr.bf16.mxu0 0
      %1695 = vmatmul.mubr.bf16.gmra.mrb[0].mxu0 %v610
      %v1696 = vpop.f32.mrb[0].mxu0
      %v1697 = vadd.f32 0.0, %v1696
      %v1698 = vpop.f32.mrb[0].mxu0
      %v1699 = vpop.f32.mrb[0].mxu0
      %v1700 = vadd.f32 0.0, %v1699
      %v1701 = vpop.f32.mrb[0].mxu0
      %1702 = vmatprep.mubr.bf16.mxu0 0
      %1703 = vmatmul.mubr.bf16.gmra.mrb[0].mxu0 %v613
      %v1704 = vpop.f32.mrb[0].mxu0
      %v1705 = vadd.f32 0.0, %v1704
      %v1706 = vpop.f32.mrb[0].mxu0
      %v1707 = vpop.f32.mrb[0].mxu0
      %v1708 = vadd.f32 0.0, %v1707
      %v1709 = vpop.f32.mrb[0].mxu0
      %1710 = vmatprep.mubr.bf16.mxu0 0
      %1711 = vmatmul.mubr.bf16.gmra.mrb[0].mxu0 %v616
      %v1712 = vpop.f32.mrb[0].mxu0
      %v1713 = vadd.f32 0.0, %v1712
      %v1714 = vpop.f32.mrb[0].mxu0
      %v1715 = vpop.f32.mrb[0].mxu0
      %v1716 = vadd.f32 0.0, %v1715
      %v1717 = vpop.f32.mrb[0].mxu0
      %1718 = vmatprep.mubr.bf16.mxu0 0
      %1719 = vmatmul.mubr.bf16.gmra.mrb[0].mxu0 %v619
      %v1720 = vpop.f32.mrb[0].mxu0
      %v1721 = vadd.f32 0.0, %v1720
      %v1722 = vpop.f32.mrb[0].mxu0
      %v1723 = vpop.f32.mrb[0].mxu0
      %v1724 = vadd.f32 0.0, %v1723
      %v1725 = vpop.f32.mrb[0].mxu0
      %1726 = vmatprep.mubr.bf16.mxu0 0
      %1727 = vmatmul.mubr.bf16.gmra.mrb[0].mxu0 %v622
      %v1728 = vpop.f32.mrb[0].mxu0
      %v1729 = vadd.f32 0.0, %v1728
      %v1730 = vpop.f32.mrb[0].mxu0
      %v1731 = vpop.f32.mrb[0].mxu0
      %v1732 = vadd.f32 0.0, %v1731
      %v1733 = vpop.f32.mrb[0].mxu0
      %1734 = vmatprep.mubr.bf16.mxu0 0
      %1735 = vmatmul.mubr.bf16.gmra.mrb[0].mxu0 %v625
      %v1736 = vpop.f32.mrb[0].mxu0
      %v1737 = vadd.f32 0.0, %v1736
      %v1738 = vpop.f32.mrb[0].mxu0
      %v1739 = vpop.f32.mrb[0].mxu0
      %v1740 = vadd.f32 0.0, %v1739
      %v1741 = vpop.f32.mrb[0].mxu0
      %1742 = vmatprep.mubr.bf16.mxu0 0
      %1743 = vmatmul.mubr.bf16.gmra.mrb[0].mxu0 %v628
      %v1744 = vpop.f32.mrb[0].mxu0
      %v1745 = vadd.f32 0.0, %v1744
      %v1746 = vpop.f32.mrb[0].mxu0
      %v1747 = vpop.f32.mrb[0].mxu0
      %v1748 = vadd.f32 0.0, %v1747
      %v1749 = vpop.f32.mrb[0].mxu0
      %1750 = vmatprep.mubr.bf16.mxu0 0
      %1751 = vmatmul.mubr.bf16.gmra.mrb[0].mxu0 %v631
      %v1752 = vpop.f32.mrb[0].mxu0
      %v1753 = vadd.f32 0.0, %v1752
      %v1754 = vpop.f32.mrb[0].mxu0
      %v1755 = vpop.f32.mrb[0].mxu0
      %v1756 = vadd.f32 0.0, %v1755
      %v1757 = vpop.f32.mrb[0].mxu0
      %1758 = vmatprep.mubr.bf16.mxu0 0
      %1759 = vmatmul.mubr.bf16.gmra.mrb[0].mxu0 %v1601
      %v1760 = vpop.f32.mrb[0].mxu0
      %v1761 = vadd.f32 0.0, %v1760
      %v1762 = vpop.f32.mrb[0].mxu0
      %v1763 = vpop.f32.mrb[0].mxu0
      %v1764 = vadd.f32 0.0, %v1763
      %v1765 = vpop.f32.mrb[0].mxu0
      %1766 = vdwg.mxu0
      %v1767 = vadd.f32 %v1555, %v1641
      %v1768 = vadd.f32 %v1556, %v1644
      %v1769 = vadd.f32 %v1557, %v1649
      %v1770 = vadd.f32 %v1558, %v1652
      %v1771 = vadd.f32 %v1559, %v1657
      %v1772 = vadd.f32 %v1560, %v1660
      %v1773 = vadd.f32 %v1561, %v1665
      %v1774 = vadd.f32 %v1562, %v1668
      %v1775 = vadd.f32 %v1563, %v1673
      %v1776 = vadd.f32 %v1564, %v1676
      %v1777 = vadd.f32 %v1565, %v1681
      %v1778 = vadd.f32 %v1566, %v1684
      %v1779 = vadd.f32 %v1567, %v1689
      %v1780 = vadd.f32 %v1568, %v1692
      %v1781 = vadd.f32 %v1569, %v1697
      %v1782 = vadd.f32 %v1570, %v1700
      %v1783 = vadd.f32 %v1571, %v1705
      %v1784 = vadd.f32 %v1572, %v1708
      %v1785 = vadd.f32 %v1573, %v1713
      %v1786 = vadd.f32 %v1574, %v1716
      %v1787 = vadd.f32 %v1575, %v1721
      %v1788 = vadd.f32 %v1576, %v1724
      %v1789 = vadd.f32 %v1577, %v1729
      %v1790 = vadd.f32 %v1578, %v1732
      %v1791 = vadd.f32 %v1579, %v1737
      %v1792 = vadd.f32 %v1580, %v1740
      %v1793 = vadd.f32 %v1581, %v1745
      %v1794 = vadd.f32 %v1582, %v1748
      %v1795 = vadd.f32 %v1583, %v1753
      %v1796 = vadd.f32 %v1584, %v1756
      %v1797 = vadd.f32 %v1585, %v1761
      %v1798 = vadd.f32 %v1586, %v1764
      %v1799 = vrot.slane %v382, 2
      %v1800 = vrot.slane %v383, 2
      %v1801 = vsel %vm1010, %v1799, %v1800
      %v1802 = vrot.slane %v384, 2
      %v1803 = vsel %vm1010, %v1800, %v1802
      %v1806 = vpack.c.bf16 %v1803, %v1801
      %s1807 = scalar_lea.vmem %s1, 10
      %v1808 = vld [vmem:[%s1807] sm:$0x3]
      %v1810 = vsel %vm584, %v1806, 0
      %v1813 = vsel %vm633, %v1808, 0
      %1815 = vmatprep.subr.bf16.mxu0 0
      %1816 = vmatpush1.bf16.msra.mxu0 %v1813
      %1817 = vmatprep.subr.bf16.mxu0 0
      %1818 = vmatpush1.bf16.msra.mxu0 0
      %1819 = vmatprep.subr.bf16.mxu0 0
      %1820 = vmatpush1.bf16.msra.mxu0 0
      %1821 = vmatprep.subr.bf16.mxu0 0
      %1822 = vmatpush1.bf16.msra.mxu0 0
      %1823 = vmatprep.subr.bf16.mxu0 0
      %1824 = vmatpush1.bf16.msra.mxu0 0
      %1825 = vmatprep.subr.bf16.mxu0 0
      %1826 = vmatpush1.bf16.msra.mxu0 0
      %1827 = vmatprep.subr.bf16.mxu0 0
      %1828 = vmatpush1.bf16.msra.mxu0 0
      %1829 = vmatprep.subr.bf16.mxu0 0
      %1830 = vmatpush1.bf16.msra.mxu0 0
      %1831 = vmatprep.subr.bf16.mxu0 0
      %1832 = vmatpush1.bf16.msra.mxu0 0
      %1833 = vmatprep.subr.bf16.mxu0 0
      %1834 = vmatpush1.bf16.msra.mxu0 0
      %1835 = vmatprep.subr.bf16.mxu0 0
      %1836 = vmatpush1.bf16.msra.mxu0 0
      %1837 = vmatprep.subr.bf16.mxu0 0
      %1838 = vmatpush1.bf16.msra.mxu0 0
      %1839 = vmatprep.subr.bf16.mxu0 0
      %1840 = vmatpush1.bf16.msra.mxu0 0
      %1841 = vmatprep.subr.bf16.mxu0 0
      %1842 = vmatpush1.bf16.msra.mxu0 0
      %1843 = vmatprep.subr.bf16.mxu0 0
      %1844 = vmatpush1.bf16.msra.mxu0 0
      %1845 = vmatprep.subr.bf16.mxu0 0
      %1846 = vmatpush1.bf16.msra.mxu0 0
      %1847 = vmatprep.mubr.bf16.mxu0 0
      %1848 = vmatmul.mubr.bf16.gmra.mrb[0].mxu0 %v1145
      %v1849 = vpop.f32.mrb[0].mxu0
      %v1850 = vadd.f32 0.0, %v1849
      %v1851 = vpop.f32.mrb[0].mxu0
      %v1852 = vpop.f32.mrb[0].mxu0
      %v1853 = vadd.f32 0.0, %v1852
      %v1854 = vpop.f32.mrb[0].mxu0
      %1855 = vmatprep.mubr.bf16.mxu0 0
      %1856 = vmatmul.mubr.bf16.gmra.mrb[0].mxu0 %v1148
      %v1857 = vpop.f32.mrb[0].mxu0
      %v1858 = vadd.f32 0.0, %v1857
      %v1859 = vpop.f32.mrb[0].mxu0
      %v1860 = vpop.f32.mrb[0].mxu0
      %v1861 = vadd.f32 0.0, %v1860
      %v1862 = vpop.f32.mrb[0].mxu0
      %1863 = vmatprep.mubr.bf16.mxu0 0
      %1864 = vmatmul.mubr.bf16.gmra.mrb[0].mxu0 %v1151
      %v1865 = vpop.f32.mrb[0].mxu0
      %v1866 = vadd.f32 0.0, %v1865
      %v1867 = vpop.f32.mrb[0].mxu0
      %v1868 = vpop.f32.mrb[0].mxu0
      %v1869 = vadd.f32 0.0, %v1868
      %v1870 = vpop.f32.mrb[0].mxu0
      %1871 = vmatprep.mubr.bf16.mxu0 0
      %1872 = vmatmul.mubr.bf16.gmra.mrb[0].mxu0 %v1154
      %v1873 = vpop.f32.mrb[0].mxu0
      %v1874 = vadd.f32 0.0, %v1873
      %v1875 = vpop.f32.mrb[0].mxu0
      %v1876 = vpop.f32.mrb[0].mxu0
      %v1877 = vadd.f32 0.0, %v1876
      %v1878 = vpop.f32.mrb[0].mxu0
      %1879 = vmatprep.mubr.bf16.mxu0 0
      %1880 = vmatmul.mubr.bf16.gmra.mrb[0].mxu0 %v1157
      %v1881 = vpop.f32.mrb[0].mxu0
      %v1882 = vadd.f32 0.0, %v1881
      %v1883 = vpop.f32.mrb[0].mxu0
      %v1884 = vpop.f32.mrb[0].mxu0
      %v1885 = vadd.f32 0.0, %v1884
      %v1886 = vpop.f32.mrb[0].mxu0
      %1887 = vmatprep.mubr.bf16.mxu0 0
      %1888 = vmatmul.mubr.bf16.gmra.mrb[0].mxu0 %v1160
      %v1889 = vpop.f32.mrb[0].mxu0
      %v1890 = vadd.f32 0.0, %v1889
      %v1891 = vpop.f32.mrb[0].mxu0
      %v1892 = vpop.f32.mrb[0].mxu0
      %v1893 = vadd.f32 0.0, %v1892
      %v1894 = vpop.f32.mrb[0].mxu0
      %1895 = vmatprep.mubr.bf16.mxu0 0
      %1896 = vmatmul.mubr.bf16.gmra.mrb[0].mxu0 %v1163
      %v1897 = vpop.f32.mrb[0].mxu0
      %v1898 = vadd.f32 0.0, %v1897
      %v1899 = vpop.f32.mrb[0].mxu0
      %v1900 = vpop.f32.mrb[0].mxu0
      %v1901 = vadd.f32 0.0, %v1900
      %v1902 = vpop.f32.mrb[0].mxu0
      %1903 = vmatprep.mubr.bf16.mxu0 0
      %1904 = vmatmul.mubr.bf16.gmra.mrb[0].mxu0 %v1166
      %v1905 = vpop.f32.mrb[0].mxu0
      %v1906 = vadd.f32 0.0, %v1905
      %v1907 = vpop.f32.mrb[0].mxu0
      %v1908 = vpop.f32.mrb[0].mxu0
      %v1909 = vadd.f32 0.0, %v1908
      %v1910 = vpop.f32.mrb[0].mxu0
      %1911 = vmatprep.mubr.bf16.mxu0 0
      %1912 = vmatmul.mubr.bf16.gmra.mrb[0].mxu0 %v1169
      %v1913 = vpop.f32.mrb[0].mxu0
      %v1914 = vadd.f32 0.0, %v1913
      %v1915 = vpop.f32.mrb[0].mxu0
      %v1916 = vpop.f32.mrb[0].mxu0
      %v1917 = vadd.f32 0.0, %v1916
      %v1918 = vpop.f32.mrb[0].mxu0
      %1919 = vmatprep.mubr.bf16.mxu0 0
      %1920 = vmatmul.mubr.bf16.gmra.mrb[0].mxu0 %v1172
      %v1921 = vpop.f32.mrb[0].mxu0
      %v1922 = vadd.f32 0.0, %v1921
      %v1923 = vpop.f32.mrb[0].mxu0
      %v1924 = vpop.f32.mrb[0].mxu0
      %v1925 = vadd.f32 0.0, %v1924
      %v1926 = vpop.f32.mrb[0].mxu0
      %1927 = vmatprep.mubr.bf16.mxu0 0
      %1928 = vmatmul.mubr.bf16.gmra.mrb[0].mxu0 %v1175
      %v1929 = vpop.f32.mrb[0].mxu0
      %v1930 = vadd.f32 0.0, %v1929
      %v1931 = vpop.f32.mrb[0].mxu0
      %v1932 = vpop.f32.mrb[0].mxu0
      %v1933 = vadd.f32 0.0, %v1932
      %v1934 = vpop.f32.mrb[0].mxu0
      %1935 = vmatprep.mubr.bf16.mxu0 0
      %1936 = vmatmul.mubr.bf16.gmra.mrb[0].mxu0 %v1178
      %v1937 = vpop.f32.mrb[0].mxu0
      %v1938 = vadd.f32 0.0, %v1937
      %v1939 = vpop.f32.mrb[0].mxu0
      %v1940 = vpop.f32.mrb[0].mxu0
      %v1941 = vadd.f32 0.0, %v1940
      %v1942 = vpop.f32.mrb[0].mxu0
      %1943 = vmatprep.mubr.bf16.mxu0 0
      %1944 = vmatmul.mubr.bf16.gmra.mrb[0].mxu0 %v1181
      %v1945 = vpop.f32.mrb[0].mxu0
      %v1946 = vadd.f32 0.0, %v1945
      %v1947 = vpop.f32.mrb[0].mxu0
      %v1948 = vpop.f32.mrb[0].mxu0
      %v1949 = vadd.f32 0.0, %v1948
      %v1950 = vpop.f32.mrb[0].mxu0
      %1951 = vmatprep.mubr.bf16.mxu0 0
      %1952 = vmatmul.mubr.bf16.gmra.mrb[0].mxu0 %v1184
      %v1953 = vpop.f32.mrb[0].mxu0
      %v1954 = vadd.f32 0.0, %v1953
      %v1955 = vpop.f32.mrb[0].mxu0
      %v1956 = vpop.f32.mrb[0].mxu0
      %v1957 = vadd.f32 0.0, %v1956
      %v1958 = vpop.f32.mrb[0].mxu0
      %1959 = vmatprep.mubr.bf16.mxu0 0
      %1960 = vmatmul.mubr.bf16.gmra.mrb[0].mxu0 %v1187
      %v1961 = vpop.f32.mrb[0].mxu0
      %v1962 = vadd.f32 0.0, %v1961
      %v1963 = vpop.f32.mrb[0].mxu0
      %v1964 = vpop.f32.mrb[0].mxu0
      %v1965 = vadd.f32 0.0, %v1964
      %v1966 = vpop.f32.mrb[0].mxu0
      %1967 = vmatprep.mubr.bf16.mxu0 0
      %1968 = vmatmul.mubr.bf16.gmra.mrb[0].mxu0 %v1810
      %v1969 = vpop.f32.mrb[0].mxu0
      %v1970 = vadd.f32 0.0, %v1969
      %v1971 = vpop.f32.mrb[0].mxu0
      %v1972 = vpop.f32.mrb[0].mxu0
      %v1973 = vadd.f32 0.0, %v1972
      %v1974 = vpop.f32.mrb[0].mxu0
      %1975 = vdwg.mxu0
      %v1976 = vadd.f32 %v1767, %v1850
      %v1977 = vadd.f32 %v1768, %v1853
      %v1978 = vadd.f32 %v1769, %v1858
      %v1979 = vadd.f32 %v1770, %v1861
      %v1980 = vadd.f32 %v1771, %v1866
      %v1981 = vadd.f32 %v1772, %v1869
      %v1982 = vadd.f32 %v1773, %v1874
      %v1983 = vadd.f32 %v1774, %v1877
      %v1984 = vadd.f32 %v1775, %v1882
      %v1985 = vadd.f32 %v1776, %v1885
      %v1986 = vadd.f32 %v1777, %v1890
      %v1987 = vadd.f32 %v1778, %v1893
      %v1988 = vadd.f32 %v1779, %v1898
      %v1989 = vadd.f32 %v1780, %v1901
      %v1990 = vadd.f32 %v1781, %v1906
      %v1991 = vadd.f32 %v1782, %v1909
      %v1992 = vadd.f32 %v1783, %v1914
      %v1993 = vadd.f32 %v1784, %v1917
      %v1994 = vadd.f32 %v1785, %v1922
      %v1995 = vadd.f32 %v1786, %v1925
      %v1996 = vadd.f32 %v1787, %v1930
      %v1997 = vadd.f32 %v1788, %v1933
      %v1998 = vadd.f32 %v1789, %v1938
      %v1999 = vadd.f32 %v1790, %v1941
      %v2000 = vadd.f32 %v1791, %v1946
      %v2001 = vadd.f32 %v1792, %v1949
      %v2002 = vadd.f32 %v1793, %v1954
      %v2003 = vadd.f32 %v1794, %v1957
      %v2004 = vadd.f32 %v1795, %v1962
      %v2005 = vadd.f32 %v1796, %v1965
      %v2006 = vadd.f32 %v1797, %v1970
      %v2007 = vadd.f32 %v1798, %v1973
      %v2008 = vpack.c.bf16 %v386, %v385
      %s2009 = scalar_lea.vmem %s1, 12
      %v2010 = vld [vmem:[%s2009] sm:$0x3]
      %v2012 = vsel %vm584, %v2008, 0
      %v2015 = vsel %vm633, %v2010, 0
      %2017 = vmatprep.subr.bf16.mxu0 0
      %2018 = vmatpush1.bf16.msra.mxu0 %v2015
      %2019 = vmatprep.subr.bf16.mxu0 0
      %2020 = vmatpush1.bf16.msra.mxu0 0
      %2021 = vmatprep.subr.bf16.mxu0 0
      %2022 = vmatpush1.bf16.msra.mxu0 0
      %2023 = vmatprep.subr.bf16.mxu0 0
      %2024 = vmatpush1.bf16.msra.mxu0 0
      %2025 = vmatprep.subr.bf16.mxu0 0
      %2026 = vmatpush1.bf16.msra.mxu0 0
      %2027 = vmatprep.subr.bf16.mxu0 0
      %2028 = vmatpush1.bf16.msra.mxu0 0
      %2029 = vmatprep.subr.bf16.mxu0 0
      %2030 = vmatpush1.bf16.msra.mxu0 0
      %2031 = vmatprep.subr.bf16.mxu0 0
      %2032 = vmatpush1.bf16.msra.mxu0 0
      %2033 = vmatprep.subr.bf16.mxu0 0
      %2034 = vmatpush1.bf16.msra.mxu0 0
      %2035 = vmatprep.subr.bf16.mxu0 0
      %2036 = vmatpush1.bf16.msra.mxu0 0
      %2037 = vmatprep.subr.bf16.mxu0 0
      %2038 = vmatpush1.bf16.msra.mxu0 0
      %2039 = vmatprep.subr.bf16.mxu0 0
      %2040 = vmatpush1.bf16.msra.mxu0 0
      %2041 = vmatprep.subr.bf16.mxu0 0
      %2042 = vmatpush1.bf16.msra.mxu0 0
      %2043 = vmatprep.subr.bf16.mxu0 0
      %2044 = vmatpush1.bf16.msra.mxu0 0
      %2045 = vmatprep.subr.bf16.mxu0 0
      %2046 = vmatpush1.bf16.msra.mxu0 0
      %2047 = vmatprep.subr.bf16.mxu0 0
      %2048 = vmatpush1.bf16.msra.mxu0 0
      %2049 = vmatprep.mubr.bf16.mxu0 0
      %2050 = vmatmul.mubr.bf16.gmra.mrb[0].mxu0 %v805
      %v2051 = vpop.f32.mrb[0].mxu0
      %v2052 = vadd.f32 0.0, %v2051
      %v2053 = vpop.f32.mrb[0].mxu0
      %v2054 = vpop.f32.mrb[0].mxu0
      %v2055 = vadd.f32 0.0, %v2054
      %v2056 = vpop.f32.mrb[0].mxu0
      %2057 = vmatprep.mubr.bf16.mxu0 0
      %2058 = vmatmul.mubr.bf16.gmra.mrb[0].mxu0 %v808
      %v2059 = vpop.f32.mrb[0].mxu0
      %v2060 = vadd.f32 0.0, %v2059
      %v2061 = vpop.f32.mrb[0].mxu0
      %v2062 = vpop.f32.mrb[0].mxu0
      %v2063 = vadd.f32 0.0, %v2062
      %v2064 = vpop.f32.mrb[0].mxu0
      %2065 = vmatprep.mubr.bf16.mxu0 0
      %2066 = vmatmul.mubr.bf16.gmra.mrb[0].mxu0 %v811
      %v2067 = vpop.f32.mrb[0].mxu0
      %v2068 = vadd.f32 0.0, %v2067
      %v2069 = vpop.f32.mrb[0].mxu0
      %v2070 = vpop.f32.mrb[0].mxu0
      %v2071 = vadd.f32 0.0, %v2070
      %v2072 = vpop.f32.mrb[0].mxu0
      %2073 = vmatprep.mubr.bf16.mxu0 0
      %2074 = vmatmul.mubr.bf16.gmra.mrb[0].mxu0 %v814
      %v2075 = vpop.f32.mrb[0].mxu0
      %v2076 = vadd.f32 0.0, %v2075
      %v2077 = vpop.f32.mrb[0].mxu0
      %v2078 = vpop.f32.mrb[0].mxu0
      %v2079 = vadd.f32 0.0, %v2078
      %v2080 = vpop.f32.mrb[0].mxu0
      %2081 = vmatprep.mubr.bf16.mxu0 0
      %2082 = vmatmul.mubr.bf16.gmra.mrb[0].mxu0 %v817
      %v2083 = vpop.f32.mrb[0].mxu0
      %v2084 = vadd.f32 0.0, %v2083
      %v2085 = vpop.f32.mrb[0].mxu0
      %v2086 = vpop.f32.mrb[0].mxu0
      %v2087 = vadd.f32 0.0, %v2086
      %v2088 = vpop.f32.mrb[0].mxu0
      %2089 = vmatprep.mubr.bf16.mxu0 0
      %2090 = vmatmul.mubr.bf16.gmra.mrb[0].mxu0 %v820
      %v2091 = vpop.f32.mrb[0].mxu0
      %v2092 = vadd.f32 0.0, %v2091
      %v2093 = vpop.f32.mrb[0].mxu0
      %v2094 = vpop.f32.mrb[0].mxu0
      %v2095 = vadd.f32 0.0, %v2094
      %v2096 = vpop.f32.mrb[0].mxu0
      %2097 = vmatprep.mubr.bf16.mxu0 0
      %2098 = vmatmul.mubr.bf16.gmra.mrb[0].mxu0 %v823
      %v2099 = vpop.f32.mrb[0].mxu0
      %v2100 = vadd.f32 0.0, %v2099
      %v2101 = vpop.f32.mrb[0].mxu0
      %v2102 = vpop.f32.mrb[0].mxu0
      %v2103 = vadd.f32 0.0, %v2102
      %v2104 = vpop.f32.mrb[0].mxu0
      %2105 = vmatprep.mubr.bf16.mxu0 0
      %2106 = vmatmul.mubr.bf16.gmra.mrb[0].mxu0 %v826
      %v2107 = vpop.f32.mrb[0].mxu0
      %v2108 = vadd.f32 0.0, %v2107
      %v2109 = vpop.f32.mrb[0].mxu0
      %v2110 = vpop.f32.mrb[0].mxu0
      %v2111 = vadd.f32 0.0, %v2110
      %v2112 = vpop.f32.mrb[0].mxu0
      %2113 = vmatprep.mubr.bf16.mxu0 0
      %2114 = vmatmul.mubr.bf16.gmra.mrb[0].mxu0 %v829
      %v2115 = vpop.f32.mrb[0].mxu0
      %v2116 = vadd.f32 0.0, %v2115
      %v2117 = vpop.f32.mrb[0].mxu0
      %v2118 = vpop.f32.mrb[0].mxu0
      %v2119 = vadd.f32 0.0, %v2118
      %v2120 = vpop.f32.mrb[0].mxu0
      %2121 = vmatprep.mubr.bf16.mxu0 0
      %2122 = vmatmul.mubr.bf16.gmra.mrb[0].mxu0 %v832
      %v2123 = vpop.f32.mrb[0].mxu0
      %v2124 = vadd.f32 0.0, %v2123
      %v2125 = vpop.f32.mrb[0].mxu0
      %v2126 = vpop.f32.mrb[0].mxu0
      %v2127 = vadd.f32 0.0, %v2126
      %v2128 = vpop.f32.mrb[0].mxu0
      %2129 = vmatprep.mubr.bf16.mxu0 0
      %2130 = vmatmul.mubr.bf16.gmra.mrb[0].mxu0 %v835
      %v2131 = vpop.f32.mrb[0].mxu0
      %v2132 = vadd.f32 0.0, %v2131
      %v2133 = vpop.f32.mrb[0].mxu0
      %v2134 = vpop.f32.mrb[0].mxu0
      %v2135 = vadd.f32 0.0, %v2134
      %v2136 = vpop.f32.mrb[0].mxu0
      %2137 = vmatprep.mubr.bf16.mxu0 0
      %2138 = vmatmul.mubr.bf16.gmra.mrb[0].mxu0 %v838
      %v2139 = vpop.f32.mrb[0].mxu0
      %v2140 = vadd.f32 0.0, %v2139
      %v2141 = vpop.f32.mrb[0].mxu0
      %v2142 = vpop.f32.mrb[0].mxu0
      %v2143 = vadd.f32 0.0, %v2142
      %v2144 = vpop.f32.mrb[0].mxu0
      %2145 = vmatprep.mubr.bf16.mxu0 0
      %2146 = vmatmul.mubr.bf16.gmra.mrb[0].mxu0 %v841
      %v2147 = vpop.f32.mrb[0].mxu0
      %v2148 = vadd.f32 0.0, %v2147
      %v2149 = vpop.f32.mrb[0].mxu0
      %v2150 = vpop.f32.mrb[0].mxu0
      %v2151 = vadd.f32 0.0, %v2150
      %v2152 = vpop.f32.mrb[0].mxu0
      %2153 = vmatprep.mubr.bf16.mxu0 0
      %2154 = vmatmul.mubr.bf16.gmra.mrb[0].mxu0 %v844
      %v2155 = vpop.f32.mrb[0].mxu0
      %v2156 = vadd.f32 0.0, %v2155
      %v2157 = vpop.f32.mrb[0].mxu0
      %v2158 = vpop.f32.mrb[0].mxu0
      %v2159 = vadd.f32 0.0, %v2158
      %v2160 = vpop.f32.mrb[0].mxu0
      %2161 = vmatprep.mubr.bf16.mxu0 0
      %2162 = vmatmul.mubr.bf16.gmra.mrb[0].mxu0 %v1389
      %v2163 = vpop.f32.mrb[0].mxu0
      %v2164 = vadd.f32 0.0, %v2163
      %v2165 = vpop.f32.mrb[0].mxu0
      %v2166 = vpop.f32.mrb[0].mxu0
      %v2167 = vadd.f32 0.0, %v2166
      %v2168 = vpop.f32.mrb[0].mxu0
      %2169 = vmatprep.mubr.bf16.mxu0 0
      %2170 = vmatmul.mubr.bf16.gmra.mrb[0].mxu0 %v2012
      %v2171 = vpop.f32.mrb[0].mxu0
      %v2172 = vadd.f32 0.0, %v2171
      %v2173 = vpop.f32.mrb[0].mxu0
      %v2174 = vpop.f32.mrb[0].mxu0
      %v2175 = vadd.f32 0.0, %v2174
      %v2176 = vpop.f32.mrb[0].mxu0
      %2177 = vdwg.mxu0
      %v2178 = vadd.f32 %v1976, %v2052
      %v2179 = vadd.f32 %v1977, %v2055
      %v2180 = vadd.f32 %v1978, %v2060
      %v2181 = vadd.f32 %v1979, %v2063
      %v2182 = vadd.f32 %v1980, %v2068
      %v2183 = vadd.f32 %v1981, %v2071
      %v2184 = vadd.f32 %v1982, %v2076
      %v2185 = vadd.f32 %v1983, %v2079
      %v2186 = vadd.f32 %v1984, %v2084
      %v2187 = vadd.f32 %v1985, %v2087
      %v2188 = vadd.f32 %v1986, %v2092
      %v2189 = vadd.f32 %v1987, %v2095
      %v2190 = vadd.f32 %v1988, %v2100
      %v2191 = vadd.f32 %v1989, %v2103
      %v2192 = vadd.f32 %v1990, %v2108
      %v2193 = vadd.f32 %v1991, %v2111
      %v2194 = vadd.f32 %v1992, %v2116
      %v2195 = vadd.f32 %v1993, %v2119
      %v2196 = vadd.f32 %v1994, %v2124
      %v2197 = vadd.f32 %v1995, %v2127
      %v2198 = vadd.f32 %v1996, %v2132
      %v2199 = vadd.f32 %v1997, %v2135
      %v2200 = vadd.f32 %v1998, %v2140
      %v2201 = vadd.f32 %v1999, %v2143
      %v2202 = vadd.f32 %v2000, %v2148
      %v2203 = vadd.f32 %v2001, %v2151
      %v2204 = vadd.f32 %v2002, %v2156
      %v2205 = vadd.f32 %v2003, %v2159
      %v2206 = vadd.f32 %v2004, %v2164
      %v2207 = vadd.f32 %v2005, %v2167
      %v2208 = vadd.f32 %v2006, %v2172
      %v2209 = vadd.f32 %v2007, %v2175
      %v2213 = vrot.slane %v385, 1
      %v2214 = vrot.slane %v386, 1
      %v2215 = vsel %vm453, %v2213, %v2214
      %v2216 = vrot.slane %v387, 1
      %v2217 = vsel %vm453, %v2214, %v2216
      %v2220 = vpack.c.bf16 %v2217, %v2215
      %s2221 = scalar_lea.vmem %s1, 14
      %v2222 = vld [vmem:[%s2221] sm:$0x3]
      %v2224 = vsel %vm584, %v2220, 0
      %v2227 = vsel %vm633, %v2222, 0
      %2229 = vmatprep.subr.bf16.mxu0 0
      %2230 = vmatpush1.bf16.msra.mxu0 %v2227
      %2231 = vmatprep.subr.bf16.mxu0 0
      %2232 = vmatpush1.bf16.msra.mxu0 0
      %2233 = vmatprep.subr.bf16.mxu0 0
      %2234 = vmatpush1.bf16.msra.mxu0 0
      %2235 = vmatprep.subr.bf16.mxu0 0
      %2236 = vmatpush1.bf16.msra.mxu0 0
      %2237 = vmatprep.subr.bf16.mxu0 0
      %2238 = vmatpush1.bf16.msra.mxu0 0
      %2239 = vmatprep.subr.bf16.mxu0 0
      %2240 = vmatpush1.bf16.msra.mxu0 0
      %2241 = vmatprep.subr.bf16.mxu0 0
      %2242 = vmatpush1.bf16.msra.mxu0 0
      %2243 = vmatprep.subr.bf16.mxu0 0
      %2244 = vmatpush1.bf16.msra.mxu0 0
      %2245 = vmatprep.subr.bf16.mxu0 0
      %2246 = vmatpush1.bf16.msra.mxu0 0
      %2247 = vmatprep.subr.bf16.mxu0 0
      %2248 = vmatpush1.bf16.msra.mxu0 0
      %2249 = vmatprep.subr.bf16.mxu0 0
      %2250 = vmatpush1.bf16.msra.mxu0 0
      %2251 = vmatprep.subr.bf16.mxu0 0
      %2252 = vmatpush1.bf16.msra.mxu0 0
      %2253 = vmatprep.subr.bf16.mxu0 0
      %2254 = vmatpush1.bf16.msra.mxu0 0
      %2255 = vmatprep.subr.bf16.mxu0 0
      %2256 = vmatpush1.bf16.msra.mxu0 0
      %2257 = vmatprep.subr.bf16.mxu0 0
      %2258 = vmatpush1.bf16.msra.mxu0 0
      %2259 = vmatprep.subr.bf16.mxu0 0
      %2260 = vmatpush1.bf16.msra.mxu0 0
      %2261 = vmatprep.mubr.bf16.mxu0 0
      %2262 = vmatmul.mubr.bf16.gmra.mrb[0].mxu0 %v592
      %v2263 = vpop.f32.mrb[0].mxu0
      %v2264 = vadd.f32 0.0, %v2263
      %v2265 = vpop.f32.mrb[0].mxu0
      %v2266 = vpop.f32.mrb[0].mxu0
      %v2267 = vadd.f32 0.0, %v2266
      %v2268 = vpop.f32.mrb[0].mxu0
      %2269 = vmatprep.mubr.bf16.mxu0 0
      %2270 = vmatmul.mubr.bf16.gmra.mrb[0].mxu0 %v595
      %v2271 = vpop.f32.mrb[0].mxu0
      %v2272 = vadd.f32 0.0, %v2271
      %v2273 = vpop.f32.mrb[0].mxu0
      %v2274 = vpop.f32.mrb[0].mxu0
      %v2275 = vadd.f32 0.0, %v2274
      %v2276 = vpop.f32.mrb[0].mxu0
      %2277 = vmatprep.mubr.bf16.mxu0 0
      %2278 = vmatmul.mubr.bf16.gmra.mrb[0].mxu0 %v598
      %v2279 = vpop.f32.mrb[0].mxu0
      %v2280 = vadd.f32 0.0, %v2279
      %v2281 = vpop.f32.mrb[0].mxu0
      %v2282 = vpop.f32.mrb[0].mxu0
      %v2283 = vadd.f32 0.0, %v2282
      %v2284 = vpop.f32.mrb[0].mxu0
      %2285 = vmatprep.mubr.bf16.mxu0 0
      %2286 = vmatmul.mubr.bf16.gmra.mrb[0].mxu0 %v601
      %v2287 = vpop.f32.mrb[0].mxu0
      %v2288 = vadd.f32 0.0, %v2287
      %v2289 = vpop.f32.mrb[0].mxu0
      %v2290 = vpop.f32.mrb[0].mxu0
      %v2291 = vadd.f32 0.0, %v2290
      %v2292 = vpop.f32.mrb[0].mxu0
      %2293 = vmatprep.mubr.bf16.mxu0 0
      %2294 = vmatmul.mubr.bf16.gmra.mrb[0].mxu0 %v604
      %v2295 = vpop.f32.mrb[0].mxu0
      %v2296 = vadd.f32 0.0, %v2295
      %v2297 = vpop.f32.mrb[0].mxu0
      %v2298 = vpop.f32.mrb[0].mxu0
      %v2299 = vadd.f32 0.0, %v2298
      %v2300 = vpop.f32.mrb[0].mxu0
      %2301 = vmatprep.mubr.bf16.mxu0 0
      %2302 = vmatmul.mubr.bf16.gmra.mrb[0].mxu0 %v607
      %v2303 = vpop.f32.mrb[0].mxu0
      %v2304 = vadd.f32 0.0, %v2303
      %v2305 = vpop.f32.mrb[0].mxu0
      %v2306 = vpop.f32.mrb[0].mxu0
      %v2307 = vadd.f32 0.0, %v2306
      %v2308 = vpop.f32.mrb[0].mxu0
      %2309 = vmatprep.mubr.bf16.mxu0 0
      %2310 = vmatmul.mubr.bf16.gmra.mrb[0].mxu0 %v610
      %v2311 = vpop.f32.mrb[0].mxu0
      %v2312 = vadd.f32 0.0, %v2311
      %v2313 = vpop.f32.mrb[0].mxu0
      %v2314 = vpop.f32.mrb[0].mxu0
      %v2315 = vadd.f32 0.0, %v2314
      %v2316 = vpop.f32.mrb[0].mxu0
      %2317 = vmatprep.mubr.bf16.mxu0 0
      %2318 = vmatmul.mubr.bf16.gmra.mrb[0].mxu0 %v613
      %v2319 = vpop.f32.mrb[0].mxu0
      %v2320 = vadd.f32 0.0, %v2319
      %v2321 = vpop.f32.mrb[0].mxu0
      %v2322 = vpop.f32.mrb[0].mxu0
      %v2323 = vadd.f32 0.0, %v2322
      %v2324 = vpop.f32.mrb[0].mxu0
      %2325 = vmatprep.mubr.bf16.mxu0 0
      %2326 = vmatmul.mubr.bf16.gmra.mrb[0].mxu0 %v616
      %v2327 = vpop.f32.mrb[0].mxu0
      %v2328 = vadd.f32 0.0, %v2327
      %v2329 = vpop.f32.mrb[0].mxu0
      %v2330 = vpop.f32.mrb[0].mxu0
      %v2331 = vadd.f32 0.0, %v2330
      %v2332 = vpop.f32.mrb[0].mxu0
      %2333 = vmatprep.mubr.bf16.mxu0 0
      %2334 = vmatmul.mubr.bf16.gmra.mrb[0].mxu0 %v619
      %v2335 = vpop.f32.mrb[0].mxu0
      %v2336 = vadd.f32 0.0, %v2335
      %v2337 = vpop.f32.mrb[0].mxu0
      %v2338 = vpop.f32.mrb[0].mxu0
      %v2339 = vadd.f32 0.0, %v2338
      %v2340 = vpop.f32.mrb[0].mxu0
      %2341 = vmatprep.mubr.bf16.mxu0 0
      %2342 = vmatmul.mubr.bf16.gmra.mrb[0].mxu0 %v622
      %v2343 = vpop.f32.mrb[0].mxu0
      %v2344 = vadd.f32 0.0, %v2343
      %v2345 = vpop.f32.mrb[0].mxu0
      %v2346 = vpop.f32.mrb[0].mxu0
      %v2347 = vadd.f32 0.0, %v2346
      %v2348 = vpop.f32.mrb[0].mxu0
      %2349 = vmatprep.mubr.bf16.mxu0 0
      %2350 = vmatmul.mubr.bf16.gmra.mrb[0].mxu0 %v625
      %v2351 = vpop.f32.mrb[0].mxu0
      %v2352 = vadd.f32 0.0, %v2351
      %v2353 = vpop.f32.mrb[0].mxu0
      %v2354 = vpop.f32.mrb[0].mxu0
      %v2355 = vadd.f32 0.0, %v2354
      %v2356 = vpop.f32.mrb[0].mxu0
      %2357 = vmatprep.mubr.bf16.mxu0 0
      %2358 = vmatmul.mubr.bf16.gmra.mrb[0].mxu0 %v628
      %v2359 = vpop.f32.mrb[0].mxu0
      %v2360 = vadd.f32 0.0, %v2359
      %v2361 = vpop.f32.mrb[0].mxu0
      %v2362 = vpop.f32.mrb[0].mxu0
      %v2363 = vadd.f32 0.0, %v2362
      %v2364 = vpop.f32.mrb[0].mxu0
      %2365 = vmatprep.mubr.bf16.mxu0 0
      %2366 = vmatmul.mubr.bf16.gmra.mrb[0].mxu0 %v631
      %v2367 = vpop.f32.mrb[0].mxu0
      %v2368 = vadd.f32 0.0, %v2367
      %v2369 = vpop.f32.mrb[0].mxu0
      %v2370 = vpop.f32.mrb[0].mxu0
      %v2371 = vadd.f32 0.0, %v2370
      %v2372 = vpop.f32.mrb[0].mxu0
      %2373 = vmatprep.mubr.bf16.mxu0 0
      %2374 = vmatmul.mubr.bf16.gmra.mrb[0].mxu0 %v1601
      %v2375 = vpop.f32.mrb[0].mxu0
      %v2376 = vadd.f32 0.0, %v2375
      %v2377 = vpop.f32.mrb[0].mxu0
      %v2378 = vpop.f32.mrb[0].mxu0
      %v2379 = vadd.f32 0.0, %v2378
      %v2380 = vpop.f32.mrb[0].mxu0
      %2381 = vmatprep.mubr.bf16.mxu0 0
      %2382 = vmatmul.mubr.bf16.gmra.mrb[0].mxu0 %v2224
      %v2383 = vpop.f32.mrb[0].mxu0
      %v2384 = vadd.f32 0.0, %v2383
      %v2385 = vpop.f32.mrb[0].mxu0
      %v2386 = vpop.f32.mrb[0].mxu0
      %v2387 = vadd.f32 0.0, %v2386
      %v2388 = vpop.f32.mrb[0].mxu0
      %2389 = vdwg.mxu0
      %v2390 = vadd.f32 %v2178, %v2264
      %v2391 = vadd.f32 %v2179, %v2267
      %v2392 = vadd.f32 %v2180, %v2272
      %v2393 = vadd.f32 %v2181, %v2275
      %v2394 = vadd.f32 %v2182, %v2280
      %v2395 = vadd.f32 %v2183, %v2283
      %v2396 = vadd.f32 %v2184, %v2288
      %v2397 = vadd.f32 %v2185, %v2291
      %v2398 = vadd.f32 %v2186, %v2296
      %v2399 = vadd.f32 %v2187, %v2299
      %v2400 = vadd.f32 %v2188, %v2304
      %v2401 = vadd.f32 %v2189, %v2307
      %v2402 = vadd.f32 %v2190, %v2312
      %v2403 = vadd.f32 %v2191, %v2315
      %v2404 = vadd.f32 %v2192, %v2320
      %v2405 = vadd.f32 %v2193, %v2323
      %v2406 = vadd.f32 %v2194, %v2328
      %v2407 = vadd.f32 %v2195, %v2331
      %v2408 = vadd.f32 %v2196, %v2336
      %v2409 = vadd.f32 %v2197, %v2339
      %v2410 = vadd.f32 %v2198, %v2344
      %v2411 = vadd.f32 %v2199, %v2347
      %v2412 = vadd.f32 %v2200, %v2352
      %v2413 = vadd.f32 %v2201, %v2355
      %v2414 = vadd.f32 %v2202, %v2360
      %v2415 = vadd.f32 %v2203, %v2363
      %v2416 = vadd.f32 %v2204, %v2368
      %v2417 = vadd.f32 %v2205, %v2371
      %v2418 = vadd.f32 %v2206, %v2376
      %v2419 = vadd.f32 %v2207, %v2379
      %v2420 = vadd.f32 %v2208, %v2384
      %v2421 = vadd.f32 %v2209, %v2387
      %v2422 = vrot.slane %v385, 2
      %v2423 = vrot.slane %v386, 2
      %v2424 = vsel %vm1010, %v2422, %v2423
      %v2425 = vrot.slane %v387, 2
      %v2426 = vsel %vm1010, %v2423, %v2425
      %v2429 = vpack.c.bf16 %v2426, %v2424
      %s2430 = scalar_lea.vmem %s1, 16
      %v2431 = vld [vmem:[%s2430] sm:$0x3]
      %v2433 = vsel %vm584, %v2429, 0
      %v2436 = vsel %vm633, %v2431, 0
      %2438 = vmatprep.subr.bf16.mxu0 0
      %2439 = vmatpush1.bf16.msra.mxu0 %v2436
      %2440 = vmatprep.subr.bf16.mxu0 0
      %2441 = vmatpush1.bf16.msra.mxu0 0
      %2442 = vmatprep.subr.bf16.mxu0 0
      %2443 = vmatpush1.bf16.msra.mxu0 0
      %2444 = vmatprep.subr.bf16.mxu0 0
      %2445 = vmatpush1.bf16.msra.mxu0 0
      %2446 = vmatprep.subr.bf16.mxu0 0
      %2447 = vmatpush1.bf16.msra.mxu0 0
      %2448 = vmatprep.subr.bf16.mxu0 0
      %2449 = vmatpush1.bf16.msra.mxu0 0
      %2450 = vmatprep.subr.bf16.mxu0 0
      %2451 = vmatpush1.bf16.msra.mxu0 0
      %2452 = vmatprep.subr.bf16.mxu0 0
      %2453 = vmatpush1.bf16.msra.mxu0 0
      %2454 = vmatprep.subr.bf16.mxu0 0
      %2455 = vmatpush1.bf16.msra.mxu0 0
      %2456 = vmatprep.subr.bf16.mxu0 0
      %2457 = vmatpush1.bf16.msra.mxu0 0
      %2458 = vmatprep.subr.bf16.mxu0 0
      %2459 = vmatpush1.bf16.msra.mxu0 0
      %2460 = vmatprep.subr.bf16.mxu0 0
      %2461 = vmatpush1.bf16.msra.mxu0 0
      %2462 = vmatprep.subr.bf16.mxu0 0
      %2463 = vmatpush1.bf16.msra.mxu0 0
      %2464 = vmatprep.subr.bf16.mxu0 0
      %2465 = vmatpush1.bf16.msra.mxu0 0
      %2466 = vmatprep.subr.bf16.mxu0 0
      %2467 = vmatpush1.bf16.msra.mxu0 0
      %2468 = vmatprep.subr.bf16.mxu0 0
      %2469 = vmatpush1.bf16.msra.mxu0 0
      %2470 = vmatprep.mubr.bf16.mxu0 0
      %2471 = vmatmul.mubr.bf16.gmra.mrb[0].mxu0 %v1148
      %v2472 = vpop.f32.mrb[0].mxu0
      %v2473 = vadd.f32 0.0, %v2472
      %v2474 = vpop.f32.mrb[0].mxu0
      %v2475 = vpop.f32.mrb[0].mxu0
      %v2476 = vadd.f32 0.0, %v2475
      %v2477 = vpop.f32.mrb[0].mxu0
      %2478 = vmatprep.mubr.bf16.mxu0 0
      %2479 = vmatmul.mubr.bf16.gmra.mrb[0].mxu0 %v1151
      %v2480 = vpop.f32.mrb[0].mxu0
      %v2481 = vadd.f32 0.0, %v2480
      %v2482 = vpop.f32.mrb[0].mxu0
      %v2483 = vpop.f32.mrb[0].mxu0
      %v2484 = vadd.f32 0.0, %v2483
      %v2485 = vpop.f32.mrb[0].mxu0
      %2486 = vmatprep.mubr.bf16.mxu0 0
      %2487 = vmatmul.mubr.bf16.gmra.mrb[0].mxu0 %v1154
      %v2488 = vpop.f32.mrb[0].mxu0
      %v2489 = vadd.f32 0.0, %v2488
      %v2490 = vpop.f32.mrb[0].mxu0
      %v2491 = vpop.f32.mrb[0].mxu0
      %v2492 = vadd.f32 0.0, %v2491
      %v2493 = vpop.f32.mrb[0].mxu0
      %2494 = vmatprep.mubr.bf16.mxu0 0
      %2495 = vmatmul.mubr.bf16.gmra.mrb[0].mxu0 %v1157
      %v2496 = vpop.f32.mrb[0].mxu0
      %v2497 = vadd.f32 0.0, %v2496
      %v2498 = vpop.f32.mrb[0].mxu0
      %v2499 = vpop.f32.mrb[0].mxu0
      %v2500 = vadd.f32 0.0, %v2499
      %v2501 = vpop.f32.mrb[0].mxu0
      %2502 = vmatprep.mubr.bf16.mxu0 0
      %2503 = vmatmul.mubr.bf16.gmra.mrb[0].mxu0 %v1160
      %v2504 = vpop.f32.mrb[0].mxu0
      %v2505 = vadd.f32 0.0, %v2504
      %v2506 = vpop.f32.mrb[0].mxu0
      %v2507 = vpop.f32.mrb[0].mxu0
      %v2508 = vadd.f32 0.0, %v2507
      %v2509 = vpop.f32.mrb[0].mxu0
      %2510 = vmatprep.mubr.bf16.mxu0 0
      %2511 = vmatmul.mubr.bf16.gmra.mrb[0].mxu0 %v1163
      %v2512 = vpop.f32.mrb[0].mxu0
      %v2513 = vadd.f32 0.0, %v2512
      %v2514 = vpop.f32.mrb[0].mxu0
      %v2515 = vpop.f32.mrb[0].mxu0
      %v2516 = vadd.f32 0.0, %v2515
      %v2517 = vpop.f32.mrb[0].mxu0
      %2518 = vmatprep.mubr.bf16.mxu0 0
      %2519 = vmatmul.mubr.bf16.gmra.mrb[0].mxu0 %v1166
      %v2520 = vpop.f32.mrb[0].mxu0
      %v2521 = vadd.f32 0.0, %v2520
      %v2522 = vpop.f32.mrb[0].mxu0
      %v2523 = vpop.f32.mrb[0].mxu0
      %v2524 = vadd.f32 0.0, %v2523
      %v2525 = vpop.f32.mrb[0].mxu0
      %2526 = vmatprep.mubr.bf16.mxu0 0
      %2527 = vmatmul.mubr.bf16.gmra.mrb[0].mxu0 %v1169
      %v2528 = vpop.f32.mrb[0].mxu0
      %v2529 = vadd.f32 0.0, %v2528
      %v2530 = vpop.f32.mrb[0].mxu0
      %v2531 = vpop.f32.mrb[0].mxu0
      %v2532 = vadd.f32 0.0, %v2531
      %v2533 = vpop.f32.mrb[0].mxu0
      %2534 = vmatprep.mubr.bf16.mxu0 0
      %2535 = vmatmul.mubr.bf16.gmra.mrb[0].mxu0 %v1172
      %v2536 = vpop.f32.mrb[0].mxu0
      %v2537 = vadd.f32 0.0, %v2536
      %v2538 = vpop.f32.mrb[0].mxu0
      %v2539 = vpop.f32.mrb[0].mxu0
      %v2540 = vadd.f32 0.0, %v2539
      %v2541 = vpop.f32.mrb[0].mxu0
      %2542 = vmatprep.mubr.bf16.mxu0 0
      %2543 = vmatmul.mubr.bf16.gmra.mrb[0].mxu0 %v1175
      %v2544 = vpop.f32.mrb[0].mxu0
      %v2545 = vadd.f32 0.0, %v2544
      %v2546 = vpop.f32.mrb[0].mxu0
      %v2547 = vpop.f32.mrb[0].mxu0
      %v2548 = vadd.f32 0.0, %v2547
      %v2549 = vpop.f32.mrb[0].mxu0
      %2550 = vmatprep.mubr.bf16.mxu0 0
      %2551 = vmatmul.mubr.bf16.gmra.mrb[0].mxu0 %v1178
      %v2552 = vpop.f32.mrb[0].mxu0
      %v2553 = vadd.f32 0.0, %v2552
      %v2554 = vpop.f32.mrb[0].mxu0
      %v2555 = vpop.f32.mrb[0].mxu0
      %v2556 = vadd.f32 0.0, %v2555
      %v2557 = vpop.f32.mrb[0].mxu0
      %2558 = vmatprep.mubr.bf16.mxu0 0
      %2559 = vmatmul.mubr.bf16.gmra.mrb[0].mxu0 %v1181
      %v2560 = vpop.f32.mrb[0].mxu0
      %v2561 = vadd.f32 0.0, %v2560
      %v2562 = vpop.f32.mrb[0].mxu0
      %v2563 = vpop.f32.mrb[0].mxu0
      %v2564 = vadd.f32 0.0, %v2563
      %v2565 = vpop.f32.mrb[0].mxu0
      %2566 = vmatprep.mubr.bf16.mxu0 0
      %2567 = vmatmul.mubr.bf16.gmra.mrb[0].mxu0 %v1184
      %v2568 = vpop.f32.mrb[0].mxu0
      %v2569 = vadd.f32 0.0, %v2568
      %v2570 = vpop.f32.mrb[0].mxu0
      %v2571 = vpop.f32.mrb[0].mxu0
      %v2572 = vadd.f32 0.0, %v2571
      %v2573 = vpop.f32.mrb[0].mxu0
      %2574 = vmatprep.mubr.bf16.mxu0 0
      %2575 = vmatmul.mubr.bf16.gmra.mrb[0].mxu0 %v1187
      %v2576 = vpop.f32.mrb[0].mxu0
      %v2577 = vadd.f32 0.0, %v2576
      %v2578 = vpop.f32.mrb[0].mxu0
      %v2579 = vpop.f32.mrb[0].mxu0
      %v2580 = vadd.f32 0.0, %v2579
      %v2581 = vpop.f32.mrb[0].mxu0
      %2582 = vmatprep.mubr.bf16.mxu0 0
      %2583 = vmatmul.mubr.bf16.gmra.mrb[0].mxu0 %v1810
      %v2584 = vpop.f32.mrb[0].mxu0
      %v2585 = vadd.f32 0.0, %v2584
      %v2586 = vpop.f32.mrb[0].mxu0
      %v2587 = vpop.f32.mrb[0].mxu0
      %v2588 = vadd.f32 0.0, %v2587
      %v2589 = vpop.f32.mrb[0].mxu0
      %2590 = vmatprep.mubr.bf16.mxu0 0
      %2591 = vmatmul.mubr.bf16.gmra.mrb[0].mxu0 %v2433
      %v2592 = vpop.f32.mrb[0].mxu0
      %v2593 = vadd.f32 0.0, %v2592
      %v2594 = vpop.f32.mrb[0].mxu0
      %v2595 = vpop.f32.mrb[0].mxu0
      %v2596 = vadd.f32 0.0, %v2595
      %v2597 = vpop.f32.mrb[0].mxu0
      %2598 = vdwg.mxu0
      %v2599 = vadd.f32 %v2390, %v2473
      %v2600 = vadd.f32 %v2391, %v2476
      %v2601 = vadd.f32 %v2392, %v2481
      %v2602 = vadd.f32 %v2393, %v2484
      %v2603 = vadd.f32 %v2394, %v2489
      %v2604 = vadd.f32 %v2395, %v2492
      %v2605 = vadd.f32 %v2396, %v2497
      %v2606 = vadd.f32 %v2397, %v2500
      %v2607 = vadd.f32 %v2398, %v2505
      %v2608 = vadd.f32 %v2399, %v2508
      %v2609 = vadd.f32 %v2400, %v2513
      %v2610 = vadd.f32 %v2401, %v2516
      %v2611 = vadd.f32 %v2402, %v2521
      %v2612 = vadd.f32 %v2403, %v2524
      %v2613 = vadd.f32 %v2404, %v2529
      %v2614 = vadd.f32 %v2405, %v2532
      %v2615 = vadd.f32 %v2406, %v2537
      %v2616 = vadd.f32 %v2407, %v2540
      %v2617 = vadd.f32 %v2408, %v2545
      %v2618 = vadd.f32 %v2409, %v2548
      %v2619 = vadd.f32 %v2410, %v2553
      %v2620 = vadd.f32 %v2411, %v2556
      %v2621 = vadd.f32 %v2412, %v2561
      %v2622 = vadd.f32 %v2413, %v2564
      %v2623 = vadd.f32 %v2414, %v2569
      %v2624 = vadd.f32 %v2415, %v2572
      %v2625 = vadd.f32 %v2416, %v2577
      %v2626 = vadd.f32 %v2417, %v2580
      %v2627 = vadd.f32 %v2418, %v2585
      %v2628 = vadd.f32 %v2419, %v2588
      %v2629 = vadd.f32 %v2420, %v2593
      %v2630 = vadd.f32 %v2421, %v2596
      %v2631 = vld [vmem:[%s2] sm:$0x1]
      %v2633 = vlaneseq
      %v2634 = vshrl.u32 %v2633, 7
      %v2635 = vsub.s32 0, %v2634
      %v2636 = vrot.slane %v2631, %v2635
      %v2638 = vadd.f32 %v2599, %v2636
      %v2639 = vadd.f32 %v2600, %v2636
      %v2640 = vadd.f32 %v2601, %v2636
      %v2641 = vadd.f32 %v2602, %v2636
      %v2642 = vadd.f32 %v2603, %v2636
      %v2643 = vadd.f32 %v2604, %v2636
      %v2644 = vadd.f32 %v2605, %v2636
      %v2645 = vadd.f32 %v2606, %v2636
      %v2646 = vadd.f32 %v2607, %v2636
      %v2647 = vadd.f32 %v2608, %v2636
      %v2648 = vadd.f32 %v2609, %v2636
      %v2649 = vadd.f32 %v2610, %v2636
      %v2650 = vadd.f32 %v2611, %v2636
      %v2651 = vadd.f32 %v2612, %v2636
      %v2652 = vadd.f32 %v2613, %v2636
      %v2653 = vadd.f32 %v2614, %v2636
      %v2654 = vadd.f32 %v2615, %v2636
      %v2655 = vadd.f32 %v2616, %v2636
      %v2656 = vadd.f32 %v2617, %v2636
      %v2657 = vadd.f32 %v2618, %v2636
      %v2658 = vadd.f32 %v2619, %v2636
      %v2659 = vadd.f32 %v2620, %v2636
      %v2660 = vadd.f32 %v2621, %v2636
      %v2661 = vadd.f32 %v2622, %v2636
      %v2662 = vadd.f32 %v2623, %v2636
      %v2663 = vadd.f32 %v2624, %v2636
      %v2664 = vadd.f32 %v2625, %v2636
      %v2665 = vadd.f32 %v2626, %v2636
      %v2666 = vadd.f32 %v2627, %v2636
      %v2667 = vadd.f32 %v2628, %v2636
      %v2668 = vadd.f32 %v2629, %v2636
      %v2669 = vadd.f32 %v2630, %v2636
      %v2670 = vmax.f32 %v2638, 0.0
      %v2671 = vmax.f32 %v2639, 0.0
      %v2672 = vmax.f32 %v2640, 0.0
      %v2673 = vmax.f32 %v2641, 0.0
      %v2674 = vmax.f32 %v2642, 0.0
      %v2675 = vmax.f32 %v2643, 0.0
      %v2676 = vmax.f32 %v2644, 0.0
      %v2677 = vmax.f32 %v2645, 0.0
      %v2678 = vmax.f32 %v2646, 0.0
      %v2679 = vmax.f32 %v2647, 0.0
      %v2680 = vmax.f32 %v2648, 0.0
      %v2681 = vmax.f32 %v2649, 0.0
      %v2682 = vmax.f32 %v2650, 0.0
      %v2683 = vmax.f32 %v2651, 0.0
      %v2684 = vmax.f32 %v2652, 0.0
      %v2685 = vmax.f32 %v2653, 0.0
      %v2686 = vmax.f32 %v2654, 0.0
      %v2687 = vmax.f32 %v2655, 0.0
      %v2688 = vmax.f32 %v2656, 0.0
      %v2689 = vmax.f32 %v2657, 0.0
      %v2690 = vmax.f32 %v2658, 0.0
      %v2691 = vmax.f32 %v2659, 0.0
      %v2692 = vmax.f32 %v2660, 0.0
      %v2693 = vmax.f32 %v2661, 0.0
      %v2694 = vmax.f32 %v2662, 0.0
      %v2695 = vmax.f32 %v2663, 0.0
      %v2696 = vmax.f32 %v2664, 0.0
      %v2697 = vmax.f32 %v2665, 0.0
      %v2698 = vmax.f32 %v2666, 0.0
      %v2699 = vmax.f32 %v2667, 0.0
      %v2700 = vmax.f32 %v2668, 0.0
      %v2701 = vmax.f32 %v2669, 0.0
      %2702 = vst.msk [vmem:[#allocation2 + $0x1] sm:$0xff] %vm584, %v2672
      %2703 = vst.msk [vmem:[#allocation2 + $0x9] sm:$0xff] %vm584, %v2673
      %2704 = vst.msk [vmem:[#allocation2 + $0x19] sm:$0xff] %vm584, %v2672
      %2705 = vst.msk [vmem:[#allocation2 + $0x21] sm:$0xff] %vm584, %v2673
      %2706 = vst.msk [vmem:[#allocation2 + $0x31] sm:$0xff] %vm584, %v2676
      %2707 = vst.msk [vmem:[#allocation2 + $0x39] sm:$0xff] %vm584, %v2677
      %2708 = vst.msk [vmem:[#allocation2 + $0x49] sm:$0xff] %vm584, %v2680
      %2709 = vst.msk [vmem:[#allocation2 + $0x51] sm:$0xff] %vm584, %v2681
      %2710 = vst.msk [vmem:[#allocation2 + $0x61] sm:$0xff] %vm584, %v2684
      %2711 = vst.msk [vmem:[#allocation2 + $0x69] sm:$0xff] %vm584, %v2685
      %2712 = vst.msk [vmem:[#allocation2 + $0x79] sm:$0xff] %vm584, %v2688
      %2713 = vst.msk [vmem:[#allocation2 + $0x81] sm:$0xff] %vm584, %v2689
      %2714 = vst.msk [vmem:[#allocation2 + $0x91] sm:$0xff] %vm584, %v2692
      %2715 = vst.msk [vmem:[#allocation2 + $0x99] sm:$0xff] %vm584, %v2693
      %2716 = vst.msk [vmem:[#allocation2 + $0xa9] sm:$0xff] %vm584, %v2696
      %2717 = vst.msk [vmem:[#allocation2 + $0xb1] sm:$0xff] %vm584, %v2697
      %2718 = vst.msk [vmem:[#allocation2 + $0xc1] sm:$0xff] %vm584, %v2700
      %2719 = vst.msk [vmem:[#allocation2 + $0xc9] sm:$0xff] %vm584, %v2701
      %s2720 = scalar_lea.vmem [#allocation2], 216
      %2721 = vst.msk [vmem:[%s2720 + $0x1] sm:$0xff] %vm584, %v2670
      %2722 = vst.msk [vmem:[%s2720 + $0x9] sm:$0xff] %vm584, %v2671
      %2723 = vst.msk [vmem:[%s2720 + $0x19] sm:$0xff] %vm584, %v2674
      %2724 = vst.msk [vmem:[%s2720 + $0x21] sm:$0xff] %vm584, %v2675
      %2725 = vst.msk [vmem:[%s2720 + $0x31] sm:$0xff] %vm584, %v2678
      %2726 = vst.msk [vmem:[%s2720 + $0x39] sm:$0xff] %vm584, %v2679
      %2727 = vst.msk [vmem:[%s2720 + $0x49] sm:$0xff] %vm584, %v2682
      %2728 = vst.msk [vmem:[%s2720 + $0x51] sm:$0xff] %vm584, %v2683
      %2729 = vst.msk [vmem:[%s2720 + $0x61] sm:$0xff] %vm584, %v2686
      %2730 = vst.msk [vmem:[%s2720 + $0x69] sm:$0xff] %vm584, %v2687
      %2731 = vst.msk [vmem:[%s2720 + $0x79] sm:$0xff] %vm584, %v2690
      %2732 = vst.msk [vmem:[%s2720 + $0x81] sm:$0xff] %vm584, %v2691
      %2733 = vst.msk [vmem:[%s2720 + $0x91] sm:$0xff] %vm584, %v2694
      %2734 = vst.msk [vmem:[%s2720 + $0x99] sm:$0xff] %vm584, %v2695
      %2735 = vst.msk [vmem:[%s2720 + $0xa9] sm:$0xff] %vm584, %v2698
      %2736 = vst.msk [vmem:[%s2720 + $0xb1] sm:$0xff] %vm584, %v2699
      %2737 = vst.msk [vmem:[%s2720 + $0xc1] sm:$0xff] %vm584, %v2698
      %2738 = vst.msk [vmem:[%s2720 + $0xc9] sm:$0xff] %vm584, %v2699
      %vm2739 = vcmask 25601
      %2740 = vst.msk [vmem:[#allocation2 - $0x1] sm:$0x2] %vm2739, %v2672
      %2741 = vst.msk [vmem:[#allocation2 + $0x17] sm:$0x2] %vm2739, %v2672
      %2742 = vst.msk [vmem:[#allocation2 + $0x2f] sm:$0x2] %vm2739, %v2676
      %2743 = vst.msk [vmem:[#allocation2 + $0x47] sm:$0x2] %vm2739, %v2680
      %2744 = vst.msk [vmem:[#allocation2 + $0x5f] sm:$0x2] %vm2739, %v2684
      %2745 = vst.msk [vmem:[#allocation2 + $0x77] sm:$0x2] %vm2739, %v2688
      %2746 = vst.msk [vmem:[#allocation2 + $0x8f] sm:$0x2] %vm2739, %v2692
      %2747 = vst.msk [vmem:[#allocation2 + $0xa7] sm:$0x2] %vm2739, %v2696
      %2748 = vst.msk [vmem:[#allocation2 + $0xbf] sm:$0x2] %vm2739, %v2700
      %2749 = vst.msk [vmem:[%s2720 - $0x1] sm:$0x2] %vm2739, %v2670
      %2750 = vst.msk [vmem:[%s2720 + $0x17] sm:$0x2] %vm2739, %v2674
      %2751 = vst.msk [vmem:[%s2720 + $0x2f] sm:$0x2] %vm2739, %v2678
      %2752 = vst.msk [vmem:[%s2720 + $0x47] sm:$0x2] %vm2739, %v2682
      %2753 = vst.msk [vmem:[%s2720 + $0x5f] sm:$0x2] %vm2739, %v2686
      %2754 = vst.msk [vmem:[%s2720 + $0x77] sm:$0x2] %vm2739, %v2690
      %2755 = vst.msk [vmem:[%s2720 + $0x8f] sm:$0x2] %vm2739, %v2694
      %2756 = vst.msk [vmem:[%s2720 + $0xa7] sm:$0x2] %vm2739, %v2698
      %2757 = vst.msk [vmem:[%s2720 + $0xbf] sm:$0x2] %vm2739, %v2698
      %vm2758 = vcmask 30726
      %2759 = vst.msk [vmem:[#allocation2 + $0xb] sm:$0x40] %vm2758, %v2673
      %2760 = vst.msk [vmem:[#allocation2 + $0x23] sm:$0x40] %vm2758, %v2673
      %2761 = vst.msk [vmem:[#allocation2 + $0x3b] sm:$0x40] %vm2758, %v2677
      %2762 = vst.msk [vmem:[#allocation2 + $0x53] sm:$0x40] %vm2758, %v2681
      %2763 = vst.msk [vmem:[#allocation2 + $0x6b] sm:$0x40] %vm2758, %v2685
      %2764 = vst.msk [vmem:[#allocation2 + $0x83] sm:$0x40] %vm2758, %v2689
      %2765 = vst.msk [vmem:[#allocation2 + $0x9b] sm:$0x40] %vm2758, %v2693
      %2766 = vst.msk [vmem:[#allocation2 + $0xb3] sm:$0x40] %vm2758, %v2697
      %2767 = vst.msk [vmem:[#allocation2 + $0xcb] sm:$0x40] %vm2758, %v2701
      %2768 = vst.msk [vmem:[%s2720 + $0xb] sm:$0x40] %vm2758, %v2671
      %2769 = vst.msk [vmem:[%s2720 + $0x23] sm:$0x40] %vm2758, %v2675
      %2770 = vst.msk [vmem:[%s2720 + $0x3b] sm:$0x40] %vm2758, %v2679
      %2771 = vst.msk [vmem:[%s2720 + $0x53] sm:$0x40] %vm2758, %v2683
      %2772 = vst.msk [vmem:[%s2720 + $0x6b] sm:$0x40] %vm2758, %v2687
      %2773 = vst.msk [vmem:[%s2720 + $0x83] sm:$0x40] %vm2758, %v2691
      %2774 = vst.msk [vmem:[%s2720 + $0x9b] sm:$0x40] %vm2758, %v2695
      %2775 = vst.msk [vmem:[%s2720 + $0xb3] sm:$0x40] %vm2758, %v2699
      %2776 = vst.msk [vmem:[%s2720 + $0xcb] sm:$0x40] %vm2758, %v2699
      %v2777 = vld [vmem:[#allocation2] ss:$2 sm:$0xff]
      %s2778 = scalar_lea.vmem [#allocation2], 24
      %v2779 = vld [vmem:[%s2778] ss:$2 sm:$0xff]
      %s2780 = scalar_lea.vmem [#allocation2], 48
      %v2781 = vld [vmem:[%s2780] ss:$2 sm:$0xff]
      %s2782 = scalar_lea.vmem [#allocation2], 72
      %v2783 = vld [vmem:[%s2782] ss:$2 sm:$0xff]
      %s2784 = scalar_lea.vmem [#allocation2], 96
      %v2785 = vld [vmem:[%s2784] ss:$2 sm:$0xff]
      %s2786 = scalar_lea.vmem [#allocation2], 120
      %v2787 = vld [vmem:[%s2786] ss:$2 sm:$0xff]
      %s2788 = scalar_lea.vmem [#allocation2], 144
      %v2789 = vld [vmem:[%s2788] ss:$2 sm:$0xff]
      %s2790 = scalar_lea.vmem [#allocation2], 168
      %v2791 = vld [vmem:[%s2790] ss:$2 sm:$0xff]
      %s2792 = scalar_lea.vmem [#allocation2], 192
      %v2793 = vld [vmem:[%s2792] ss:$2 sm:$0xff]
      %v2794 = vpack.c.bf16 %v2779, %v2777
      %v2795 = vpack.c.bf16 %v2783, %v2781
      %v2796 = vpack.c.bf16 %v2787, %v2785
      %v2797 = vpack.c.bf16 %v2791, %v2789
      %v2798 = vld [vmem:[%s3] sm:$0x3]
      %v2799 = vpack.c.bf16 %v2781, %v2779
      %v2800 = vpack.c.bf16 %v2785, %v2783
      %v2801 = vpack.c.bf16 %v2789, %v2787
      %v2802 = vpack.c.bf16 %v2793, %v2791
      %s2803 = scalar_lea.vmem %s3, 16
      %v2804 = vld [vmem:[%s2803] sm:$0x3]
      %v2806 = vsel %vm584, %v2799, 0
      %v2809 = vsel %vm584, %v2800, 0
      %v2812 = vsel %vm584, %v2801, 0
      %v2815 = vsel %vm584, %v2802, 0
      %v2818 = vsel %vm633, %v2804, 0
      %2820 = vmatprep.subr.bf16.mxu0 0
      %2821 = vmatpush1.bf16.msra.mxu0 %v2818
      %2822 = vmatprep.subr.bf16.mxu0 0
      %2823 = vmatpush1.bf16.msra.mxu0 0
      %2824 = vmatprep.subr.bf16.mxu0 0
      %2825 = vmatpush1.bf16.msra.mxu0 0
      %2826 = vmatprep.subr.bf16.mxu0 0
      %2827 = vmatpush1.bf16.msra.mxu0 0
      %2828 = vmatprep.subr.bf16.mxu0 0
      %2829 = vmatpush1.bf16.msra.mxu0 0
      %2830 = vmatprep.subr.bf16.mxu0 0
      %2831 = vmatpush1.bf16.msra.mxu0 0
      %2832 = vmatprep.subr.bf16.mxu0 0
      %2833 = vmatpush1.bf16.msra.mxu0 0
      %2834 = vmatprep.subr.bf16.mxu0 0
      %2835 = vmatpush1.bf16.msra.mxu0 0
      %2836 = vmatprep.subr.bf16.mxu0 0
      %2837 = vmatpush1.bf16.msra.mxu0 0
      %2838 = vmatprep.subr.bf16.mxu0 0
      %2839 = vmatpush1.bf16.msra.mxu0 0
      %2840 = vmatprep.subr.bf16.mxu0 0
      %2841 = vmatpush1.bf16.msra.mxu0 0
      %2842 = vmatprep.subr.bf16.mxu0 0
      %2843 = vmatpush1.bf16.msra.mxu0 0
      %2844 = vmatprep.subr.bf16.mxu0 0
      %2845 = vmatpush1.bf16.msra.mxu0 0
      %2846 = vmatprep.subr.bf16.mxu0 0
      %2847 = vmatpush1.bf16.msra.mxu0 0
      %2848 = vmatprep.subr.bf16.mxu0 0
      %2849 = vmatpush1.bf16.msra.mxu0 0
      %2850 = vmatprep.subr.bf16.mxu0 0
      %2851 = vmatpush1.bf16.msra.mxu0 0
      %2852 = vmatprep.mubr.bf16.mxu0 0
      %2853 = vmatmul.mubr.bf16.gmra.mrb[0].mxu0 %v2806
      %v2854 = vpop.f32.mrb[0].mxu0
      %v2855 = vadd.f32 0.0, %v2854
      %v2856 = vpop.f32.mrb[0].mxu0
      %v2857 = vpop.f32.mrb[0].mxu0
      %v2858 = vadd.f32 0.0, %v2857
      %v2859 = vpop.f32.mrb[0].mxu0
      %2860 = vmatprep.mubr.bf16.mxu0 0
      %2861 = vmatmul.mubr.bf16.gmra.mrb[0].mxu0 %v2809
      %v2862 = vpop.f32.mrb[0].mxu0
      %v2863 = vadd.f32 0.0, %v2862
      %v2864 = vpop.f32.mrb[0].mxu0
      %v2865 = vpop.f32.mrb[0].mxu0
      %v2866 = vadd.f32 0.0, %v2865
      %v2867 = vpop.f32.mrb[0].mxu0
      %2868 = vmatprep.mubr.bf16.mxu0 0
      %2869 = vmatmul.mubr.bf16.gmra.mrb[0].mxu0 %v2812
      %v2870 = vpop.f32.mrb[0].mxu0
      %v2871 = vadd.f32 0.0, %v2870
      %v2872 = vpop.f32.mrb[0].mxu0
      %v2873 = vpop.f32.mrb[0].mxu0
      %v2874 = vadd.f32 0.0, %v2873
      %v2875 = vpop.f32.mrb[0].mxu0
      %2876 = vmatprep.mubr.bf16.mxu0 0
      %2877 = vmatmul.mubr.bf16.gmra.mrb[0].mxu0 %v2815
      %v2878 = vpop.f32.mrb[0].mxu0
      %v2879 = vadd.f32 0.0, %v2878
      %v2880 = vpop.f32.mrb[0].mxu0
      %v2881 = vpop.f32.mrb[0].mxu0
      %v2882 = vadd.f32 0.0, %v2881
      %v2883 = vpop.f32.mrb[0].mxu0
      %2884 = vdwg.mxu0
      %v2886 = vsel %vm584, %v2794, 0
      %v2889 = vsel %vm584, %v2795, 0
      %v2892 = vsel %vm584, %v2796, 0
      %v2895 = vsel %vm584, %v2797, 0
      %v2898 = vsel %vm633, %v2798, 0
      %2900 = vmatprep.subr.bf16.mxu0 0
      %2901 = vmatpush1.bf16.msra.mxu0 %v2898
      %2902 = vmatprep.subr.bf16.mxu0 0
      %2903 = vmatpush1.bf16.msra.mxu0 0
      %2904 = vmatprep.subr.bf16.mxu0 0
      %2905 = vmatpush1.bf16.msra.mxu0 0
      %2906 = vmatprep.subr.bf16.mxu0 0
      %2907 = vmatpush1.bf16.msra.mxu0 0
      %2908 = vmatprep.subr.bf16.mxu0 0
      %2909 = vmatpush1.bf16.msra.mxu0 0
      %2910 = vmatprep.subr.bf16.mxu0 0
      %2911 = vmatpush1.bf16.msra.mxu0 0
      %2912 = vmatprep.subr.bf16.mxu0 0
      %2913 = vmatpush1.bf16.msra.mxu0 0
      %2914 = vmatprep.subr.bf16.mxu0 0
      %2915 = vmatpush1.bf16.msra.mxu0 0
      %2916 = vmatprep.subr.bf16.mxu0 0
      %2917 = vmatpush1.bf16.msra.mxu0 0
      %2918 = vmatprep.subr.bf16.mxu0 0
      %2919 = vmatpush1.bf16.msra.mxu0 0
      %2920 = vmatprep.subr.bf16.mxu0 0
      %2921 = vmatpush1.bf16.msra.mxu0 0
      %2922 = vmatprep.subr.bf16.mxu0 0
      %2923 = vmatpush1.bf16.msra.mxu0 0
      %2924 = vmatprep.subr.bf16.mxu0 0
      %2925 = vmatpush1.bf16.msra.mxu0 0
      %2926 = vmatprep.subr.bf16.mxu0 0
      %2927 = vmatpush1.bf16.msra.mxu0 0
      %2928 = vmatprep.subr.bf16.mxu0 0
      %2929 = vmatpush1.bf16.msra.mxu0 0
      %2930 = vmatprep.subr.bf16.mxu0 0
      %2931 = vmatpush1.bf16.msra.mxu0 0
      %2932 = vmatprep.mubr.bf16.mxu0 0
      %2933 = vmatmul.mubr.bf16.gmra.mrb[0].mxu0 %v2886
      %v2934 = vpop.f32.mrb[0].mxu0
      %v2935 = vadd.f32 %v2855, %v2934
      %v2936 = vpop.f32.mrb[0].mxu0
      %v2937 = vpop.f32.mrb[0].mxu0
      %v2938 = vadd.f32 %v2858, %v2937
      %v2939 = vpop.f32.mrb[0].mxu0
      %2940 = vmatprep.mubr.bf16.mxu0 0
      %2941 = vmatmul.mubr.bf16.gmra.mrb[0].mxu0 %v2889
      %v2942 = vpop.f32.mrb[0].mxu0
      %v2943 = vadd.f32 %v2863, %v2942
      %v2944 = vpop.f32.mrb[0].mxu0
      %v2945 = vpop.f32.mrb[0].mxu0
      %v2946 = vadd.f32 %v2866, %v2945
      %v2947 = vpop.f32.mrb[0].mxu0
      %2948 = vmatprep.mubr.bf16.mxu0 0
      %2949 = vmatmul.mubr.bf16.gmra.mrb[0].mxu0 %v2892
      %v2950 = vpop.f32.mrb[0].mxu0
      %v2951 = vadd.f32 %v2871, %v2950
      %v2952 = vpop.f32.mrb[0].mxu0
      %v2953 = vpop.f32.mrb[0].mxu0
      %v2954 = vadd.f32 %v2874, %v2953
      %v2955 = vpop.f32.mrb[0].mxu0
      %2956 = vmatprep.mubr.bf16.mxu0 0
      %2957 = vmatmul.mubr.bf16.gmra.mrb[0].mxu0 %v2895
      %v2958 = vpop.f32.mrb[0].mxu0
      %v2959 = vadd.f32 %v2879, %v2958
      %v2960 = vpop.f32.mrb[0].mxu0
      %v2961 = vpop.f32.mrb[0].mxu0
      %v2962 = vadd.f32 %v2882, %v2961
      %v2963 = vpop.f32.mrb[0].mxu0
      %2964 = vdwg.mxu0
      %s2965 = scalar_lea.vmem [#allocation2], 1
      %v2966 = vld [vmem:[%s2965] ss:$2 sm:$0xff]
      %s2967 = scalar_lea.vmem [#allocation2], 25
      %v2968 = vld [vmem:[%s2967] ss:$2 sm:$0xff]
      %s2969 = scalar_lea.vmem [#allocation2], 49
      %v2970 = vld [vmem:[%s2969] ss:$2 sm:$0xff]
      %s2971 = scalar_lea.vmem [#allocation2], 73
      %v2972 = vld [vmem:[%s2971] ss:$2 sm:$0xff]
      %s2973 = scalar_lea.vmem [#allocation2], 97
      %v2974 = vld [vmem:[%s2973] ss:$2 sm:$0xff]
      %s2975 = scalar_lea.vmem [#allocation2], 121
      %v2976 = vld [vmem:[%s2975] ss:$2 sm:$0xff]
      %s2977 = scalar_lea.vmem [#allocation2], 145
      %v2978 = vld [vmem:[%s2977] ss:$2 sm:$0xff]
      %s2979 = scalar_lea.vmem [#allocation2], 169
      %v2980 = vld [vmem:[%s2979] ss:$2 sm:$0xff]
      %s2981 = scalar_lea.vmem [#allocation2], 193
      %v2982 = vld [vmem:[%s2981] ss:$2 sm:$0xff]
      %v2983 = vpack.c.bf16 %v2968, %v2966
      %v2984 = vpack.c.bf16 %v2972, %v2970
      %v2985 = vpack.c.bf16 %v2976, %v2974
      %v2986 = vpack.c.bf16 %v2980, %v2978
      %s2987 = scalar_lea.vmem %s3, 2
      %v2988 = vld [vmem:[%s2987] sm:$0x3]
      %v2990 = vsel %vm584, %v2983, 0
      %v2993 = vsel %vm584, %v2984, 0
      %v2996 = vsel %vm584, %v2985, 0
      %v2999 = vsel %vm584, %v2986, 0
      %v3002 = vsel %vm633, %v2988, 0
      %3004 = vmatprep.subr.bf16.mxu0 0
      %3005 = vmatpush1.bf16.msra.mxu0 %v3002
      %3006 = vmatprep.subr.bf16.mxu0 0
      %3007 = vmatpush1.bf16.msra.mxu0 0
      %3008 = vmatprep.subr.bf16.mxu0 0
      %3009 = vmatpush1.bf16.msra.mxu0 0
      %3010 = vmatprep.subr.bf16.mxu0 0
      %3011 = vmatpush1.bf16.msra.mxu0 0
      %3012 = vmatprep.subr.bf16.mxu0 0
      %3013 = vmatpush1.bf16.msra.mxu0 0
      %3014 = vmatprep.subr.bf16.mxu0 0
      %3015 = vmatpush1.bf16.msra.mxu0 0
      %3016 = vmatprep.subr.bf16.mxu0 0
      %3017 = vmatpush1.bf16.msra.mxu0 0
      %3018 = vmatprep.subr.bf16.mxu0 0
      %3019 = vmatpush1.bf16.msra.mxu0 0
      %3020 = vmatprep.subr.bf16.mxu0 0
      %3021 = vmatpush1.bf16.msra.mxu0 0
      %3022 = vmatprep.subr.bf16.mxu0 0
      %3023 = vmatpush1.bf16.msra.mxu0 0
      %3024 = vmatprep.subr.bf16.mxu0 0
      %3025 = vmatpush1.bf16.msra.mxu0 0
      %3026 = vmatprep.subr.bf16.mxu0 0
      %3027 = vmatpush1.bf16.msra.mxu0 0
      %3028 = vmatprep.subr.bf16.mxu0 0
      %3029 = vmatpush1.bf16.msra.mxu0 0
      %3030 = vmatprep.subr.bf16.mxu0 0
      %3031 = vmatpush1.bf16.msra.mxu0 0
      %3032 = vmatprep.subr.bf16.mxu0 0
      %3033 = vmatpush1.bf16.msra.mxu0 0
      %3034 = vmatprep.subr.bf16.mxu0 0
      %3035 = vmatpush1.bf16.msra.mxu0 0
      %3036 = vmatprep.mubr.bf16.mxu0 0
      %3037 = vmatmul.mubr.bf16.gmra.mrb[0].mxu0 %v2990
      %v3038 = vpop.f32.mrb[0].mxu0
      %v3039 = vadd.f32 0.0, %v3038
      %v3040 = vpop.f32.mrb[0].mxu0
      %v3041 = vpop.f32.mrb[0].mxu0
      %v3042 = vadd.f32 0.0, %v3041
      %v3043 = vpop.f32.mrb[0].mxu0
      %3044 = vmatprep.mubr.bf16.mxu0 0
      %3045 = vmatmul.mubr.bf16.gmra.mrb[0].mxu0 %v2993
      %v3046 = vpop.f32.mrb[0].mxu0
      %v3047 = vadd.f32 0.0, %v3046
      %v3048 = vpop.f32.mrb[0].mxu0
      %v3049 = vpop.f32.mrb[0].mxu0
      %v3050 = vadd.f32 0.0, %v3049
      %v3051 = vpop.f32.mrb[0].mxu0
      %3052 = vmatprep.mubr.bf16.mxu0 0
      %3053 = vmatmul.mubr.bf16.gmra.mrb[0].mxu0 %v2996
      %v3054 = vpop.f32.mrb[0].mxu0
      %v3055 = vadd.f32 0.0, %v3054
      %v3056 = vpop.f32.mrb[0].mxu0
      %v3057 = vpop.f32.mrb[0].mxu0
      %v3058 = vadd.f32 0.0, %v3057
      %v3059 = vpop.f32.mrb[0].mxu0
      %3060 = vmatprep.mubr.bf16.mxu0 0
      %3061 = vmatmul.mubr.bf16.gmra.mrb[0].mxu0 %v2999
      %v3062 = vpop.f32.mrb[0].mxu0
      %v3063 = vadd.f32 0.0, %v3062
      %v3064 = vpop.f32.mrb[0].mxu0
      %v3065 = vpop.f32.mrb[0].mxu0
      %v3066 = vadd.f32 0.0, %v3065
      %v3067 = vpop.f32.mrb[0].mxu0
      %3068 = vdwg.mxu0
      %v3069 = vadd.f32 %v2935, %v3039
      %v3070 = vadd.f32 %v2938, %v3042
      %v3071 = vadd.f32 %v2943, %v3047
      %v3072 = vadd.f32 %v2946, %v3050
      %v3073 = vadd.f32 %v2951, %v3055
      %v3074 = vadd.f32 %v2954, %v3058
      %v3075 = vadd.f32 %v2959, %v3063
      %v3076 = vadd.f32 %v2962, %v3066
      %v3077 = vpack.c.bf16 %v2970, %v2968
      %v3078 = vpack.c.bf16 %v2974, %v2972
      %v3079 = vpack.c.bf16 %v2978, %v2976
      %v3080 = vpack.c.bf16 %v2982, %v2980
      %s3081 = scalar_lea.vmem %s3, 18
      %v3082 = vld [vmem:[%s3081] sm:$0x3]
      %v3084 = vsel %vm584, %v3077, 0
      %v3087 = vsel %vm584, %v3078, 0
      %v3090 = vsel %vm584, %v3079, 0
      %v3093 = vsel %vm584, %v3080, 0
      %v3096 = vsel %vm633, %v3082, 0
      %3098 = vmatprep.subr.bf16.mxu0 0
      %3099 = vmatpush1.bf16.msra.mxu0 %v3096
      %3100 = vmatprep.subr.bf16.mxu0 0
      %3101 = vmatpush1.bf16.msra.mxu0 0
      %3102 = vmatprep.subr.bf16.mxu0 0
      %3103 = vmatpush1.bf16.msra.mxu0 0
      %3104 = vmatprep.subr.bf16.mxu0 0
      %3105 = vmatpush1.bf16.msra.mxu0 0
      %3106 = vmatprep.subr.bf16.mxu0 0
      %3107 = vmatpush1.bf16.msra.mxu0 0
      %3108 = vmatprep.subr.bf16.mxu0 0
      %3109 = vmatpush1.bf16.msra.mxu0 0
      %3110 = vmatprep.subr.bf16.mxu0 0
      %3111 = vmatpush1.bf16.msra.mxu0 0
      %3112 = vmatprep.subr.bf16.mxu0 0
      %3113 = vmatpush1.bf16.msra.mxu0 0
      %3114 = vmatprep.subr.bf16.mxu0 0
      %3115 = vmatpush1.bf16.msra.mxu0 0
      %3116 = vmatprep.subr.bf16.mxu0 0
      %3117 = vmatpush1.bf16.msra.mxu0 0
      %3118 = vmatprep.subr.bf16.mxu0 0
      %3119 = vmatpush1.bf16.msra.mxu0 0
      %3120 = vmatprep.subr.bf16.mxu0 0
      %3121 = vmatpush1.bf16.msra.mxu0 0
      %3122 = vmatprep.subr.bf16.mxu0 0
      %3123 = vmatpush1.bf16.msra.mxu0 0
      %3124 = vmatprep.subr.bf16.mxu0 0
      %3125 = vmatpush1.bf16.msra.mxu0 0
      %3126 = vmatprep.subr.bf16.mxu0 0
      %3127 = vmatpush1.bf16.msra.mxu0 0
      %3128 = vmatprep.subr.bf16.mxu0 0
      %3129 = vmatpush1.bf16.msra.mxu0 0
      %3130 = vmatprep.mubr.bf16.mxu0 0
      %3131 = vmatmul.mubr.bf16.gmra.mrb[0].mxu0 %v3084
      %v3132 = vpop.f32.mrb[0].mxu0
      %v3133 = vadd.f32 0.0, %v3132
      %v3134 = vpop.f32.mrb[0].mxu0
      %v3135 = vpop.f32.mrb[0].mxu0
      %v3136 = vadd.f32 0.0, %v3135
      %v3137 = vpop.f32.mrb[0].mxu0
      %3138 = vmatprep.mubr.bf16.mxu0 0
      %3139 = vmatmul.mubr.bf16.gmra.mrb[0].mxu0 %v3087
      %v3140 = vpop.f32.mrb[0].mxu0
      %v3141 = vadd.f32 0.0, %v3140
      %v3142 = vpop.f32.mrb[0].mxu0
      %v3143 = vpop.f32.mrb[0].mxu0
      %v3144 = vadd.f32 0.0, %v3143
      %v3145 = vpop.f32.mrb[0].mxu0
      %3146 = vmatprep.mubr.bf16.mxu0 0
      %3147 = vmatmul.mubr.bf16.gmra.mrb[0].mxu0 %v3090
      %v3148 = vpop.f32.mrb[0].mxu0
      %v3149 = vadd.f32 0.0, %v3148
      %v3150 = vpop.f32.mrb[0].mxu0
      %v3151 = vpop.f32.mrb[0].mxu0
      %v3152 = vadd.f32 0.0, %v3151
      %v3153 = vpop.f32.mrb[0].mxu0
      %3154 = vmatprep.mubr.bf16.mxu0 0
      %3155 = vmatmul.mubr.bf16.gmra.mrb[0].mxu0 %v3093
      %v3156 = vpop.f32.mrb[0].mxu0
      %v3157 = vadd.f32 0.0, %v3156
      %v3158 = vpop.f32.mrb[0].mxu0
      %v3159 = vpop.f32.mrb[0].mxu0
      %v3160 = vadd.f32 0.0, %v3159
      %v3161 = vpop.f32.mrb[0].mxu0
      %3162 = vdwg.mxu0
      %v3163 = vadd.f32 %v3069, %v3133
      %v3164 = vadd.f32 %v3070, %v3136
      %v3165 = vadd.f32 %v3071, %v3141
      %v3166 = vadd.f32 %v3072, %v3144
      %v3167 = vadd.f32 %v3073, %v3149
      %v3168 = vadd.f32 %v3074, %v3152
      %v3169 = vadd.f32 %v3075, %v3157
      %v3170 = vadd.f32 %v3076, %v3160
      %s3171 = scalar_lea.vmem [#allocation2], 2
      %v3172 = vld [vmem:[%s3171] ss:$2 sm:$0xff]
      %s3173 = scalar_lea.vmem [#allocation2], 26
      %v3174 = vld [vmem:[%s3173] ss:$2 sm:$0xff]
      %s3175 = scalar_lea.vmem [#allocation2], 50
      %v3176 = vld [vmem:[%s3175] ss:$2 sm:$0xff]
      %s3177 = scalar_lea.vmem [#allocation2], 74
      %v3178 = vld [vmem:[%s3177] ss:$2 sm:$0xff]
      %s3179 = scalar_lea.vmem [#allocation2], 98
      %v3180 = vld [vmem:[%s3179] ss:$2 sm:$0xff]
      %s3181 = scalar_lea.vmem [#allocation2], 122
      %v3182 = vld [vmem:[%s3181] ss:$2 sm:$0xff]
      %s3183 = scalar_lea.vmem [#allocation2], 146
      %v3184 = vld [vmem:[%s3183] ss:$2 sm:$0xff]
      %s3185 = scalar_lea.vmem [#allocation2], 170
      %v3186 = vld [vmem:[%s3185] ss:$2 sm:$0xff]
      %s3187 = scalar_lea.vmem [#allocation2], 194
      %v3188 = vld [vmem:[%s3187] ss:$2 sm:$0xff]
      %v3189 = vpack.c.bf16 %v3174, %v3172
      %v3190 = vpack.c.bf16 %v3178, %v3176
      %v3191 = vpack.c.bf16 %v3182, %v3180
      %v3192 = vpack.c.bf16 %v3186, %v3184
      %s3193 = scalar_lea.vmem %s3, 4
      %v3194 = vld [vmem:[%s3193] sm:$0x3]
      %v3196 = vsel %vm584, %v3189, 0
      %v3199 = vsel %vm584, %v3190, 0
      %v3202 = vsel %vm584, %v3191, 0
      %v3205 = vsel %vm584, %v3192, 0
      %v3208 = vsel %vm633, %v3194, 0
      %3210 = vmatprep.subr.bf16.mxu0 0
      %3211 = vmatpush1.bf16.msra.mxu0 %v3208
      %3212 = vmatprep.subr.bf16.mxu0 0
      %3213 = vmatpush1.bf16.msra.mxu0 0
      %3214 = vmatprep.subr.bf16.mxu0 0
      %3215 = vmatpush1.bf16.msra.mxu0 0
      %3216 = vmatprep.subr.bf16.mxu0 0
      %3217 = vmatpush1.bf16.msra.mxu0 0
      %3218 = vmatprep.subr.bf16.mxu0 0
      %3219 = vmatpush1.bf16.msra.mxu0 0
      %3220 = vmatprep.subr.bf16.mxu0 0
      %3221 = vmatpush1.bf16.msra.mxu0 0
      %3222 = vmatprep.subr.bf16.mxu0 0
      %3223 = vmatpush1.bf16.msra.mxu0 0
      %3224 = vmatprep.subr.bf16.mxu0 0
      %3225 = vmatpush1.bf16.msra.mxu0 0
      %3226 = vmatprep.subr.bf16.mxu0 0
      %3227 = vmatpush1.bf16.msra.mxu0 0
      %3228 = vmatprep.subr.bf16.mxu0 0
      %3229 = vmatpush1.bf16.msra.mxu0 0
      %3230 = vmatprep.subr.bf16.mxu0 0
      %3231 = vmatpush1.bf16.msra.mxu0 0
      %3232 = vmatprep.subr.bf16.mxu0 0
      %3233 = vmatpush1.bf16.msra.mxu0 0
      %3234 = vmatprep.subr.bf16.mxu0 0
      %3235 = vmatpush1.bf16.msra.mxu0 0
      %3236 = vmatprep.subr.bf16.mxu0 0
      %3237 = vmatpush1.bf16.msra.mxu0 0
      %3238 = vmatprep.subr.bf16.mxu0 0
      %3239 = vmatpush1.bf16.msra.mxu0 0
      %3240 = vmatprep.subr.bf16.mxu0 0
      %3241 = vmatpush1.bf16.msra.mxu0 0
      %3242 = vmatprep.mubr.bf16.mxu0 0
      %3243 = vmatmul.mubr.bf16.gmra.mrb[0].mxu0 %v3196
      %v3244 = vpop.f32.mrb[0].mxu0
      %v3245 = vadd.f32 0.0, %v3244
      %v3246 = vpop.f32.mrb[0].mxu0
      %v3247 = vpop.f32.mrb[0].mxu0
      %v3248 = vadd.f32 0.0, %v3247
      %v3249 = vpop.f32.mrb[0].mxu0
      %3250 = vmatprep.mubr.bf16.mxu0 0
      %3251 = vmatmul.mubr.bf16.gmra.mrb[0].mxu0 %v3199
      %v3252 = vpop.f32.mrb[0].mxu0
      %v3253 = vadd.f32 0.0, %v3252
      %v3254 = vpop.f32.mrb[0].mxu0
      %v3255 = vpop.f32.mrb[0].mxu0
      %v3256 = vadd.f32 0.0, %v3255
      %v3257 = vpop.f32.mrb[0].mxu0
      %3258 = vmatprep.mubr.bf16.mxu0 0
      %3259 = vmatmul.mubr.bf16.gmra.mrb[0].mxu0 %v3202
      %v3260 = vpop.f32.mrb[0].mxu0
      %v3261 = vadd.f32 0.0, %v3260
      %v3262 = vpop.f32.mrb[0].mxu0
      %v3263 = vpop.f32.mrb[0].mxu0
      %v3264 = vadd.f32 0.0, %v3263
      %v3265 = vpop.f32.mrb[0].mxu0
      %3266 = vmatprep.mubr.bf16.mxu0 0
      %3267 = vmatmul.mubr.bf16.gmra.mrb[0].mxu0 %v3205
      %v3268 = vpop.f32.mrb[0].mxu0
      %v3269 = vadd.f32 0.0, %v3268
      %v3270 = vpop.f32.mrb[0].mxu0
      %v3271 = vpop.f32.mrb[0].mxu0
      %v3272 = vadd.f32 0.0, %v3271
      %v3273 = vpop.f32.mrb[0].mxu0
      %3274 = vdwg.mxu0
      %v3275 = vadd.f32 %v3163, %v3245
      %v3276 = vadd.f32 %v3164, %v3248
      %v3277 = vadd.f32 %v3165, %v3253
      %v3278 = vadd.f32 %v3166, %v3256
      %v3279 = vadd.f32 %v3167, %v3261
      %v3280 = vadd.f32 %v3168, %v3264
      %v3281 = vadd.f32 %v3169, %v3269
      %v3282 = vadd.f32 %v3170, %v3272
      %v3283 = vpack.c.bf16 %v3176, %v3174
      %v3284 = vpack.c.bf16 %v3180, %v3178
      %v3285 = vpack.c.bf16 %v3184, %v3182
      %v3286 = vpack.c.bf16 %v3188, %v3186
      %s3287 = scalar_lea.vmem %s3, 20
      %v3288 = vld [vmem:[%s3287] sm:$0x3]
      %v3290 = vsel %vm584, %v3283, 0
      %v3293 = vsel %vm584, %v3284, 0
      %v3296 = vsel %vm584, %v3285, 0
      %v3299 = vsel %vm584, %v3286, 0
      %v3302 = vsel %vm633, %v3288, 0
      %3304 = vmatprep.subr.bf16.mxu0 0
      %3305 = vmatpush1.bf16.msra.mxu0 %v3302
      %3306 = vmatprep.subr.bf16.mxu0 0
      %3307 = vmatpush1.bf16.msra.mxu0 0
      %3308 = vmatprep.subr.bf16.mxu0 0
      %3309 = vmatpush1.bf16.msra.mxu0 0
      %3310 = vmatprep.subr.bf16.mxu0 0
      %3311 = vmatpush1.bf16.msra.mxu0 0
      %3312 = vmatprep.subr.bf16.mxu0 0
      %3313 = vmatpush1.bf16.msra.mxu0 0
      %3314 = vmatprep.subr.bf16.mxu0 0
      %3315 = vmatpush1.bf16.msra.mxu0 0
      %3316 = vmatprep.subr.bf16.mxu0 0
      %3317 = vmatpush1.bf16.msra.mxu0 0
      %3318 = vmatprep.subr.bf16.mxu0 0
      %3319 = vmatpush1.bf16.msra.mxu0 0
      %3320 = vmatprep.subr.bf16.mxu0 0
      %3321 = vmatpush1.bf16.msra.mxu0 0
      %3322 = vmatprep.subr.bf16.mxu0 0
      %3323 = vmatpush1.bf16.msra.mxu0 0
      %3324 = vmatprep.subr.bf16.mxu0 0
      %3325 = vmatpush1.bf16.msra.mxu0 0
      %3326 = vmatprep.subr.bf16.mxu0 0
      %3327 = vmatpush1.bf16.msra.mxu0 0
      %3328 = vmatprep.subr.bf16.mxu0 0
      %3329 = vmatpush1.bf16.msra.mxu0 0
      %3330 = vmatprep.subr.bf16.mxu0 0
      %3331 = vmatpush1.bf16.msra.mxu0 0
      %3332 = vmatprep.subr.bf16.mxu0 0
      %3333 = vmatpush1.bf16.msra.mxu0 0
      %3334 = vmatprep.subr.bf16.mxu0 0
      %3335 = vmatpush1.bf16.msra.mxu0 0
      %3336 = vmatprep.mubr.bf16.mxu0 0
      %3337 = vmatmul.mubr.bf16.gmra.mrb[0].mxu0 %v3290
      %v3338 = vpop.f32.mrb[0].mxu0
      %v3339 = vadd.f32 0.0, %v3338
      %v3340 = vpop.f32.mrb[0].mxu0
      %v3341 = vpop.f32.mrb[0].mxu0
      %v3342 = vadd.f32 0.0, %v3341
      %v3343 = vpop.f32.mrb[0].mxu0
      %3344 = vmatprep.mubr.bf16.mxu0 0
      %3345 = vmatmul.mubr.bf16.gmra.mrb[0].mxu0 %v3293
      %v3346 = vpop.f32.mrb[0].mxu0
      %v3347 = vadd.f32 0.0, %v3346
      %v3348 = vpop.f32.mrb[0].mxu0
      %v3349 = vpop.f32.mrb[0].mxu0
      %v3350 = vadd.f32 0.0, %v3349
      %v3351 = vpop.f32.mrb[0].mxu0
      %3352 = vmatprep.mubr.bf16.mxu0 0
      %3353 = vmatmul.mubr.bf16.gmra.mrb[0].mxu0 %v3296
      %v3354 = vpop.f32.mrb[0].mxu0
      %v3355 = vadd.f32 0.0, %v3354
      %v3356 = vpop.f32.mrb[0].mxu0
      %v3357 = vpop.f32.mrb[0].mxu0
      %v3358 = vadd.f32 0.0, %v3357
      %v3359 = vpop.f32.mrb[0].mxu0
      %3360 = vmatprep.mubr.bf16.mxu0 0
      %3361 = vmatmul.mubr.bf16.gmra.mrb[0].mxu0 %v3299
      %v3362 = vpop.f32.mrb[0].mxu0
      %v3363 = vadd.f32 0.0, %v3362
      %v3364 = vpop.f32.mrb[0].mxu0
      %v3365 = vpop.f32.mrb[0].mxu0
      %v3366 = vadd.f32 0.0, %v3365
      %v3367 = vpop.f32.mrb[0].mxu0
      %3368 = vdwg.mxu0
      %v3369 = vadd.f32 %v3275, %v3339
      %v3370 = vadd.f32 %v3276, %v3342
      %v3371 = vadd.f32 %v3277, %v3347
      %v3372 = vadd.f32 %v3278, %v3350
      %v3373 = vadd.f32 %v3279, %v3355
      %v3374 = vadd.f32 %v3280, %v3358
      %v3375 = vadd.f32 %v3281, %v3363
      %v3376 = vadd.f32 %v3282, %v3366
      %s3377 = scalar_lea.vmem [#allocation2], 3
      %v3378 = vld [vmem:[%s3377] ss:$2 sm:$0xff]
      %s3379 = scalar_lea.vmem [#allocation2], 27
      %v3380 = vld [vmem:[%s3379] ss:$2 sm:$0xff]
      %s3381 = scalar_lea.vmem [#allocation2], 51
      %v3382 = vld [vmem:[%s3381] ss:$2 sm:$0xff]
      %s3383 = scalar_lea.vmem [#allocation2], 75
      %v3384 = vld [vmem:[%s3383] ss:$2 sm:$0xff]
      %s3385 = scalar_lea.vmem [#allocation2], 99
      %v3386 = vld [vmem:[%s3385] ss:$2 sm:$0xff]
      %s3387 = scalar_lea.vmem [#allocation2], 123
      %v3388 = vld [vmem:[%s3387] ss:$2 sm:$0xff]
      %s3389 = scalar_lea.vmem [#allocation2], 147
      %v3390 = vld [vmem:[%s3389] ss:$2 sm:$0xff]
      %s3391 = scalar_lea.vmem [#allocation2], 171
      %v3392 = vld [vmem:[%s3391] ss:$2 sm:$0xff]
      %s3393 = scalar_lea.vmem [#allocation2], 195
      %v3394 = vld [vmem:[%s3393] ss:$2 sm:$0xff]
      %v3395 = vpack.c.bf16 %v3380, %v3378
      %v3396 = vpack.c.bf16 %v3384, %v3382
      %v3397 = vpack.c.bf16 %v3388, %v3386
      %v3398 = vpack.c.bf16 %v3392, %v3390
      %s3399 = scalar_lea.vmem %s3, 6
      %v3400 = vld [vmem:[%s3399] sm:$0x3]
      %v3402 = vsel %vm584, %v3395, 0
      %v3405 = vsel %vm584, %v3396, 0
      %v3408 = vsel %vm584, %v3397, 0
      %v3411 = vsel %vm584, %v3398, 0
      %v3414 = vsel %vm633, %v3400, 0
      %3416 = vmatprep.subr.bf16.mxu0 0
      %3417 = vmatpush1.bf16.msra.mxu0 %v3414
      %3418 = vmatprep.subr.bf16.mxu0 0
      %3419 = vmatpush1.bf16.msra.mxu0 0
      %3420 = vmatprep.subr.bf16.mxu0 0
      %3421 = vmatpush1.bf16.msra.mxu0 0
      %3422 = vmatprep.subr.bf16.mxu0 0
      %3423 = vmatpush1.bf16.msra.mxu0 0
      %3424 = vmatprep.subr.bf16.mxu0 0
      %3425 = vmatpush1.bf16.msra.mxu0 0
      %3426 = vmatprep.subr.bf16.mxu0 0
      %3427 = vmatpush1.bf16.msra.mxu0 0
      %3428 = vmatprep.subr.bf16.mxu0 0
      %3429 = vmatpush1.bf16.msra.mxu0 0
      %3430 = vmatprep.subr.bf16.mxu0 0
      %3431 = vmatpush1.bf16.msra.mxu0 0
      %3432 = vmatprep.subr.bf16.mxu0 0
      %3433 = vmatpush1.bf16.msra.mxu0 0
      %3434 = vmatprep.subr.bf16.mxu0 0
      %3435 = vmatpush1.bf16.msra.mxu0 0
      %3436 = vmatprep.subr.bf16.mxu0 0
      %3437 = vmatpush1.bf16.msra.mxu0 0
      %3438 = vmatprep.subr.bf16.mxu0 0
      %3439 = vmatpush1.bf16.msra.mxu0 0
      %3440 = vmatprep.subr.bf16.mxu0 0
      %3441 = vmatpush1.bf16.msra.mxu0 0
      %3442 = vmatprep.subr.bf16.mxu0 0
      %3443 = vmatpush1.bf16.msra.mxu0 0
      %3444 = vmatprep.subr.bf16.mxu0 0
      %3445 = vmatpush1.bf16.msra.mxu0 0
      %3446 = vmatprep.subr.bf16.mxu0 0
      %3447 = vmatpush1.bf16.msra.mxu0 0
      %3448 = vmatprep.mubr.bf16.mxu0 0
      %3449 = vmatmul.mubr.bf16.gmra.mrb[0].mxu0 %v3402
      %v3450 = vpop.f32.mrb[0].mxu0
      %v3451 = vadd.f32 0.0, %v3450
      %v3452 = vpop.f32.mrb[0].mxu0
      %v3453 = vpop.f32.mrb[0].mxu0
      %v3454 = vadd.f32 0.0, %v3453
      %v3455 = vpop.f32.mrb[0].mxu0
      %3456 = vmatprep.mubr.bf16.mxu0 0
      %3457 = vmatmul.mubr.bf16.gmra.mrb[0].mxu0 %v3405
      %v3458 = vpop.f32.mrb[0].mxu0
      %v3459 = vadd.f32 0.0, %v3458
      %v3460 = vpop.f32.mrb[0].mxu0
      %v3461 = vpop.f32.mrb[0].mxu0
      %v3462 = vadd.f32 0.0, %v3461
      %v3463 = vpop.f32.mrb[0].mxu0
      %3464 = vmatprep.mubr.bf16.mxu0 0
      %3465 = vmatmul.mubr.bf16.gmra.mrb[0].mxu0 %v3408
      %v3466 = vpop.f32.mrb[0].mxu0
      %v3467 = vadd.f32 0.0, %v3466
      %v3468 = vpop.f32.mrb[0].mxu0
      %v3469 = vpop.f32.mrb[0].mxu0
      %v3470 = vadd.f32 0.0, %v3469
      %v3471 = vpop.f32.mrb[0].mxu0
      %3472 = vmatprep.mubr.bf16.mxu0 0
      %3473 = vmatmul.mubr.bf16.gmra.mrb[0].mxu0 %v3411
      %v3474 = vpop.f32.mrb[0].mxu0
      %v3475 = vadd.f32 0.0, %v3474
      %v3476 = vpop.f32.mrb[0].mxu0
      %v3477 = vpop.f32.mrb[0].mxu0
      %v3478 = vadd.f32 0.0, %v3477
      %v3479 = vpop.f32.mrb[0].mxu0
      %3480 = vdwg.mxu0
      %v3481 = vadd.f32 %v3369, %v3451
      %v3482 = vadd.f32 %v3370, %v3454
      %v3483 = vadd.f32 %v3371, %v3459
      %v3484 = vadd.f32 %v3372, %v3462
      %v3485 = vadd.f32 %v3373, %v3467
      %v3486 = vadd.f32 %v3374, %v3470
      %v3487 = vadd.f32 %v3375, %v3475
      %v3488 = vadd.f32 %v3376, %v3478
      %v3489 = vpack.c.bf16 %v3382, %v3380
      %v3490 = vpack.c.bf16 %v3386, %v3384
      %v3491 = vpack.c.bf16 %v3390, %v3388
      %v3492 = vpack.c.bf16 %v3394, %v3392
      %s3493 = scalar_lea.vmem %s3, 22
      %v3494 = vld [vmem:[%s3493] sm:$0x3]
      %v3496 = vsel %vm584, %v3489, 0
      %v3499 = vsel %vm584, %v3490, 0
      %v3502 = vsel %vm584, %v3491, 0
      %v3505 = vsel %vm584, %v3492, 0
      %v3508 = vsel %vm633, %v3494, 0
      %3510 = vmatprep.subr.bf16.mxu0 0
      %3511 = vmatpush1.bf16.msra.mxu0 %v3508
      %3512 = vmatprep.subr.bf16.mxu0 0
      %3513 = vmatpush1.bf16.msra.mxu0 0
      %3514 = vmatprep.subr.bf16.mxu0 0
      %3515 = vmatpush1.bf16.msra.mxu0 0
      %3516 = vmatprep.subr.bf16.mxu0 0
      %3517 = vmatpush1.bf16.msra.mxu0 0
      %3518 = vmatprep.subr.bf16.mxu0 0
      %3519 = vmatpush1.bf16.msra.mxu0 0
      %3520 = vmatprep.subr.bf16.mxu0 0
      %3521 = vmatpush1.bf16.msra.mxu0 0
      %3522 = vmatprep.subr.bf16.mxu0 0
      %3523 = vmatpush1.bf16.msra.mxu0 0
      %3524 = vmatprep.subr.bf16.mxu0 0
      %3525 = vmatpush1.bf16.msra.mxu0 0
      %3526 = vmatprep.subr.bf16.mxu0 0
      %3527 = vmatpush1.bf16.msra.mxu0 0
      %3528 = vmatprep.subr.bf16.mxu0 0
      %3529 = vmatpush1.bf16.msra.mxu0 0
      %3530 = vmatprep.subr.bf16.mxu0 0
      %3531 = vmatpush1.bf16.msra.mxu0 0
      %3532 = vmatprep.subr.bf16.mxu0 0
      %3533 = vmatpush1.bf16.msra.mxu0 0
      %3534 = vmatprep.subr.bf16.mxu0 0
      %3535 = vmatpush1.bf16.msra.mxu0 0
      %3536 = vmatprep.subr.bf16.mxu0 0
      %3537 = vmatpush1.bf16.msra.mxu0 0
      %3538 = vmatprep.subr.bf16.mxu0 0
      %3539 = vmatpush1.bf16.msra.mxu0 0
      %3540 = vmatprep.subr.bf16.mxu0 0
      %3541 = vmatpush1.bf16.msra.mxu0 0
      %3542 = vmatprep.mubr.bf16.mxu0 0
      %3543 = vmatmul.mubr.bf16.gmra.mrb[0].mxu0 %v3496
      %v3544 = vpop.f32.mrb[0].mxu0
      %v3545 = vadd.f32 0.0, %v3544
      %v3546 = vpop.f32.mrb[0].mxu0
      %v3547 = vpop.f32.mrb[0].mxu0
      %v3548 = vadd.f32 0.0, %v3547
      %v3549 = vpop.f32.mrb[0].mxu0
      %3550 = vmatprep.mubr.bf16.mxu0 0
      %3551 = vmatmul.mubr.bf16.gmra.mrb[0].mxu0 %v3499
      %v3552 = vpop.f32.mrb[0].mxu0
      %v3553 = vadd.f32 0.0, %v3552
      %v3554 = vpop.f32.mrb[0].mxu0
      %v3555 = vpop.f32.mrb[0].mxu0
      %v3556 = vadd.f32 0.0, %v3555
      %v3557 = vpop.f32.mrb[0].mxu0
      %3558 = vmatprep.mubr.bf16.mxu0 0
      %3559 = vmatmul.mubr.bf16.gmra.mrb[0].mxu0 %v3502
      %v3560 = vpop.f32.mrb[0].mxu0
      %v3561 = vadd.f32 0.0, %v3560
      %v3562 = vpop.f32.mrb[0].mxu0
      %v3563 = vpop.f32.mrb[0].mxu0
      %v3564 = vadd.f32 0.0, %v3563
      %v3565 = vpop.f32.mrb[0].mxu0
      %3566 = vmatprep.mubr.bf16.mxu0 0
      %3567 = vmatmul.mubr.bf16.gmra.mrb[0].mxu0 %v3505
      %v3568 = vpop.f32.mrb[0].mxu0
      %v3569 = vadd.f32 0.0, %v3568
      %v3570 = vpop.f32.mrb[0].mxu0
      %v3571 = vpop.f32.mrb[0].mxu0
      %v3572 = vadd.f32 0.0, %v3571
      %v3573 = vpop.f32.mrb[0].mxu0
      %3574 = vdwg.mxu0
      %v3575 = vadd.f32 %v3481, %v3545
      %v3576 = vadd.f32 %v3482, %v3548
      %v3577 = vadd.f32 %v3483, %v3553
      %v3578 = vadd.f32 %v3484, %v3556
      %v3579 = vadd.f32 %v3485, %v3561
      %v3580 = vadd.f32 %v3486, %v3564
      %v3581 = vadd.f32 %v3487, %v3569
      %v3582 = vadd.f32 %v3488, %v3572
      %v3583 = vld [vmem:[%s2720] ss:$2 sm:$0xff]
      %s3584 = scalar_lea.vmem %s2720, 24 [#allocation2]
      %v3585 = vld [vmem:[%s3584] ss:$2 sm:$0xff]
      %s3586 = scalar_lea.vmem %s2720, 48 [#allocation2]
      %v3587 = vld [vmem:[%s3586] ss:$2 sm:$0xff]
      %s3588 = scalar_lea.vmem %s2720, 72 [#allocation2]
      %v3589 = vld [vmem:[%s3588] ss:$2 sm:$0xff]
      %s3590 = scalar_lea.vmem %s2720, 96 [#allocation2]
      %v3591 = vld [vmem:[%s3590] ss:$2 sm:$0xff]
      %s3592 = scalar_lea.vmem %s2720, 120 [#allocation2]
      %v3593 = vld [vmem:[%s3592] ss:$2 sm:$0xff]
      %s3594 = scalar_lea.vmem %s2720, 144 [#allocation2]
      %v3595 = vld [vmem:[%s3594] ss:$2 sm:$0xff]
      %s3596 = scalar_lea.vmem %s2720, 168 [#allocation2]
      %v3597 = vld [vmem:[%s3596] ss:$2 sm:$0xff]
      %s3598 = scalar_lea.vmem %s2720, 192 [#allocation2]
      %v3599 = vld [vmem:[%s3598] ss:$2 sm:$0xff]
      %v3600 = vpack.c.bf16 %v3585, %v3583
      %v3601 = vpack.c.bf16 %v3589, %v3587
      %v3602 = vpack.c.bf16 %v3593, %v3591
      %v3603 = vpack.c.bf16 %v3597, %v3595
      %s3604 = scalar_lea.vmem %s3, 8
      %v3605 = vld [vmem:[%s3604] sm:$0x3]
      %v3607 = vsel %vm584, %v3600, 0
      %v3610 = vsel %vm584, %v3601, 0
      %v3613 = vsel %vm584, %v3602, 0
      %v3616 = vsel %vm584, %v3603, 0
      %v3619 = vsel %vm633, %v3605, 0
      %3621 = vmatprep.subr.bf16.mxu0 0
      %3622 = vmatpush1.bf16.msra.mxu0 %v3619
      %3623 = vmatprep.subr.bf16.mxu0 0
      %3624 = vmatpush1.bf16.msra.mxu0 0
      %3625 = vmatprep.subr.bf16.mxu0 0
      %3626 = vmatpush1.bf16.msra.mxu0 0
      %3627 = vmatprep.subr.bf16.mxu0 0
      %3628 = vmatpush1.bf16.msra.mxu0 0
      %3629 = vmatprep.subr.bf16.mxu0 0
      %3630 = vmatpush1.bf16.msra.mxu0 0
      %3631 = vmatprep.subr.bf16.mxu0 0
      %3632 = vmatpush1.bf16.msra.mxu0 0
      %3633 = vmatprep.subr.bf16.mxu0 0
      %3634 = vmatpush1.bf16.msra.mxu0 0
      %3635 = vmatprep.subr.bf16.mxu0 0
      %3636 = vmatpush1.bf16.msra.mxu0 0
      %3637 = vmatprep.subr.bf16.mxu0 0
      %3638 = vmatpush1.bf16.msra.mxu0 0
      %3639 = vmatprep.subr.bf16.mxu0 0
      %3640 = vmatpush1.bf16.msra.mxu0 0
      %3641 = vmatprep.subr.bf16.mxu0 0
      %3642 = vmatpush1.bf16.msra.mxu0 0
      %3643 = vmatprep.subr.bf16.mxu0 0
      %3644 = vmatpush1.bf16.msra.mxu0 0
      %3645 = vmatprep.subr.bf16.mxu0 0
      %3646 = vmatpush1.bf16.msra.mxu0 0
      %3647 = vmatprep.subr.bf16.mxu0 0
      %3648 = vmatpush1.bf16.msra.mxu0 0
      %3649 = vmatprep.subr.bf16.mxu0 0
      %3650 = vmatpush1.bf16.msra.mxu0 0
      %3651 = vmatprep.subr.bf16.mxu0 0
      %3652 = vmatpush1.bf16.msra.mxu0 0
      %3653 = vmatprep.mubr.bf16.mxu0 0
      %3654 = vmatmul.mubr.bf16.gmra.mrb[0].mxu0 %v3607
      %v3655 = vpop.f32.mrb[0].mxu0
      %v3656 = vadd.f32 0.0, %v3655
      %v3657 = vpop.f32.mrb[0].mxu0
      %v3658 = vpop.f32.mrb[0].mxu0
      %v3659 = vadd.f32 0.0, %v3658
      %v3660 = vpop.f32.mrb[0].mxu0
      %3661 = vmatprep.mubr.bf16.mxu0 0
      %3662 = vmatmul.mubr.bf16.gmra.mrb[0].mxu0 %v3610
      %v3663 = vpop.f32.mrb[0].mxu0
      %v3664 = vadd.f32 0.0, %v3663
      %v3665 = vpop.f32.mrb[0].mxu0
      %v3666 = vpop.f32.mrb[0].mxu0
      %v3667 = vadd.f32 0.0, %v3666
      %v3668 = vpop.f32.mrb[0].mxu0
      %3669 = vmatprep.mubr.bf16.mxu0 0
      %3670 = vmatmul.mubr.bf16.gmra.mrb[0].mxu0 %v3613
      %v3671 = vpop.f32.mrb[0].mxu0
      %v3672 = vadd.f32 0.0, %v3671
      %v3673 = vpop.f32.mrb[0].mxu0
      %v3674 = vpop.f32.mrb[0].mxu0
      %v3675 = vadd.f32 0.0, %v3674
      %v3676 = vpop.f32.mrb[0].mxu0
      %3677 = vmatprep.mubr.bf16.mxu0 0
      %3678 = vmatmul.mubr.bf16.gmra.mrb[0].mxu0 %v3616
      %v3679 = vpop.f32.mrb[0].mxu0
      %v3680 = vadd.f32 0.0, %v3679
      %v3681 = vpop.f32.mrb[0].mxu0
      %v3682 = vpop.f32.mrb[0].mxu0
      %v3683 = vadd.f32 0.0, %v3682
      %v3684 = vpop.f32.mrb[0].mxu0
      %3685 = vdwg.mxu0
      %v3686 = vadd.f32 %v3575, %v3656
      %v3687 = vadd.f32 %v3576, %v3659
      %v3688 = vadd.f32 %v3577, %v3664
      %v3689 = vadd.f32 %v3578, %v3667
      %v3690 = vadd.f32 %v3579, %v3672
      %v3691 = vadd.f32 %v3580, %v3675
      %v3692 = vadd.f32 %v3581, %v3680
      %v3693 = vadd.f32 %v3582, %v3683
      %v3694 = vpack.c.bf16 %v3587, %v3585
      %v3695 = vpack.c.bf16 %v3591, %v3589
      %v3696 = vpack.c.bf16 %v3595, %v3593
      %v3697 = vpack.c.bf16 %v3599, %v3597
      %s3698 = scalar_lea.vmem %s3, 24
      %v3699 = vld [vmem:[%s3698] sm:$0x3]
      %v3701 = vsel %vm584, %v3694, 0
      %v3704 = vsel %vm584, %v3695, 0
      %v3707 = vsel %vm584, %v3696, 0
      %v3710 = vsel %vm584, %v3697, 0
      %v3713 = vsel %vm633, %v3699, 0
      %3715 = vmatprep.subr.bf16.mxu0 0
      %3716 = vmatpush1.bf16.msra.mxu0 %v3713
      %3717 = vmatprep.subr.bf16.mxu0 0
      %3718 = vmatpush1.bf16.msra.mxu0 0
      %3719 = vmatprep.subr.bf16.mxu0 0
      %3720 = vmatpush1.bf16.msra.mxu0 0
      %3721 = vmatprep.subr.bf16.mxu0 0
      %3722 = vmatpush1.bf16.msra.mxu0 0
      %3723 = vmatprep.subr.bf16.mxu0 0
      %3724 = vmatpush1.bf16.msra.mxu0 0
      %3725 = vmatprep.subr.bf16.mxu0 0
      %3726 = vmatpush1.bf16.msra.mxu0 0
      %3727 = vmatprep.subr.bf16.mxu0 0
      %3728 = vmatpush1.bf16.msra.mxu0 0
      %3729 = vmatprep.subr.bf16.mxu0 0
      %3730 = vmatpush1.bf16.msra.mxu0 0
      %3731 = vmatprep.subr.bf16.mxu0 0
      %3732 = vmatpush1.bf16.msra.mxu0 0
      %3733 = vmatprep.subr.bf16.mxu0 0
      %3734 = vmatpush1.bf16.msra.mxu0 0
      %3735 = vmatprep.subr.bf16.mxu0 0
      %3736 = vmatpush1.bf16.msra.mxu0 0
      %3737 = vmatprep.subr.bf16.mxu0 0
      %3738 = vmatpush1.bf16.msra.mxu0 0
      %3739 = vmatprep.subr.bf16.mxu0 0
      %3740 = vmatpush1.bf16.msra.mxu0 0
      %3741 = vmatprep.subr.bf16.mxu0 0
      %3742 = vmatpush1.bf16.msra.mxu0 0
      %3743 = vmatprep.subr.bf16.mxu0 0
      %3744 = vmatpush1.bf16.msra.mxu0 0
      %3745 = vmatprep.subr.bf16.mxu0 0
      %3746 = vmatpush1.bf16.msra.mxu0 0
      %3747 = vmatprep.mubr.bf16.mxu0 0
      %3748 = vmatmul.mubr.bf16.gmra.mrb[0].mxu0 %v3701
      %v3749 = vpop.f32.mrb[0].mxu0
      %v3750 = vadd.f32 0.0, %v3749
      %v3751 = vpop.f32.mrb[0].mxu0
      %v3752 = vpop.f32.mrb[0].mxu0
      %v3753 = vadd.f32 0.0, %v3752
      %v3754 = vpop.f32.mrb[0].mxu0
      %3755 = vmatprep.mubr.bf16.mxu0 0
      %3756 = vmatmul.mubr.bf16.gmra.mrb[0].mxu0 %v3704
      %v3757 = vpop.f32.mrb[0].mxu0
      %v3758 = vadd.f32 0.0, %v3757
      %v3759 = vpop.f32.mrb[0].mxu0
      %v3760 = vpop.f32.mrb[0].mxu0
      %v3761 = vadd.f32 0.0, %v3760
      %v3762 = vpop.f32.mrb[0].mxu0
      %3763 = vmatprep.mubr.bf16.mxu0 0
      %3764 = vmatmul.mubr.bf16.gmra.mrb[0].mxu0 %v3707
      %v3765 = vpop.f32.mrb[0].mxu0
      %v3766 = vadd.f32 0.0, %v3765
      %v3767 = vpop.f32.mrb[0].mxu0
      %v3768 = vpop.f32.mrb[0].mxu0
      %v3769 = vadd.f32 0.0, %v3768
      %v3770 = vpop.f32.mrb[0].mxu0
      %3771 = vmatprep.mubr.bf16.mxu0 0
      %3772 = vmatmul.mubr.bf16.gmra.mrb[0].mxu0 %v3710
      %v3773 = vpop.f32.mrb[0].mxu0
      %v3774 = vadd.f32 0.0, %v3773
      %v3775 = vpop.f32.mrb[0].mxu0
      %v3776 = vpop.f32.mrb[0].mxu0
      %v3777 = vadd.f32 0.0, %v3776
      %v3778 = vpop.f32.mrb[0].mxu0
      %3779 = vdwg.mxu0
      %v3780 = vadd.f32 %v3686, %v3750
      %v3781 = vadd.f32 %v3687, %v3753
      %v3782 = vadd.f32 %v3688, %v3758
      %v3783 = vadd.f32 %v3689, %v3761
      %v3784 = vadd.f32 %v3690, %v3766
      %v3785 = vadd.f32 %v3691, %v3769
      %v3786 = vadd.f32 %v3692, %v3774
      %v3787 = vadd.f32 %v3693, %v3777
      %s3788 = scalar_lea.vmem %s2720, 1 [#allocation2]
      %v3789 = vld [vmem:[%s3788] ss:$2 sm:$0xff]
      %s3790 = scalar_lea.vmem %s2720, 25 [#allocation2]
      %v3791 = vld [vmem:[%s3790] ss:$2 sm:$0xff]
      %s3792 = scalar_lea.vmem %s2720, 49 [#allocation2]
      %v3793 = vld [vmem:[%s3792] ss:$2 sm:$0xff]
      %s3794 = scalar_lea.vmem %s2720, 73 [#allocation2]
      %v3795 = vld [vmem:[%s3794] ss:$2 sm:$0xff]
      %s3796 = scalar_lea.vmem %s2720, 97 [#allocation2]
      %v3797 = vld [vmem:[%s3796] ss:$2 sm:$0xff]
      %s3798 = scalar_lea.vmem %s2720, 121 [#allocation2]
      %v3799 = vld [vmem:[%s3798] ss:$2 sm:$0xff]
      %s3800 = scalar_lea.vmem %s2720, 145 [#allocation2]
      %v3801 = vld [vmem:[%s3800] ss:$2 sm:$0xff]
      %s3802 = scalar_lea.vmem %s2720, 169 [#allocation2]
      %v3803 = vld [vmem:[%s3802] ss:$2 sm:$0xff]
      %s3804 = scalar_lea.vmem %s2720, 193 [#allocation2]
      %v3805 = vld [vmem:[%s3804] ss:$2 sm:$0xff]
      %v3806 = vpack.c.bf16 %v3791, %v3789
      %v3807 = vpack.c.bf16 %v3795, %v3793
      %v3808 = vpack.c.bf16 %v3799, %v3797
      %v3809 = vpack.c.bf16 %v3803, %v3801
      %s3810 = scalar_lea.vmem %s3, 10
      %v3811 = vld [vmem:[%s3810] sm:$0x3]
      %v3813 = vsel %vm584, %v3806, 0
      %v3816 = vsel %vm584, %v3807, 0
      %v3819 = vsel %vm584, %v3808, 0
      %v3822 = vsel %vm584, %v3809, 0
      %v3825 = vsel %vm633, %v3811, 0
      %3827 = vmatprep.subr.bf16.mxu0 0
      %3828 = vmatpush1.bf16.msra.mxu0 %v3825
      %3829 = vmatprep.subr.bf16.mxu0 0
      %3830 = vmatpush1.bf16.msra.mxu0 0
      %3831 = vmatprep.subr.bf16.mxu0 0
      %3832 = vmatpush1.bf16.msra.mxu0 0
      %3833 = vmatprep.subr.bf16.mxu0 0
      %3834 = vmatpush1.bf16.msra.mxu0 0
      %3835 = vmatprep.subr.bf16.mxu0 0
      %3836 = vmatpush1.bf16.msra.mxu0 0
      %3837 = vmatprep.subr.bf16.mxu0 0
      %3838 = vmatpush1.bf16.msra.mxu0 0
      %3839 = vmatprep.subr.bf16.mxu0 0
      %3840 = vmatpush1.bf16.msra.mxu0 0
      %3841 = vmatprep.subr.bf16.mxu0 0
      %3842 = vmatpush1.bf16.msra.mxu0 0
      %3843 = vmatprep.subr.bf16.mxu0 0
      %3844 = vmatpush1.bf16.msra.mxu0 0
      %3845 = vmatprep.subr.bf16.mxu0 0
      %3846 = vmatpush1.bf16.msra.mxu0 0
      %3847 = vmatprep.subr.bf16.mxu0 0
      %3848 = vmatpush1.bf16.msra.mxu0 0
      %3849 = vmatprep.subr.bf16.mxu0 0
      %3850 = vmatpush1.bf16.msra.mxu0 0
      %3851 = vmatprep.subr.bf16.mxu0 0
      %3852 = vmatpush1.bf16.msra.mxu0 0
      %3853 = vmatprep.subr.bf16.mxu0 0
      %3854 = vmatpush1.bf16.msra.mxu0 0
      %3855 = vmatprep.subr.bf16.mxu0 0
      %3856 = vmatpush1.bf16.msra.mxu0 0
      %3857 = vmatprep.subr.bf16.mxu0 0
      %3858 = vmatpush1.bf16.msra.mxu0 0
      %3859 = vmatprep.mubr.bf16.mxu0 0
      %3860 = vmatmul.mubr.bf16.gmra.mrb[0].mxu0 %v3813
      %v3861 = vpop.f32.mrb[0].mxu0
      %v3862 = vadd.f32 0.0, %v3861
      %v3863 = vpop.f32.mrb[0].mxu0
      %v3864 = vpop.f32.mrb[0].mxu0
      %v3865 = vadd.f32 0.0, %v3864
      %v3866 = vpop.f32.mrb[0].mxu0
      %3867 = vmatprep.mubr.bf16.mxu0 0
      %3868 = vmatmul.mubr.bf16.gmra.mrb[0].mxu0 %v3816
      %v3869 = vpop.f32.mrb[0].mxu0
      %v3870 = vadd.f32 0.0, %v3869
      %v3871 = vpop.f32.mrb[0].mxu0
      %v3872 = vpop.f32.mrb[0].mxu0
      %v3873 = vadd.f32 0.0, %v3872
      %v3874 = vpop.f32.mrb[0].mxu0
      %3875 = vmatprep.mubr.bf16.mxu0 0
      %3876 = vmatmul.mubr.bf16.gmra.mrb[0].mxu0 %v3819
      %v3877 = vpop.f32.mrb[0].mxu0
      %v3878 = vadd.f32 0.0, %v3877
      %v3879 = vpop.f32.mrb[0].mxu0
      %v3880 = vpop.f32.mrb[0].mxu0
      %v3881 = vadd.f32 0.0, %v3880
      %v3882 = vpop.f32.mrb[0].mxu0
      %3883 = vmatprep.mubr.bf16.mxu0 0
      %3884 = vmatmul.mubr.bf16.gmra.mrb[0].mxu0 %v3822
      %v3885 = vpop.f32.mrb[0].mxu0
      %v3886 = vadd.f32 0.0, %v3885
      %v3887 = vpop.f32.mrb[0].mxu0
      %v3888 = vpop.f32.mrb[0].mxu0
      %v3889 = vadd.f32 0.0, %v3888
      %v3890 = vpop.f32.mrb[0].mxu0
      %3891 = vdwg.mxu0
      %v3892 = vadd.f32 %v3780, %v3862
      %v3893 = vadd.f32 %v3781, %v3865
      %v3894 = vadd.f32 %v3782, %v3870
      %v3895 = vadd.f32 %v3783, %v3873
      %v3896 = vadd.f32 %v3784, %v3878
      %v3897 = vadd.f32 %v3785, %v3881
      %v3898 = vadd.f32 %v3786, %v3886
      %v3899 = vadd.f32 %v3787, %v3889
      %v3900 = vpack.c.bf16 %v3793, %v3791
      %v3901 = vpack.c.bf16 %v3797, %v3795
      %v3902 = vpack.c.bf16 %v3801, %v3799
      %v3903 = vpack.c.bf16 %v3805, %v3803
      %s3904 = scalar_lea.vmem %s3, 26
      %v3905 = vld [vmem:[%s3904] sm:$0x3]
      %v3907 = vsel %vm584, %v3900, 0
      %v3910 = vsel %vm584, %v3901, 0
      %v3913 = vsel %vm584, %v3902, 0
      %v3916 = vsel %vm584, %v3903, 0
      %v3919 = vsel %vm633, %v3905, 0
      %3921 = vmatprep.subr.bf16.mxu0 0
      %3922 = vmatpush1.bf16.msra.mxu0 %v3919
      %3923 = vmatprep.subr.bf16.mxu0 0
      %3924 = vmatpush1.bf16.msra.mxu0 0
      %3925 = vmatprep.subr.bf16.mxu0 0
      %3926 = vmatpush1.bf16.msra.mxu0 0
      %3927 = vmatprep.subr.bf16.mxu0 0
      %3928 = vmatpush1.bf16.msra.mxu0 0
      %3929 = vmatprep.subr.bf16.mxu0 0
      %3930 = vmatpush1.bf16.msra.mxu0 0
      %3931 = vmatprep.subr.bf16.mxu0 0
      %3932 = vmatpush1.bf16.msra.mxu0 0
      %3933 = vmatprep.subr.bf16.mxu0 0
      %3934 = vmatpush1.bf16.msra.mxu0 0
      %3935 = vmatprep.subr.bf16.mxu0 0
      %3936 = vmatpush1.bf16.msra.mxu0 0
      %3937 = vmatprep.subr.bf16.mxu0 0
      %3938 = vmatpush1.bf16.msra.mxu0 0
      %3939 = vmatprep.subr.bf16.mxu0 0
      %3940 = vmatpush1.bf16.msra.mxu0 0
      %3941 = vmatprep.subr.bf16.mxu0 0
      %3942 = vmatpush1.bf16.msra.mxu0 0
      %3943 = vmatprep.subr.bf16.mxu0 0
      %3944 = vmatpush1.bf16.msra.mxu0 0
      %3945 = vmatprep.subr.bf16.mxu0 0
      %3946 = vmatpush1.bf16.msra.mxu0 0
      %3947 = vmatprep.subr.bf16.mxu0 0
      %3948 = vmatpush1.bf16.msra.mxu0 0
      %3949 = vmatprep.subr.bf16.mxu0 0
      %3950 = vmatpush1.bf16.msra.mxu0 0
      %3951 = vmatprep.subr.bf16.mxu0 0
      %3952 = vmatpush1.bf16.msra.mxu0 0
      %3953 = vmatprep.mubr.bf16.mxu0 0
      %3954 = vmatmul.mubr.bf16.gmra.mrb[0].mxu0 %v3907
      %v3955 = vpop.f32.mrb[0].mxu0
      %v3956 = vadd.f32 0.0, %v3955
      %v3957 = vpop.f32.mrb[0].mxu0
      %v3958 = vpop.f32.mrb[0].mxu0
      %v3959 = vadd.f32 0.0, %v3958
      %v3960 = vpop.f32.mrb[0].mxu0
      %3961 = vmatprep.mubr.bf16.mxu0 0
      %3962 = vmatmul.mubr.bf16.gmra.mrb[0].mxu0 %v3910
      %v3963 = vpop.f32.mrb[0].mxu0
      %v3964 = vadd.f32 0.0, %v3963
      %v3965 = vpop.f32.mrb[0].mxu0
      %v3966 = vpop.f32.mrb[0].mxu0
      %v3967 = vadd.f32 0.0, %v3966
      %v3968 = vpop.f32.mrb[0].mxu0
      %3969 = vmatprep.mubr.bf16.mxu0 0
      %3970 = vmatmul.mubr.bf16.gmra.mrb[0].mxu0 %v3913
      %v3971 = vpop.f32.mrb[0].mxu0
      %v3972 = vadd.f32 0.0, %v3971
      %v3973 = vpop.f32.mrb[0].mxu0
      %v3974 = vpop.f32.mrb[0].mxu0
      %v3975 = vadd.f32 0.0, %v3974
      %v3976 = vpop.f32.mrb[0].mxu0
      %3977 = vmatprep.mubr.bf16.mxu0 0
      %3978 = vmatmul.mubr.bf16.gmra.mrb[0].mxu0 %v3916
      %v3979 = vpop.f32.mrb[0].mxu0
      %v3980 = vadd.f32 0.0, %v3979
      %v3981 = vpop.f32.mrb[0].mxu0
      %v3982 = vpop.f32.mrb[0].mxu0
      %v3983 = vadd.f32 0.0, %v3982
      %v3984 = vpop.f32.mrb[0].mxu0
      %3985 = vdwg.mxu0
      %v3986 = vadd.f32 %v3892, %v3956
      %v3987 = vadd.f32 %v3893, %v3959
      %v3988 = vadd.f32 %v3894, %v3964
      %v3989 = vadd.f32 %v3895, %v3967
      %v3990 = vadd.f32 %v3896, %v3972
      %v3991 = vadd.f32 %v3897, %v3975
      %v3992 = vadd.f32 %v3898, %v3980
      %v3993 = vadd.f32 %v3899, %v3983
      %s3994 = scalar_lea.vmem %s2720, 2 [#allocation2]
      %v3995 = vld [vmem:[%s3994] ss:$2 sm:$0xff]
      %s3996 = scalar_lea.vmem %s2720, 26 [#allocation2]
      %v3997 = vld [vmem:[%s3996] ss:$2 sm:$0xff]
      %s3998 = scalar_lea.vmem %s2720, 50 [#allocation2]
      %v3999 = vld [vmem:[%s3998] ss:$2 sm:$0xff]
      %s4000 = scalar_lea.vmem %s2720, 74 [#allocation2]
      %v4001 = vld [vmem:[%s4000] ss:$2 sm:$0xff]
      %s4002 = scalar_lea.vmem %s2720, 98 [#allocation2]
      %v4003 = vld [vmem:[%s4002] ss:$2 sm:$0xff]
      %s4004 = scalar_lea.vmem %s2720, 122 [#allocation2]
      %v4005 = vld [vmem:[%s4004] ss:$2 sm:$0xff]
      %s4006 = scalar_lea.vmem %s2720, 146 [#allocation2]
      %v4007 = vld [vmem:[%s4006] ss:$2 sm:$0xff]
      %s4008 = scalar_lea.vmem %s2720, 170 [#allocation2]
      %v4009 = vld [vmem:[%s4008] ss:$2 sm:$0xff]
      %s4010 = scalar_lea.vmem %s2720, 194 [#allocation2]
      %v4011 = vld [vmem:[%s4010] ss:$2 sm:$0xff]
      %v4012 = vpack.c.bf16 %v3997, %v3995
      %v4013 = vpack.c.bf16 %v4001, %v3999
      %v4014 = vpack.c.bf16 %v4005, %v4003
      %v4015 = vpack.c.bf16 %v4009, %v4007
      %s4016 = scalar_lea.vmem %s3, 12
      %v4017 = vld [vmem:[%s4016] sm:$0x3]
      %v4019 = vsel %vm584, %v4012, 0
      %v4022 = vsel %vm584, %v4013, 0
      %v4025 = vsel %vm584, %v4014, 0
      %v4028 = vsel %vm584, %v4015, 0
      %v4031 = vsel %vm633, %v4017, 0
      %4033 = vmatprep.subr.bf16.mxu0 0
      %4034 = vmatpush1.bf16.msra.mxu0 %v4031
      %4035 = vmatprep.subr.bf16.mxu0 0
      %4036 = vmatpush1.bf16.msra.mxu0 0
      %4037 = vmatprep.subr.bf16.mxu0 0
      %4038 = vmatpush1.bf16.msra.mxu0 0
      %4039 = vmatprep.subr.bf16.mxu0 0
      %4040 = vmatpush1.bf16.msra.mxu0 0
      %4041 = vmatprep.subr.bf16.mxu0 0
      %4042 = vmatpush1.bf16.msra.mxu0 0
      %4043 = vmatprep.subr.bf16.mxu0 0
      %4044 = vmatpush1.bf16.msra.mxu0 0
      %4045 = vmatprep.subr.bf16.mxu0 0
      %4046 = vmatpush1.bf16.msra.mxu0 0
      %4047 = vmatprep.subr.bf16.mxu0 0
      %4048 = vmatpush1.bf16.msra.mxu0 0
      %4049 = vmatprep.subr.bf16.mxu0 0
      %4050 = vmatpush1.bf16.msra.mxu0 0
      %4051 = vmatprep.subr.bf16.mxu0 0
      %4052 = vmatpush1.bf16.msra.mxu0 0
      %4053 = vmatprep.subr.bf16.mxu0 0
      %4054 = vmatpush1.bf16.msra.mxu0 0
      %4055 = vmatprep.subr.bf16.mxu0 0
      %4056 = vmatpush1.bf16.msra.mxu0 0
      %4057 = vmatprep.subr.bf16.mxu0 0
      %4058 = vmatpush1.bf16.msra.mxu0 0
      %4059 = vmatprep.subr.bf16.mxu0 0
      %4060 = vmatpush1.bf16.msra.mxu0 0
      %4061 = vmatprep.subr.bf16.mxu0 0
      %4062 = vmatpush1.bf16.msra.mxu0 0
      %4063 = vmatprep.subr.bf16.mxu0 0
      %4064 = vmatpush1.bf16.msra.mxu0 0
      %4065 = vmatprep.mubr.bf16.mxu0 0
      %4066 = vmatmul.mubr.bf16.gmra.mrb[0].mxu0 %v4019
      %v4067 = vpop.f32.mrb[0].mxu0
      %v4068 = vadd.f32 0.0, %v4067
      %v4069 = vpop.f32.mrb[0].mxu0
      %v4070 = vpop.f32.mrb[0].mxu0
      %v4071 = vadd.f32 0.0, %v4070
      %v4072 = vpop.f32.mrb[0].mxu0
      %4073 = vmatprep.mubr.bf16.mxu0 0
      %4074 = vmatmul.mubr.bf16.gmra.mrb[0].mxu0 %v4022
      %v4075 = vpop.f32.mrb[0].mxu0
      %v4076 = vadd.f32 0.0, %v4075
      %v4077 = vpop.f32.mrb[0].mxu0
      %v4078 = vpop.f32.mrb[0].mxu0
      %v4079 = vadd.f32 0.0, %v4078
      %v4080 = vpop.f32.mrb[0].mxu0
      %4081 = vmatprep.mubr.bf16.mxu0 0
      %4082 = vmatmul.mubr.bf16.gmra.mrb[0].mxu0 %v4025
      %v4083 = vpop.f32.mrb[0].mxu0
      %v4084 = vadd.f32 0.0, %v4083
      %v4085 = vpop.f32.mrb[0].mxu0
      %v4086 = vpop.f32.mrb[0].mxu0
      %v4087 = vadd.f32 0.0, %v4086
      %v4088 = vpop.f32.mrb[0].mxu0
      %4089 = vmatprep.mubr.bf16.mxu0 0
      %4090 = vmatmul.mubr.bf16.gmra.mrb[0].mxu0 %v4028
      %v4091 = vpop.f32.mrb[0].mxu0
      %v4092 = vadd.f32 0.0, %v4091
      %v4093 = vpop.f32.mrb[0].mxu0
      %v4094 = vpop.f32.mrb[0].mxu0
      %v4095 = vadd.f32 0.0, %v4094
      %v4096 = vpop.f32.mrb[0].mxu0
      %4097 = vdwg.mxu0
      %v4098 = vadd.f32 %v3986, %v4068
      %v4099 = vadd.f32 %v3987, %v4071
      %v4100 = vadd.f32 %v3988, %v4076
      %v4101 = vadd.f32 %v3989, %v4079
      %v4102 = vadd.f32 %v3990, %v4084
      %v4103 = vadd.f32 %v3991, %v4087
      %v4104 = vadd.f32 %v3992, %v4092
      %v4105 = vadd.f32 %v3993, %v4095
      %v4106 = vpack.c.bf16 %v3999, %v3997
      %v4107 = vpack.c.bf16 %v4003, %v4001
      %v4108 = vpack.c.bf16 %v4007, %v4005
      %v4109 = vpack.c.bf16 %v4011, %v4009
      %s4110 = scalar_lea.vmem %s3, 28
      %v4111 = vld [vmem:[%s4110] sm:$0x3]
      %v4113 = vsel %vm584, %v4106, 0
      %v4116 = vsel %vm584, %v4107, 0
      %v4119 = vsel %vm584, %v4108, 0
      %v4122 = vsel %vm584, %v4109, 0
      %v4125 = vsel %vm633, %v4111, 0
      %4127 = vmatprep.subr.bf16.mxu0 0
      %4128 = vmatpush1.bf16.msra.mxu0 %v4125
      %4129 = vmatprep.subr.bf16.mxu0 0
      %4130 = vmatpush1.bf16.msra.mxu0 0
      %4131 = vmatprep.subr.bf16.mxu0 0
      %4132 = vmatpush1.bf16.msra.mxu0 0
      %4133 = vmatprep.subr.bf16.mxu0 0
      %4134 = vmatpush1.bf16.msra.mxu0 0
      %4135 = vmatprep.subr.bf16.mxu0 0
      %4136 = vmatpush1.bf16.msra.mxu0 0
      %4137 = vmatprep.subr.bf16.mxu0 0
      %4138 = vmatpush1.bf16.msra.mxu0 0
      %4139 = vmatprep.subr.bf16.mxu0 0
      %4140 = vmatpush1.bf16.msra.mxu0 0
      %4141 = vmatprep.subr.bf16.mxu0 0
      %4142 = vmatpush1.bf16.msra.mxu0 0
      %4143 = vmatprep.subr.bf16.mxu0 0
      %4144 = vmatpush1.bf16.msra.mxu0 0
      %4145 = vmatprep.subr.bf16.mxu0 0
      %4146 = vmatpush1.bf16.msra.mxu0 0
      %4147 = vmatprep.subr.bf16.mxu0 0
      %4148 = vmatpush1.bf16.msra.mxu0 0
      %4149 = vmatprep.subr.bf16.mxu0 0
      %4150 = vmatpush1.bf16.msra.mxu0 0
      %4151 = vmatprep.subr.bf16.mxu0 0
      %4152 = vmatpush1.bf16.msra.mxu0 0
      %4153 = vmatprep.subr.bf16.mxu0 0
      %4154 = vmatpush1.bf16.msra.mxu0 0
      %4155 = vmatprep.subr.bf16.mxu0 0
      %4156 = vmatpush1.bf16.msra.mxu0 0
      %4157 = vmatprep.subr.bf16.mxu0 0
      %4158 = vmatpush1.bf16.msra.mxu0 0
      %4159 = vmatprep.mubr.bf16.mxu0 0
      %4160 = vmatmul.mubr.bf16.gmra.mrb[0].mxu0 %v4113
      %v4161 = vpop.f32.mrb[0].mxu0
      %v4162 = vadd.f32 0.0, %v4161
      %v4163 = vpop.f32.mrb[0].mxu0
      %v4164 = vpop.f32.mrb[0].mxu0
      %v4165 = vadd.f32 0.0, %v4164
      %v4166 = vpop.f32.mrb[0].mxu0
      %4167 = vmatprep.mubr.bf16.mxu0 0
      %4168 = vmatmul.mubr.bf16.gmra.mrb[0].mxu0 %v4116
      %v4169 = vpop.f32.mrb[0].mxu0
      %v4170 = vadd.f32 0.0, %v4169
      %v4171 = vpop.f32.mrb[0].mxu0
      %v4172 = vpop.f32.mrb[0].mxu0
      %v4173 = vadd.f32 0.0, %v4172
      %v4174 = vpop.f32.mrb[0].mxu0
      %4175 = vmatprep.mubr.bf16.mxu0 0
      %4176 = vmatmul.mubr.bf16.gmra.mrb[0].mxu0 %v4119
      %v4177 = vpop.f32.mrb[0].mxu0
      %v4178 = vadd.f32 0.0, %v4177
      %v4179 = vpop.f32.mrb[0].mxu0
      %v4180 = vpop.f32.mrb[0].mxu0
      %v4181 = vadd.f32 0.0, %v4180
      %v4182 = vpop.f32.mrb[0].mxu0
      %4183 = vmatprep.mubr.bf16.mxu0 0
      %4184 = vmatmul.mubr.bf16.gmra.mrb[0].mxu0 %v4122
      %v4185 = vpop.f32.mrb[0].mxu0
      %v4186 = vadd.f32 0.0, %v4185
      %v4187 = vpop.f32.mrb[0].mxu0
      %v4188 = vpop.f32.mrb[0].mxu0
      %v4189 = vadd.f32 0.0, %v4188
      %v4190 = vpop.f32.mrb[0].mxu0
      %4191 = vdwg.mxu0
      %v4192 = vadd.f32 %v4098, %v4162
      %v4193 = vadd.f32 %v4099, %v4165
      %v4194 = vadd.f32 %v4100, %v4170
      %v4195 = vadd.f32 %v4101, %v4173
      %v4196 = vadd.f32 %v4102, %v4178
      %v4197 = vadd.f32 %v4103, %v4181
      %v4198 = vadd.f32 %v4104, %v4186
      %v4199 = vadd.f32 %v4105, %v4189
      %s4200 = scalar_lea.vmem %s2720, 3 [#allocation2]
      %v4201 = vld [vmem:[%s4200] ss:$2 sm:$0xff]
      %s4202 = scalar_lea.vmem %s2720, 27 [#allocation2]
      %v4203 = vld [vmem:[%s4202] ss:$2 sm:$0xff]
      %s4204 = scalar_lea.vmem %s2720, 51 [#allocation2]
      %v4205 = vld [vmem:[%s4204] ss:$2 sm:$0xff]
      %s4206 = scalar_lea.vmem %s2720, 75 [#allocation2]
      %v4207 = vld [vmem:[%s4206] ss:$2 sm:$0xff]
      %s4208 = scalar_lea.vmem %s2720, 99 [#allocation2]
      %v4209 = vld [vmem:[%s4208] ss:$2 sm:$0xff]
      %s4210 = scalar_lea.vmem %s2720, 123 [#allocation2]
      %v4211 = vld [vmem:[%s4210] ss:$2 sm:$0xff]
      %s4212 = scalar_lea.vmem %s2720, 147 [#allocation2]
      %v4213 = vld [vmem:[%s4212] ss:$2 sm:$0xff]
      %s4214 = scalar_lea.vmem %s2720, 171 [#allocation2]
      %v4215 = vld [vmem:[%s4214] ss:$2 sm:$0xff]
      %s4216 = scalar_lea.vmem %s2720, 195 [#allocation2]
      %v4217 = vld [vmem:[%s4216] ss:$2 sm:$0xff]
      %v4218 = vpack.c.bf16 %v4203, %v4201
      %v4219 = vpack.c.bf16 %v4207, %v4205
      %v4220 = vpack.c.bf16 %v4211, %v4209
      %v4221 = vpack.c.bf16 %v4215, %v4213
      %s4222 = scalar_lea.vmem %s3, 14
      %v4223 = vld [vmem:[%s4222] sm:$0x3]
      %v4225 = vsel %vm584, %v4218, 0
      %v4228 = vsel %vm584, %v4219, 0
      %v4231 = vsel %vm584, %v4220, 0
      %v4234 = vsel %vm584, %v4221, 0
      %v4237 = vsel %vm633, %v4223, 0
      %4239 = vmatprep.subr.bf16.mxu0 0
      %4240 = vmatpush1.bf16.msra.mxu0 %v4237
      %4241 = vmatprep.subr.bf16.mxu0 0
      %4242 = vmatpush1.bf16.msra.mxu0 0
      %4243 = vmatprep.subr.bf16.mxu0 0
      %4244 = vmatpush1.bf16.msra.mxu0 0
      %4245 = vmatprep.subr.bf16.mxu0 0
      %4246 = vmatpush1.bf16.msra.mxu0 0
      %4247 = vmatprep.subr.bf16.mxu0 0
      %4248 = vmatpush1.bf16.msra.mxu0 0
      %4249 = vmatprep.subr.bf16.mxu0 0
      %4250 = vmatpush1.bf16.msra.mxu0 0
      %4251 = vmatprep.subr.bf16.mxu0 0
      %4252 = vmatpush1.bf16.msra.mxu0 0
      %4253 = vmatprep.subr.bf16.mxu0 0
      %4254 = vmatpush1.bf16.msra.mxu0 0
      %4255 = vmatprep.subr.bf16.mxu0 0
      %4256 = vmatpush1.bf16.msra.mxu0 0
      %4257 = vmatprep.subr.bf16.mxu0 0
      %4258 = vmatpush1.bf16.msra.mxu0 0
      %4259 = vmatprep.subr.bf16.mxu0 0
      %4260 = vmatpush1.bf16.msra.mxu0 0
      %4261 = vmatprep.subr.bf16.mxu0 0
      %4262 = vmatpush1.bf16.msra.mxu0 0
      %4263 = vmatprep.subr.bf16.mxu0 0
      %4264 = vmatpush1.bf16.msra.mxu0 0
      %4265 = vmatprep.subr.bf16.mxu0 0
      %4266 = vmatpush1.bf16.msra.mxu0 0
      %4267 = vmatprep.subr.bf16.mxu0 0
      %4268 = vmatpush1.bf16.msra.mxu0 0
      %4269 = vmatprep.subr.bf16.mxu0 0
      %4270 = vmatpush1.bf16.msra.mxu0 0
      %4271 = vmatprep.mubr.bf16.mxu0 0
      %4272 = vmatmul.mubr.bf16.gmra.mrb[0].mxu0 %v4225
      %v4273 = vpop.f32.mrb[0].mxu0
      %v4274 = vadd.f32 0.0, %v4273
      %v4275 = vpop.f32.mrb[0].mxu0
      %v4276 = vpop.f32.mrb[0].mxu0
      %v4277 = vadd.f32 0.0, %v4276
      %v4278 = vpop.f32.mrb[0].mxu0
      %4279 = vmatprep.mubr.bf16.mxu0 0
      %4280 = vmatmul.mubr.bf16.gmra.mrb[0].mxu0 %v4228
      %v4281 = vpop.f32.mrb[0].mxu0
      %v4282 = vadd.f32 0.0, %v4281
      %v4283 = vpop.f32.mrb[0].mxu0
      %v4284 = vpop.f32.mrb[0].mxu0
      %v4285 = vadd.f32 0.0, %v4284
      %v4286 = vpop.f32.mrb[0].mxu0
      %4287 = vmatprep.mubr.bf16.mxu0 0
      %4288 = vmatmul.mubr.bf16.gmra.mrb[0].mxu0 %v4231
      %v4289 = vpop.f32.mrb[0].mxu0
      %v4290 = vadd.f32 0.0, %v4289
      %v4291 = vpop.f32.mrb[0].mxu0
      %v4292 = vpop.f32.mrb[0].mxu0
      %v4293 = vadd.f32 0.0, %v4292
      %v4294 = vpop.f32.mrb[0].mxu0
      %4295 = vmatprep.mubr.bf16.mxu0 0
      %4296 = vmatmul.mubr.bf16.gmra.mrb[0].mxu0 %v4234
      %v4297 = vpop.f32.mrb[0].mxu0
      %v4298 = vadd.f32 0.0, %v4297
      %v4299 = vpop.f32.mrb[0].mxu0
      %v4300 = vpop.f32.mrb[0].mxu0
      %v4301 = vadd.f32 0.0, %v4300
      %v4302 = vpop.f32.mrb[0].mxu0
      %4303 = vdwg.mxu0
      %v4304 = vadd.f32 %v4192, %v4274
      %v4305 = vadd.f32 %v4193, %v4277
      %v4306 = vadd.f32 %v4194, %v4282
      %v4307 = vadd.f32 %v4195, %v4285
      %v4308 = vadd.f32 %v4196, %v4290
      %v4309 = vadd.f32 %v4197, %v4293
      %v4310 = vadd.f32 %v4198, %v4298
      %v4311 = vadd.f32 %v4199, %v4301
      %v4312 = vpack.c.bf16 %v4205, %v4203
      %v4313 = vpack.c.bf16 %v4209, %v4207
      %v4314 = vpack.c.bf16 %v4213, %v4211
      %v4315 = vpack.c.bf16 %v4217, %v4215
      %s4316 = scalar_lea.vmem %s3, 30
      %v4317 = vld [vmem:[%s4316] sm:$0x3]
      %v4319 = vsel %vm584, %v4312, 0
      %v4322 = vsel %vm584, %v4313, 0
      %v4325 = vsel %vm584, %v4314, 0
      %v4328 = vsel %vm584, %v4315, 0
      %v4331 = vsel %vm633, %v4317, 0
      %4333 = vmatprep.subr.bf16.mxu0 0
      %4334 = vmatpush1.bf16.msra.mxu0 %v4331
      %4335 = vmatprep.subr.bf16.mxu0 0
      %4336 = vmatpush1.bf16.msra.mxu0 0
      %4337 = vmatprep.subr.bf16.mxu0 0
      %4338 = vmatpush1.bf16.msra.mxu0 0
      %4339 = vmatprep.subr.bf16.mxu0 0
      %4340 = vmatpush1.bf16.msra.mxu0 0
      %4341 = vmatprep.subr.bf16.mxu0 0
      %4342 = vmatpush1.bf16.msra.mxu0 0
      %4343 = vmatprep.subr.bf16.mxu0 0
      %4344 = vmatpush1.bf16.msra.mxu0 0
      %4345 = vmatprep.subr.bf16.mxu0 0
      %4346 = vmatpush1.bf16.msra.mxu0 0
      %4347 = vmatprep.subr.bf16.mxu0 0
      %4348 = vmatpush1.bf16.msra.mxu0 0
      %4349 = vmatprep.subr.bf16.mxu0 0
      %4350 = vmatpush1.bf16.msra.mxu0 0
      %4351 = vmatprep.subr.bf16.mxu0 0
      %4352 = vmatpush1.bf16.msra.mxu0 0
      %4353 = vmatprep.subr.bf16.mxu0 0
      %4354 = vmatpush1.bf16.msra.mxu0 0
      %4355 = vmatprep.subr.bf16.mxu0 0
      %4356 = vmatpush1.bf16.msra.mxu0 0
      %4357 = vmatprep.subr.bf16.mxu0 0
      %4358 = vmatpush1.bf16.msra.mxu0 0
      %4359 = vmatprep.subr.bf16.mxu0 0
      %4360 = vmatpush1.bf16.msra.mxu0 0
      %4361 = vmatprep.subr.bf16.mxu0 0
      %4362 = vmatpush1.bf16.msra.mxu0 0
      %4363 = vmatprep.subr.bf16.mxu0 0
      %4364 = vmatpush1.bf16.msra.mxu0 0
      %4365 = vmatprep.mubr.bf16.mxu0 0
      %4366 = vmatmul.mubr.bf16.gmra.mrb[0].mxu0 %v4319
      %v4367 = vpop.f32.mrb[0].mxu0
      %v4368 = vadd.f32 0.0, %v4367
      %v4369 = vpop.f32.mrb[0].mxu0
      %v4370 = vpop.f32.mrb[0].mxu0
      %v4371 = vadd.f32 0.0, %v4370
      %v4372 = vpop.f32.mrb[0].mxu0
      %4373 = vmatprep.mubr.bf16.mxu0 0
      %4374 = vmatmul.mubr.bf16.gmra.mrb[0].mxu0 %v4322
      %v4375 = vpop.f32.mrb[0].mxu0
      %v4376 = vadd.f32 0.0, %v4375
      %v4377 = vpop.f32.mrb[0].mxu0
      %v4378 = vpop.f32.mrb[0].mxu0
      %v4379 = vadd.f32 0.0, %v4378
      %v4380 = vpop.f32.mrb[0].mxu0
      %4381 = vmatprep.mubr.bf16.mxu0 0
      %4382 = vmatmul.mubr.bf16.gmra.mrb[0].mxu0 %v4325
      %v4383 = vpop.f32.mrb[0].mxu0
      %v4384 = vadd.f32 0.0, %v4383
      %v4385 = vpop.f32.mrb[0].mxu0
      %v4386 = vpop.f32.mrb[0].mxu0
      %v4387 = vadd.f32 0.0, %v4386
      %v4388 = vpop.f32.mrb[0].mxu0
      %4389 = vmatprep.mubr.bf16.mxu0 0
      %4390 = vmatmul.mubr.bf16.gmra.mrb[0].mxu0 %v4328
      %v4391 = vpop.f32.mrb[0].mxu0
      %v4392 = vadd.f32 0.0, %v4391
      %v4393 = vpop.f32.mrb[0].mxu0
      %v4394 = vpop.f32.mrb[0].mxu0
      %v4395 = vadd.f32 0.0, %v4394
      %v4396 = vpop.f32.mrb[0].mxu0
      %4397 = vdwg.mxu0
      %v4398 = vadd.f32 %v4304, %v4368
      %v4399 = vadd.f32 %v4305, %v4371
      %v4400 = vadd.f32 %v4306, %v4376
      %v4401 = vadd.f32 %v4307, %v4379
      %v4402 = vadd.f32 %v4308, %v4384
      %v4403 = vadd.f32 %v4309, %v4387
      %v4404 = vadd.f32 %v4310, %v4392
      %v4405 = vadd.f32 %v4311, %v4395
      %v4406 = vld [vmem:[%s4] sm:$0x1]
      %v4408 = vlaneseq
      %v4409 = vshrl.u32 %v4408, 7
      %v4410 = vsub.s32 0, %v4409
      %v4411 = vrot.slane %v4406, %v4410
      %v4413 = vadd.f32 %v4398, %v4411
      %v4414 = vadd.f32 %v4399, %v4411
      %v4415 = vadd.f32 %v4400, %v4411
      %v4416 = vadd.f32 %v4401, %v4411
      %v4417 = vadd.f32 %v4402, %v4411
      %v4418 = vadd.f32 %v4403, %v4411
      %v4419 = vadd.f32 %v4404, %v4411
      %v4420 = vadd.f32 %v4405, %v4411
      %s4421 = scalar_lea.vmem %s273, 24
      %s4422 = scalar_lea.vmem %s4421, 1
      %v4423 = vld [vmem:[%s4422] ss:$2 sm:$0xff]
      %s4424 = scalar_lea.vmem %s4421, 25
      %v4425 = vld [vmem:[%s4424] ss:$2 sm:$0xff]
      %s4426 = scalar_lea.vmem %s4421, 49
      %v4427 = vld [vmem:[%s4426] ss:$2 sm:$0xff]
      %s4428 = scalar_lea.vmem %s4421, 73
      %v4429 = vld [vmem:[%s4428] ss:$2 sm:$0xff]
      %s4430 = scalar_lea.vmem %s4421, 97
      %v4431 = vld [vmem:[%s4430] ss:$2 sm:$0xff]
      %s4432 = scalar_lea.vmem %s4421, 121
      %v4433 = vld [vmem:[%s4432] ss:$2 sm:$0xff]
      %s4434 = scalar_lea.vmem %s4421, 145
      %v4435 = vld [vmem:[%s4434] ss:$2 sm:$0xff]
      %s4436 = scalar_lea.vmem %s4421, 169
      %v4437 = vld [vmem:[%s4436] ss:$2 sm:$0xff]
      %s4438 = scalar_lea.vmem %s4421, 193
      %v4439 = vld [vmem:[%s4438] ss:$2 sm:$0xff]
      %s4440 = scalar_lea.vmem %s4421, 217
      %v4441 = vld [vmem:[%s4440] ss:$2 sm:$0xff]
      %s4442 = scalar_lea.vmem %s4421, 241
      %v4443 = vld [vmem:[%s4442] ss:$2 sm:$0xff]
      %s4444 = scalar_lea.vmem %s4421, 265
      %v4445 = vld [vmem:[%s4444] ss:$2 sm:$0xff]
      %s4446 = scalar_lea.vmem %s4421, 289
      %v4447 = vld [vmem:[%s4446] ss:$2 sm:$0xff]
      %s4448 = scalar_lea.vmem %s4421, 313
      %v4449 = vld [vmem:[%s4448] ss:$2 sm:$0xff]
      %s4450 = scalar_lea.vmem %s4421, 337
      %v4451 = vld [vmem:[%s4450] ss:$2 sm:$0xff]
      %s4452 = scalar_lea.vmem %s4421, 361
      %v4453 = vld [vmem:[%s4452] ss:$2 sm:$0xff]
      %s4454 = scalar_lea.vmem %s4421, 2
      %v4455 = vld [vmem:[%s4454] ss:$2 sm:$0xff]
      %s4456 = scalar_lea.vmem %s4421, 26
      %v4457 = vld [vmem:[%s4456] ss:$2 sm:$0xff]
      %s4458 = scalar_lea.vmem %s4421, 50
      %v4459 = vld [vmem:[%s4458] ss:$2 sm:$0xff]
      %s4460 = scalar_lea.vmem %s4421, 74
      %v4461 = vld [vmem:[%s4460] ss:$2 sm:$0xff]
      %s4462 = scalar_lea.vmem %s4421, 98
      %v4463 = vld [vmem:[%s4462] ss:$2 sm:$0xff]
      %s4464 = scalar_lea.vmem %s4421, 122
      %v4465 = vld [vmem:[%s4464] ss:$2 sm:$0xff]
      %s4466 = scalar_lea.vmem %s4421, 146
      %v4467 = vld [vmem:[%s4466] ss:$2 sm:$0xff]
      %s4468 = scalar_lea.vmem %s4421, 170
      %v4469 = vld [vmem:[%s4468] ss:$2 sm:$0xff]
      %s4470 = scalar_lea.vmem %s4421, 194
      %v4471 = vld [vmem:[%s4470] ss:$2 sm:$0xff]
      %s4472 = scalar_lea.vmem %s4421, 218
      %v4473 = vld [vmem:[%s4472] ss:$2 sm:$0xff]
      %s4474 = scalar_lea.vmem %s4421, 242
      %v4475 = vld [vmem:[%s4474] ss:$2 sm:$0xff]
      %s4476 = scalar_lea.vmem %s4421, 266
      %v4477 = vld [vmem:[%s4476] ss:$2 sm:$0xff]
      %s4478 = scalar_lea.vmem %s4421, 290
      %v4479 = vld [vmem:[%s4478] ss:$2 sm:$0xff]
      %s4480 = scalar_lea.vmem %s4421, 314
      %v4481 = vld [vmem:[%s4480] ss:$2 sm:$0xff]
      %s4482 = scalar_lea.vmem %s4421, 338
      %v4483 = vld [vmem:[%s4482] ss:$2 sm:$0xff]
      %s4484 = scalar_lea.vmem %s4421, 362
      %v4485 = vld [vmem:[%s4484] ss:$2 sm:$0xff]
      %v4486 = vadd.f32 %v4423, %v4455
      %v4487 = vadd.f32 %v4425, %v4457
      %v4488 = vadd.f32 %v4427, %v4459
      %v4489 = vadd.f32 %v4429, %v4461
      %v4490 = vadd.f32 %v4431, %v4463
      %v4491 = vadd.f32 %v4433, %v4465
      %v4492 = vadd.f32 %v4435, %v4467
      %v4493 = vadd.f32 %v4437, %v4469
      %v4494 = vadd.f32 %v4439, %v4471
      %v4495 = vadd.f32 %v4441, %v4473
      %v4496 = vadd.f32 %v4443, %v4475
      %v4497 = vadd.f32 %v4445, %v4477
      %v4498 = vadd.f32 %v4447, %v4479
      %v4499 = vadd.f32 %v4449, %v4481
      %v4500 = vadd.f32 %v4451, %v4483
      %v4501 = vadd.f32 %v4453, %v4485
      %v4502 = vadd.f32 %v4486, %v4487
      %v4503 = vadd.f32 %v4488, %v4489
      %v4504 = vadd.f32 %v4490, %v4491
      %v4505 = vadd.f32 %v4492, %v4493
      %v4506 = vadd.f32 %v4494, %v4495
      %v4507 = vadd.f32 %v4496, %v4497
      %v4508 = vadd.f32 %v4498, %v4499
      %v4509 = vadd.f32 %v4500, %v4501
      %v4510 = vmul.f32 %v4502, 0.25
      %v4511 = vmul.f32 %v4503, 0.25
      %v4512 = vmul.f32 %v4504, 0.25
      %v4513 = vmul.f32 %v4505, 0.25
      %v4514 = vmul.f32 %v4506, 0.25
      %v4515 = vmul.f32 %v4507, 0.25
      %v4516 = vmul.f32 %v4508, 0.25
      %v4517 = vmul.f32 %v4509, 0.25
      %v4518 = vpack.c.bf16 %v4511, %v4510
      %v4519 = vpack.c.bf16 %v4513, %v4512
      %v4520 = vpack.c.bf16 %v4515, %v4514
      %v4521 = vpack.c.bf16 %v4517, %v4516
      %v4522 = vld [vmem:[%s5] sm:$0x3]
      %v4523 = vld [vmem:[%s6] sm:$0x1]
      %v4525 = vlaneseq
      %v4526 = vshrl.u32 %v4525, 7
      %v4527 = vsub.s32 0, %v4526
      %v4528 = vrot.slane %v4523, %v4527
      %v4531 = vsel %vm584, %v4518, 0
      %v4534 = vsel %vm584, %v4519, 0
      %v4537 = vsel %vm584, %v4520, 0
      %v4540 = vsel %vm584, %v4521, 0
      %v4543 = vsel %vm633, %v4522, 0
      %4545 = vmatprep.subr.bf16.mxu0 0
      %4546 = vmatpush1.bf16.msra.mxu0 %v4543
      %4547 = vmatprep.subr.bf16.mxu0 0
      %4548 = vmatpush1.bf16.msra.mxu0 0
      %4549 = vmatprep.subr.bf16.mxu0 0
      %4550 = vmatpush1.bf16.msra.mxu0 0
      %4551 = vmatprep.subr.bf16.mxu0 0
      %4552 = vmatpush1.bf16.msra.mxu0 0
      %4553 = vmatprep.subr.bf16.mxu0 0
      %4554 = vmatpush1.bf16.msra.mxu0 0
      %4555 = vmatprep.subr.bf16.mxu0 0
      %4556 = vmatpush1.bf16.msra.mxu0 0
      %4557 = vmatprep.subr.bf16.mxu0 0
      %4558 = vmatpush1.bf16.msra.mxu0 0
      %4559 = vmatprep.subr.bf16.mxu0 0
      %4560 = vmatpush1.bf16.msra.mxu0 0
      %4561 = vmatprep.subr.bf16.mxu0 0
      %4562 = vmatpush1.bf16.msra.mxu0 0
      %4563 = vmatprep.subr.bf16.mxu0 0
      %4564 = vmatpush1.bf16.msra.mxu0 0
      %4565 = vmatprep.subr.bf16.mxu0 0
      %4566 = vmatpush1.bf16.msra.mxu0 0
      %4567 = vmatprep.subr.bf16.mxu0 0
      %4568 = vmatpush1.bf16.msra.mxu0 0
      %4569 = vmatprep.subr.bf16.mxu0 0
      %4570 = vmatpush1.bf16.msra.mxu0 0
      %4571 = vmatprep.subr.bf16.mxu0 0
      %4572 = vmatpush1.bf16.msra.mxu0 0
      %4573 = vmatprep.subr.bf16.mxu0 0
      %4574 = vmatpush1.bf16.msra.mxu0 0
      %4575 = vmatprep.subr.bf16.mxu0 0
      %4576 = vmatpush1.bf16.msra.mxu0 0
      %4577 = vmatprep.mubr.bf16.mxu0 0
      %4578 = vmatmul.mubr.bf16.gmra.mrb[0].mxu0 %v4531
      %v4579 = vpop.f32.mrb[0].mxu0
      %v4580 = vadd.f32 %v4528, %v4579
      %v4581 = vpop.f32.mrb[0].mxu0
      %v4582 = vpop.f32.mrb[0].mxu0
      %v4583 = vadd.f32 %v4528, %v4582
      %v4584 = vpop.f32.mrb[0].mxu0
      %4585 = vmatprep.mubr.bf16.mxu0 0
      %4586 = vmatmul.mubr.bf16.gmra.mrb[0].mxu0 %v4534
      %v4587 = vpop.f32.mrb[0].mxu0
      %v4588 = vadd.f32 %v4528, %v4587
      %v4589 = vpop.f32.mrb[0].mxu0
      %v4590 = vpop.f32.mrb[0].mxu0
      %v4591 = vadd.f32 %v4528, %v4590
      %v4592 = vpop.f32.mrb[0].mxu0
      %4593 = vmatprep.mubr.bf16.mxu0 0
      %4594 = vmatmul.mubr.bf16.gmra.mrb[0].mxu0 %v4537
      %v4595 = vpop.f32.mrb[0].mxu0
      %v4596 = vadd.f32 %v4528, %v4595
      %v4597 = vpop.f32.mrb[0].mxu0
      %v4598 = vpop.f32.mrb[0].mxu0
      %v4599 = vadd.f32 %v4528, %v4598
      %v4600 = vpop.f32.mrb[0].mxu0
      %4601 = vmatprep.mubr.bf16.mxu0 0
      %4602 = vmatmul.mubr.bf16.gmra.mrb[0].mxu0 %v4540
      %v4603 = vpop.f32.mrb[0].mxu0
      %v4604 = vadd.f32 %v4528, %v4603
      %v4605 = vpop.f32.mrb[0].mxu0
      %v4606 = vpop.f32.mrb[0].mxu0
      %v4607 = vadd.f32 %v4528, %v4606
      %v4608 = vpop.f32.mrb[0].mxu0
      %4609 = vdwg.mxu0
      %v4610 = vadd.f32 %v4413, %v4580
      %v4611 = vadd.f32 %v4414, %v4583
      %v4612 = vadd.f32 %v4415, %v4588
      %v4613 = vadd.f32 %v4416, %v4591
      %v4614 = vadd.f32 %v4417, %v4596
      %v4615 = vadd.f32 %v4418, %v4599
      %v4616 = vadd.f32 %v4419, %v4604
      %v4617 = vadd.f32 %v4420, %v4607
      %vm4618 = vcmask 64512
      %4619 = vst.msk [vmem:[%s278] sm:$0xff] %vm4618, %v4610
      %4620 = vst.msk [vmem:[%s278 + $0x8] sm:$0xff] %vm4618, %v4611
      %4621 = vst.msk [vmem:[%s278 + $0x10] sm:$0xff] %vm4618, %v4612
      %4622 = vst.msk [vmem:[%s278 + $0x18] sm:$0xff] %vm4618, %v4613
      %4623 = vst.msk [vmem:[%s278 + $0x20] sm:$0xff] %vm4618, %v4614
      %4624 = vst.msk [vmem:[%s278 + $0x28] sm:$0xff] %vm4618, %v4615
      %4625 = vst.msk [vmem:[%s278 + $0x30] sm:$0xff] %vm4618, %v4616
      %4626 = vst.msk [vmem:[%s278 + $0x38] sm:$0xff] %vm4618, %v4617
      %p4627 = scmp.lt.s32.totalorder %s18, 1
      %s4628 = scalar_select %p4627, %s18, 1
      %s4629 = smul.addr %s4628, 8
      %s4630 = smul.addr %s4629, 8
      %s4631 = scalar_lea.vmem %s7, %s4630
      // Predicated region
      $region49: #{tpu_custom_call.1} parent=47 // pred_check
        %p4632 = pneg %p188
      $region50: #{tpu_custom_call.1} parent=47 // pred_check_branch
        %4634 = sbr.rel (%p4632) target = $region52
      $region51: #{tpu_custom_call.1} parent=47 // pred_region
        _
      $region52: #{tpu_custom_call.1} parent=47 // pred_fallthru
        _
    $region48: #{tpu_custom_call.1} parent=5 // pred_fallthru
      _
    %p4635 = scmp.le.s32.totalorder 2, %s13
    // Predicated region
    $region53: #{tpu_custom_call.1} parent=5 // pred_check
      %p4636 = pneg %p4635
    $region54: #{tpu_custom_call.1} parent=5 // pred_check_branch
      %4638 = sbr.rel (%p4636) target = $region56
    $region55: #{tpu_custom_call.1} parent=5 // pred_region
      %s4639 = ssub.s32 %s13, 2
      // Predicated region
      $region57: #{tpu_custom_call.1} parent=55 // pred_check
        %p4640 = pneg %p194
      $region58: #{tpu_custom_call.1} parent=55 // pred_check_branch
        %4642 = sbr.rel (%p4640) target = $region60
      $region59: #{tpu_custom_call.1} parent=55 // pred_region
        %p4643 = scmp.lt.s32.totalorder %s19, 1
        %s4644 = scalar_select %p4643, %s19, 1
        %s4645 = smul.addr %s4644, 8
        %s4646 = smul.addr %s4645, 8
        %s4647 = scalar_lea.vmem %s7, %s4646
      $region60: #{tpu_custom_call.1} parent=55 // pred_fallthru
        _
    $region56: #{tpu_custom_call.1} parent=5 // pred_fallthru
      _
  $region6: #{tpu_custom_call.1} parent=0 // loop_footer
    %s17 = sadd.s32 1, %s13
  $region7: #{tpu_custom_call.1} parent=0 // loop_footer_branch
    %12 = sbr.rel target = $region3
  $region8: #{tpu_custom_call.1} parent=0 // loop_exit
    _

</llo_original>
